<compile_context>
chip_gen: v6e
topology: v6e:2x2x1
jax: 0.10.0
libtpu: 0.0.40
codegen_flags: <defaults>
</compile_context>

<pallas_src>
import jax
import jax.numpy as jnp
from jax.experimental import pallas as pl
from jax.experimental.pallas import tpu as pltpu


# --------------------------- fused block kernel -----------------------------

def make_block_kernel(H, W, C, num_pairs):
    """Kernel processing one batch sample end-to-end.

    Refs:
      x_ref : (1, H+2, (W+2)*C)  zero-padded input, lane-fused (w,c) -> w*C+c
      w_ref : (2*num_pairs, 9, W*C, W*C)  block-diagonal per-tap weights
      b_ref : (2*num_pairs, W*C)          lane-fused biases
      o_ref : (1, H, W*C)  2x2 window max (pre-decimation), lane-fused
      buf_a, buf_b : (H+2, (W+2)*C) f32 VMEM scratch (padded activations)
    """
    WC = W * C

    def kernel(x_ref, w_ref, b_ref, o_ref, buf_a, buf_b):
        # zero the padded scratch buffers; their borders provide the conv padding
        buf_a[...] = jnp.zeros_like(buf_a)
        buf_b[...] = jnp.zeros_like(buf_b)

        def conv(read_tap, idx):
            # 3x3 conv as 9 MXU matmuls with block-diagonal tap weights.
            acc = jnp.zeros((H, WC), jnp.float32)
            for t in range(9):
                dy, dx = divmod(t, 3)
                acc = acc + jnp.dot(read_tap(dy, dx), w_ref[idx, t],
                                    preferred_element_type=jnp.float32)
            return acc + b_ref[idx:idx + 1, :]

        def rd(buf):
            return lambda dy, dx: buf[dy:dy + H, dx * C:dx * C + WC]

        read_x = lambda dy, dx: x_ref[0, dy:dy + H, dx * C:dx * C + WC]

        # ---- pair 0 (no residual) ----
        buf_a[1:H + 1, C:C + WC] = conv(read_x, 0)
        y = conv(rd(buf_a), 1)
        if num_pairs > 1:
            buf_b[1:H + 1, C:C + WC] = y     # pair-0 output: next input + residual

        # ---- pairs 1.. (with residual) ----
        for p in range(1, num_pairs):
            buf_a[1:H + 1, C:C + WC] = conv(rd(buf_b), 2 * p)
            y = buf_b[1:H + 1, C:C + WC] + conv(rd(buf_a), 2 * p + 1)
            if p + 1 < num_pairs:
                buf_b[1:H + 1, C:C + WC] = y

        # ---- 2x2 max-pool window reduction (stride-2 decimation in wrapper) ----
        buf_a[...] = jnp.zeros_like(buf_a)   # buf_a is free now; reuse as pad
        buf_a[0:H, 0:WC] = y
        m = jnp.maximum(
            jnp.maximum(buf_a[0:H, 0:WC], buf_a[1:H + 1, 0:WC]),
            jnp.maximum(buf_a[0:H, C:C + WC], buf_a[1:H + 1, C:C + WC]))
        o_ref[0] = m.astype(o_ref.dtype)

    return kernel


# ----------------------------- module forward -------------------------------

def my_resnet_block_forward(x_nchw, fused_params):
    """Pallas implementation of MyResNetBlock.forward. Input/output are NCHW."""
    wbig, bfused = fused_params
    N, Cin, H, W = x_nchw.shape
    C = bfused.shape[1] // W                  # channels (= 8)
    num_pairs = wbig.shape[0] // 2

    # glue: NCHW -> NHWC, pad channels to C and spatial by 1, fuse (w,c) lanes
    x = jnp.transpose(x_nchw, (0, 2, 3, 1))
    x = jnp.pad(x, ((0, 0), (1, 1), (1, 1), (0, C - Cin)))
    xf = x.reshape(N, H + 2, (W + 2) * C)

    m = pl.pallas_call(
        make_block_kernel(H, W, C, num_pairs),
        grid=(N,),
        in_specs=[
            pl.BlockSpec((1, H + 2, (W + 2) * C), lambda n: (n, 0, 0)),
            pl.BlockSpec(wbig.shape, lambda n: (0, 0, 0, 0)),
            pl.BlockSpec(bfused.shape, lambda n: (0, 0)),
        ],
        out_specs=pl.BlockSpec((1, H, W * C), lambda n: (n, 0, 0)),
        out_shape=jax.ShapeDtypeStruct((N, H, W * C), x_nchw.dtype),
        scratch_shapes=[pltpu.VMEM((H + 2, (W + 2) * C), jnp.float32),
                        pltpu.VMEM((H + 2, (W + 2) * C), jnp.float32)],
        compiler_params=pltpu.CompilerParams(
            dimension_semantics=("parallel",)),   # v7x: split batch over 2 TCs
    )(xf, wbig, bfused)

    # glue: stride-2 decimation of the in-kernel window max + NHWC -> NCHW
    pooled = m.reshape(N, H, W, C)[:, 0::2, 0::2, :]
    return jnp.transpose(pooled, (0, 3, 1, 2))


# ----------------------------- parameters -----------------------------------

def init_params(key, channels, num_pairs, input_channel):
    """Deterministic params. Weights in PyTorch conv layout (Cout, Cin, 3, 3)."""
    params = []
    c_in = input_channel
    for _ in range(num_pairs):
        convs = []
        for (ci, co) in ((c_in, channels), (channels, channels)):
            key, kw, kb = jax.random.split(key, 3)
            bound = 1.0 / ((ci * 9) ** 0.5)
            w = jax.random.uniform(kw, (co, ci, 3, 3), jnp.float32, -bound, bound)
            b = jax.random.uniform(kb, (co,), jnp.float32, -bound, bound)
            convs += [w, b]
        params.append(tuple(convs))
        c_in = channels
    return params


def prepare_fused_params(params, W, channels):
    """Precompute (once at init) the lane-fused weight/bias layout.

    Each 3x3 conv becomes 9 block-diagonal (W*C, W*C) matrices so each tap is a
    single MXU matmul in the lane-fused (h, w*C+c) layout.  Convs whose
    Cin < channels (pair 0, conv 1) get zero-padded input channels.
    """
    eye_w = jnp.eye(W, dtype=jnp.float32)
    wbig, bfused = [], []
    for pair in params:
        for (w, b) in ((pair[0], pair[1]), (pair[2], pair[3])):
            co, ci = w.shape[0], w.shape[1]
            assert co == channels
            wp = jnp.zeros((co, channels, 3, 3), jnp.float32).at[:, :ci].set(w)
            taps = [jnp.kron(eye_w, wp[:, :, dy, dx].T)       # (W*C, W*C)
                    for dy in range(3) for dx in range(3)]
            wbig.append(jnp.stack(taps))                      # (9, W*C, W*C)
            bfused.append(jnp.tile(b, W))                     # (W*C,)
    return jnp.stack(wbig), jnp.stack(bfused)


# ----------------------------- reference (plain JAX) ------------------------

def _ref_forward(x_nchw, params):
    x = jnp.transpose(x_nchw, (0, 2, 3, 1))

    def conv(x, w_t, b):
        return jax.lax.conv_general_dilated(
            x, jnp.transpose(w_t, (2, 3, 1, 0)),
            window_strides=(1, 1), padding="SAME",
            dimension_numbers=("NHWC", "HWIO", "NHWC"),
            precision=jax.lax.Precision.HIGHEST) + b

    for i, (w1, b1, w2, b2) in enumerate(params):
        y = conv(x, w1, b1)
        y = conv(y, w2, b2)
        x = y if i == 0 else x + y
    N, H, W, C = x.shape
    x = x.reshape(N, H // 2, 2, W // 2, 2, C).max(axis=(2, 4))
    return jnp.transpose(x, (0, 3, 1, 2))


# ----------------------------- main ------------------------------------------

if __name__ == "__main__":
    N, Cin, H, W = 2, 4, 16, 16
    channels, num_pairs = 8, 2

    key = jax.random.PRNGKey(0)
    kx, kp = jax.random.split(key)
    x = jax.random.normal(kx, (N, Cin, H, W), jnp.float32)
    params = init_params(kp, channels, num_pairs, input_channel=Cin)
    fused = prepare_fused_params(params, W=W, channels=channels)  # once, at init

    fwd = jax.jit(my_resnet_block_forward)
    out = jax.block_until_ready(fwd(x, fused))

    assert out.shape == (N, channels, H // 2, W // 2), out.shape
    ref = jax.block_until_ready(_ref_forward(x, params))
    assert jnp.allclose(out, ref, atol=1e-3, rtol=1e-3), "mismatch vs reference"

    print("KERNEL_OK")
</pallas_src>

<mosaic_0001>
module attributes {stable_mosaic.version = 11 : i64} {
  func.func @kernel(%arg0: i32, %arg1: memref<1x18x144xf32, #tpu.memory_space<vmem>>, %arg2: memref<4x9x128x128xf32, #tpu.memory_space<vmem>>, %arg3: memref<4x128xf32, #tpu.memory_space<vmem>>, %arg4: memref<1x16x128xf32, #tpu.memory_space<vmem>>, %arg5: memref<18x144xf32, #tpu.memory_space<vmem>>, %arg6: memref<18x144xf32, #tpu.memory_space<vmem>>) attributes {dimension_semantics = [#tpu.dimension_semantics<parallel>], iteration_bounds = array<i64: 2>, scalar_prefetch = 0 : i64, scratch_operands = 2 : i64, tpu.core_type = #tpu.core_type<tc>, window_params = [{transform_indices = @transform_0, window_bounds = array<i64: 1, 18, 144>}, {pipeline_mode = #tpu.pipeline_mode<synchronous>, transform_indices = @transform_1, window_bounds = array<i64: 4, 9, 128, 128>}, {pipeline_mode = #tpu.pipeline_mode<synchronous>, transform_indices = @transform_2, window_bounds = array<i64: 4, 128>}, {transform_indices = @transform_3, window_bounds = array<i64: 1, 16, 128>}]} {
    %cst = arith.constant 0.000000e+00 : f32
    %0 = vector.broadcast %cst : f32 to vector<18x144xf32>
    %c0 = arith.constant 0 : index
    %c0_0 = arith.constant 0 : index
    %1 = vector.load %arg5[%c0, %c0_0] : memref<18x144xf32, #tpu.memory_space<vmem>>, vector<18x144xf32>
    tpu.vector_store %arg5[%c0, %c0_0], %0 {strides = array<i32>} : memref<18x144xf32, #tpu.memory_space<vmem>>, vector<18x144xf32>,
    %cst_1 = arith.constant 0.000000e+00 : f32
    %2 = vector.broadcast %cst_1 : f32 to vector<18x144xf32>
    %c0_2 = arith.constant 0 : index
    %c0_3 = arith.constant 0 : index
    %3 = vector.load %arg6[%c0_2, %c0_3] : memref<18x144xf32, #tpu.memory_space<vmem>>, vector<18x144xf32>
    tpu.vector_store %arg6[%c0_2, %c0_3], %2 {strides = array<i32>} : memref<18x144xf32, #tpu.memory_space<vmem>>, vector<18x144xf32>,
    %cst_4 = arith.constant 0.000000e+00 : f32
    %4 = vector.broadcast %cst_4 : f32 to vector<16x128xf32>
    %c0_5 = arith.constant 0 : index
    %c0_6 = arith.constant 0 : index
    %c0_7 = arith.constant 0 : index
    %5 = vector.load %arg1[%c0_5, %c0_6, %c0_7] : memref<1x18x144xf32, #tpu.memory_space<vmem>>, vector<1x16x128xf32>
    %6 = vector.shape_cast %5 : vector<1x16x128xf32> to vector<16x128xf32>
    %c0_8 = arith.constant 0 : index
    %c0_9 = arith.constant 0 : index
    %c0_10 = arith.constant 0 : index
    %c0_11 = arith.constant 0 : index
    %7 = vector.load %arg2[%c0_8, %c0_9, %c0_10, %c0_11] : memref<4x9x128x128xf32, #tpu.memory_space<vmem>>, vector<1x1x128x128xf32>
    %8 = vector.shape_cast %7 : vector<1x1x128x128xf32> to vector<128x128xf32>
    %cst_12 = arith.constant dense<0.000000e+00> : vector<16x128xf32>
    %9 = tpu.matmul %6, %8, %cst_12 {dimension_numbers = #tpu.dot_dimension_numbers<[1], [0], [0], [1], [0, 0, 1, 1], [], []>} : vector<16x128xf32>, vector<128x128xf32>, vector<16x128xf32> -> vector<16x128xf32>
    %10 = arith.addf %4, %9 : vector<16x128xf32>
    %c0_13 = arith.constant 0 : index
    %c0_14 = arith.constant 0 : index
    %c8 = arith.constant 8 : index
    %11 = vector.load %arg1[%c0_13, %c0_14, %c8] : memref<1x18x144xf32, #tpu.memory_space<vmem>>, vector<1x16x128xf32>
    %12 = vector.shape_cast %11 : vector<1x16x128xf32> to vector<16x128xf32>
    %c0_15 = arith.constant 0 : index
    %c1 = arith.constant 1 : index
    %c0_16 = arith.constant 0 : index
    %c0_17 = arith.constant 0 : index
    %13 = vector.load %arg2[%c0_15, %c1, %c0_16, %c0_17] : memref<4x9x128x128xf32, #tpu.memory_space<vmem>>, vector<1x1x128x128xf32>
    %14 = vector.shape_cast %13 : vector<1x1x128x128xf32> to vector<128x128xf32>
    %cst_18 = arith.constant dense<0.000000e+00> : vector<16x128xf32>
    %15 = tpu.matmul %12, %14, %cst_18 {dimension_numbers = #tpu.dot_dimension_numbers<[1], [0], [0], [1], [0, 0, 1, 1], [], []>} : vector<16x128xf32>, vector<128x128xf32>, vector<16x128xf32> -> vector<16x128xf32>
    %16 = arith.addf %10, %15 : vector<16x128xf32>
    %c0_19 = arith.constant 0 : index
    %c0_20 = arith.constant 0 : index
    %c16 = arith.constant 16 : index
    %17 = vector.load %arg1[%c0_19, %c0_20, %c16] : memref<1x18x144xf32, #tpu.memory_space<vmem>>, vector<1x16x128xf32>
    %18 = vector.shape_cast %17 : vector<1x16x128xf32> to vector<16x128xf32>
    %c0_21 = arith.constant 0 : index
    %c2 = arith.constant 2 : index
    %c0_22 = arith.constant 0 : index
    %c0_23 = arith.constant 0 : index
    %19 = vector.load %arg2[%c0_21, %c2, %c0_22, %c0_23] : memref<4x9x128x128xf32, #tpu.memory_space<vmem>>, vector<1x1x128x128xf32>
    %20 = vector.shape_cast %19 : vector<1x1x128x128xf32> to vector<128x128xf32>
    %cst_24 = arith.constant dense<0.000000e+00> : vector<16x128xf32>
    %21 = tpu.matmul %18, %20, %cst_24 {dimension_numbers = #tpu.dot_dimension_numbers<[1], [0], [0], [1], [0, 0, 1, 1], [], []>} : vector<16x128xf32>, vector<128x128xf32>, vector<16x128xf32> -> vector<16x128xf32>
    %22 = arith.addf %16, %21 : vector<16x128xf32>
    %c0_25 = arith.constant 0 : index
    %c1_26 = arith.constant 1 : index
    %c0_27 = arith.constant 0 : index
    %23 = vector.load %arg1[%c0_25, %c1_26, %c0_27] : memref<1x18x144xf32, #tpu.memory_space<vmem>>, vector<1x16x128xf32>
    %24 = vector.shape_cast %23 : vector<1x16x128xf32> to vector<16x128xf32>
    %c0_28 = arith.constant 0 : index
    %c3 = arith.constant 3 : index
    %c0_29 = arith.constant 0 : index
    %c0_30 = arith.constant 0 : index
    %25 = vector.load %arg2[%c0_28, %c3, %c0_29, %c0_30] : memref<4x9x128x128xf32, #tpu.memory_space<vmem>>, vector<1x1x128x128xf32>
    %26 = vector.shape_cast %25 : vector<1x1x128x128xf32> to vector<128x128xf32>
    %cst_31 = arith.constant dense<0.000000e+00> : vector<16x128xf32>
    %27 = tpu.matmul %24, %26, %cst_31 {dimension_numbers = #tpu.dot_dimension_numbers<[1], [0], [0], [1], [0, 0, 1, 1], [], []>} : vector<16x128xf32>, vector<128x128xf32>, vector<16x128xf32> -> vector<16x128xf32>
    %28 = arith.addf %22, %27 : vector<16x128xf32>
    %c0_32 = arith.constant 0 : index
    %c1_33 = arith.constant 1 : index
    %c8_34 = arith.constant 8 : index
    %29 = vector.load %arg1[%c0_32, %c1_33, %c8_34] : memref<1x18x144xf32, #tpu.memory_space<vmem>>, vector<1x16x128xf32>
    %30 = vector.shape_cast %29 : vector<1x16x128xf32> to vector<16x128xf32>
    %c0_35 = arith.constant 0 : index
    %c4 = arith.constant 4 : index
    %c0_36 = arith.constant 0 : index
    %c0_37 = arith.constant 0 : index
    %31 = vector.load %arg2[%c0_35, %c4, %c0_36, %c0_37] : memref<4x9x128x128xf32, #tpu.memory_space<vmem>>, vector<1x1x128x128xf32>
    %32 = vector.shape_cast %31 : vector<1x1x128x128xf32> to vector<128x128xf32>
    %cst_38 = arith.constant dense<0.000000e+00> : vector<16x128xf32>
    %33 = tpu.matmul %30, %32, %cst_38 {dimension_numbers = #tpu.dot_dimension_numbers<[1], [0], [0], [1], [0, 0, 1, 1], [], []>} : vector<16x128xf32>, vector<128x128xf32>, vector<16x128xf32> -> vector<16x128xf32>
    %34 = arith.addf %28, %33 : vector<16x128xf32>
    %c0_39 = arith.constant 0 : index
    %c1_40 = arith.constant 1 : index
    %c16_41 = arith.constant 16 : index
    %35 = vector.load %arg1[%c0_39, %c1_40, %c16_41] : memref<1x18x144xf32, #tpu.memory_space<vmem>>, vector<1x16x128xf32>
    %36 = vector.shape_cast %35 : vector<1x16x128xf32> to vector<16x128xf32>
    %c0_42 = arith.constant 0 : index
    %c5 = arith.constant 5 : index
    %c0_43 = arith.constant 0 : index
    %c0_44 = arith.constant 0 : index
    %37 = vector.load %arg2[%c0_42, %c5, %c0_43, %c0_44] : memref<4x9x128x128xf32, #tpu.memory_space<vmem>>, vector<1x1x128x128xf32>
    %38 = vector.shape_cast %37 : vector<1x1x128x128xf32> to vector<128x128xf32>
    %cst_45 = arith.constant dense<0.000000e+00> : vector<16x128xf32>
    %39 = tpu.matmul %36, %38, %cst_45 {dimension_numbers = #tpu.dot_dimension_numbers<[1], [0], [0], [1], [0, 0, 1, 1], [], []>} : vector<16x128xf32>, vector<128x128xf32>, vector<16x128xf32> -> vector<16x128xf32>
    %40 = arith.addf %34, %39 : vector<16x128xf32>
    %c0_46 = arith.constant 0 : index
    %c2_47 = arith.constant 2 : index
    %c0_48 = arith.constant 0 : index
    %41 = vector.load %arg1[%c0_46, %c2_47, %c0_48] : memref<1x18x144xf32, #tpu.memory_space<vmem>>, vector<1x16x128xf32>
    %42 = vector.shape_cast %41 : vector<1x16x128xf32> to vector<16x128xf32>
    %c0_49 = arith.constant 0 : index
    %c6 = arith.constant 6 : index
    %c0_50 = arith.constant 0 : index
    %c0_51 = arith.constant 0 : index
    %43 = vector.load %arg2[%c0_49, %c6, %c0_50, %c0_51] : memref<4x9x128x128xf32, #tpu.memory_space<vmem>>, vector<1x1x128x128xf32>
    %44 = vector.shape_cast %43 : vector<1x1x128x128xf32> to vector<128x128xf32>
    %cst_52 = arith.constant dense<0.000000e+00> : vector<16x128xf32>
    %45 = tpu.matmul %42, %44, %cst_52 {dimension_numbers = #tpu.dot_dimension_numbers<[1], [0], [0], [1], [0, 0, 1, 1], [], []>} : vector<16x128xf32>, vector<128x128xf32>, vector<16x128xf32> -> vector<16x128xf32>
    %46 = arith.addf %40, %45 : vector<16x128xf32>
    %c0_53 = arith.constant 0 : index
    %c2_54 = arith.constant 2 : index
    %c8_55 = arith.constant 8 : index
    %47 = vector.load %arg1[%c0_53, %c2_54, %c8_55] : memref<1x18x144xf32, #tpu.memory_space<vmem>>, vector<1x16x128xf32>
    %48 = vector.shape_cast %47 : vector<1x16x128xf32> to vector<16x128xf32>
    %c0_56 = arith.constant 0 : index
    %c7 = arith.constant 7 : index
    %c0_57 = arith.constant 0 : index
    %c0_58 = arith.constant 0 : index
    %49 = vector.load %arg2[%c0_56, %c7, %c0_57, %c0_58] : memref<4x9x128x128xf32, #tpu.memory_space<vmem>>, vector<1x1x128x128xf32>
    %50 = vector.shape_cast %49 : vector<1x1x128x128xf32> to vector<128x128xf32>
    %cst_59 = arith.constant dense<0.000000e+00> : vector<16x128xf32>
    %51 = tpu.matmul %48, %50, %cst_59 {dimension_numbers = #tpu.dot_dimension_numbers<[1], [0], [0], [1], [0, 0, 1, 1], [], []>} : vector<16x128xf32>, vector<128x128xf32>, vector<16x128xf32> -> vector<16x128xf32>
    %52 = arith.addf %46, %51 : vector<16x128xf32>
    %c0_60 = arith.constant 0 : index
    %c2_61 = arith.constant 2 : index
    %c16_62 = arith.constant 16 : index
    %53 = vector.load %arg1[%c0_60, %c2_61, %c16_62] : memref<1x18x144xf32, #tpu.memory_space<vmem>>, vector<1x16x128xf32>
    %54 = vector.shape_cast %53 : vector<1x16x128xf32> to vector<16x128xf32>
    %c0_63 = arith.constant 0 : index
    %c8_64 = arith.constant 8 : index
    %c0_65 = arith.constant 0 : index
    %c0_66 = arith.constant 0 : index
    %55 = vector.load %arg2[%c0_63, %c8_64, %c0_65, %c0_66] : memref<4x9x128x128xf32, #tpu.memory_space<vmem>>, vector<1x1x128x128xf32>
    %56 = vector.shape_cast %55 : vector<1x1x128x128xf32> to vector<128x128xf32>
    %cst_67 = arith.constant dense<0.000000e+00> : vector<16x128xf32>
    %57 = tpu.matmul %54, %56, %cst_67 {dimension_numbers = #tpu.dot_dimension_numbers<[1], [0], [0], [1], [0, 0, 1, 1], [], []>} : vector<16x128xf32>, vector<128x128xf32>, vector<16x128xf32> -> vector<16x128xf32>
    %58 = arith.addf %52, %57 : vector<16x128xf32>
    %c0_68 = arith.constant 0 : index
    %c0_69 = arith.constant 0 : index
    %59 = vector.load %arg3[%c0_68, %c0_69] : memref<4x128xf32, #tpu.memory_space<vmem>>, vector<1x128xf32>
    %60 = vector.broadcast %59 : vector<1x128xf32> to vector<16x128xf32>
    %61 = arith.addf %58, %60 : vector<16x128xf32>
    %c1_70 = arith.constant 1 : index
    %c8_71 = arith.constant 8 : index
    %62 = vector.load %arg5[%c1_70, %c8_71] : memref<18x144xf32, #tpu.memory_space<vmem>>, vector<16x128xf32>
    tpu.vector_store %arg5[%c1_70, %c8_71], %61 {strides = array<i32>} : memref<18x144xf32, #tpu.memory_space<vmem>>, vector<16x128xf32>,
    %cst_72 = arith.constant 0.000000e+00 : f32
    %63 = vector.broadcast %cst_72 : f32 to vector<16x128xf32>
    %c0_73 = arith.constant 0 : index
    %c0_74 = arith.constant 0 : index
    %64 = vector.load %arg5[%c0_73, %c0_74] : memref<18x144xf32, #tpu.memory_space<vmem>>, vector<16x128xf32>
    %c1_75 = arith.constant 1 : index
    %c0_76 = arith.constant 0 : index
    %c0_77 = arith.constant 0 : index
    %c0_78 = arith.constant 0 : index
    %65 = vector.load %arg2[%c1_75, %c0_76, %c0_77, %c0_78] : memref<4x9x128x128xf32, #tpu.memory_space<vmem>>, vector<1x1x128x128xf32>
    %66 = vector.shape_cast %65 : vector<1x1x128x128xf32> to vector<128x128xf32>
    %cst_79 = arith.constant dense<0.000000e+00> : vector<16x128xf32>
    %67 = tpu.matmul %64, %66, %cst_79 {dimension_numbers = #tpu.dot_dimension_numbers<[1], [0], [0], [1], [0, 0, 1, 1], [], []>} : vector<16x128xf32>, vector<128x128xf32>, vector<16x128xf32> -> vector<16x128xf32>
    %68 = arith.addf %63, %67 : vector<16x128xf32>
    %c0_80 = arith.constant 0 : index
    %c8_81 = arith.constant 8 : index
    %69 = vector.load %arg5[%c0_80, %c8_81] : memref<18x144xf32, #tpu.memory_space<vmem>>, vector<16x128xf32>
    %c1_82 = arith.constant 1 : index
    %c1_83 = arith.constant 1 : index
    %c0_84 = arith.constant 0 : index
    %c0_85 = arith.constant 0 : index
    %70 = vector.load %arg2[%c1_82, %c1_83, %c0_84, %c0_85] : memref<4x9x128x128xf32, #tpu.memory_space<vmem>>, vector<1x1x128x128xf32>
    %71 = vector.shape_cast %70 : vector<1x1x128x128xf32> to vector<128x128xf32>
    %cst_86 = arith.constant dense<0.000000e+00> : vector<16x128xf32>
    %72 = tpu.matmul %69, %71, %cst_86 {dimension_numbers = #tpu.dot_dimension_numbers<[1], [0], [0], [1], [0, 0, 1, 1], [], []>} : vector<16x128xf32>, vector<128x128xf32>, vector<16x128xf32> -> vector<16x128xf32>
    %73 = arith.addf %68, %72 : vector<16x128xf32>
    %c0_87 = arith.constant 0 : index
    %c16_88 = arith.constant 16 : index
    %74 = vector.load %arg5[%c0_87, %c16_88] : memref<18x144xf32, #tpu.memory_space<vmem>>, vector<16x128xf32>
    %c1_89 = arith.constant 1 : index
    %c2_90 = arith.constant 2 : index
    %c0_91 = arith.constant 0 : index
    %c0_92 = arith.constant 0 : index
    %75 = vector.load %arg2[%c1_89, %c2_90, %c0_91, %c0_92] : memref<4x9x128x128xf32, #tpu.memory_space<vmem>>, vector<1x1x128x128xf32>
    %76 = vector.shape_cast %75 : vector<1x1x128x128xf32> to vector<128x128xf32>
    %cst_93 = arith.constant dense<0.000000e+00> : vector<16x128xf32>
    %77 = tpu.matmul %74, %76, %cst_93 {dimension_numbers = #tpu.dot_dimension_numbers<[1], [0], [0], [1], [0, 0, 1, 1], [], []>} : vector<16x128xf32>, vector<128x128xf32>, vector<16x128xf32> -> vector<16x128xf32>
    %78 = arith.addf %73, %77 : vector<16x128xf32>
    %c1_94 = arith.constant 1 : index
    %c0_95 = arith.constant 0 : index
    %79 = vector.load %arg5[%c1_94, %c0_95] : memref<18x144xf32, #tpu.memory_space<vmem>>, vector<16x128xf32>
    %c1_96 = arith.constant 1 : index
    %c3_97 = arith.constant 3 : index
    %c0_98 = arith.constant 0 : index
    %c0_99 = arith.constant 0 : index
    %80 = vector.load %arg2[%c1_96, %c3_97, %c0_98, %c0_99] : memref<4x9x128x128xf32, #tpu.memory_space<vmem>>, vector<1x1x128x128xf32>
    %81 = vector.shape_cast %80 : vector<1x1x128x128xf32> to vector<128x128xf32>
    %cst_100 = arith.constant dense<0.000000e+00> : vector<16x128xf32>
    %82 = tpu.matmul %79, %81, %cst_100 {dimension_numbers = #tpu.dot_dimension_numbers<[1], [0], [0], [1], [0, 0, 1, 1], [], []>} : vector<16x128xf32>, vector<128x128xf32>, vector<16x128xf32> -> vector<16x128xf32>
    %83 = arith.addf %78, %82 : vector<16x128xf32>
    %c1_101 = arith.constant 1 : index
    %c8_102 = arith.constant 8 : index
    %84 = vector.load %arg5[%c1_101, %c8_102] : memref<18x144xf32, #tpu.memory_space<vmem>>, vector<16x128xf32>
    %c1_103 = arith.constant 1 : index
    %c4_104 = arith.constant 4 : index
    %c0_105 = arith.constant 0 : index
    %c0_106 = arith.constant 0 : index
    %85 = vector.load %arg2[%c1_103, %c4_104, %c0_105, %c0_106] : memref<4x9x128x128xf32, #tpu.memory_space<vmem>>, vector<1x1x128x128xf32>
    %86 = vector.shape_cast %85 : vector<1x1x128x128xf32> to vector<128x128xf32>
    %cst_107 = arith.constant dense<0.000000e+00> : vector<16x128xf32>
    %87 = tpu.matmul %84, %86, %cst_107 {dimension_numbers = #tpu.dot_dimension_numbers<[1], [0], [0], [1], [0, 0, 1, 1], [], []>} : vector<16x128xf32>, vector<128x128xf32>, vector<16x128xf32> -> vector<16x128xf32>
    %88 = arith.addf %83, %87 : vector<16x128xf32>
    %c1_108 = arith.constant 1 : index
    %c16_109 = arith.constant 16 : index
    %89 = vector.load %arg5[%c1_108, %c16_109] : memref<18x144xf32, #tpu.memory_space<vmem>>, vector<16x128xf32>
    %c1_110 = arith.constant 1 : index
    %c5_111 = arith.constant 5 : index
    %c0_112 = arith.constant 0 : index
    %c0_113 = arith.constant 0 : index
    %90 = vector.load %arg2[%c1_110, %c5_111, %c0_112, %c0_113] : memref<4x9x128x128xf32, #tpu.memory_space<vmem>>, vector<1x1x128x128xf32>
    %91 = vector.shape_cast %90 : vector<1x1x128x128xf32> to vector<128x128xf32>
    %cst_114 = arith.constant dense<0.000000e+00> : vector<16x128xf32>
    %92 = tpu.matmul %89, %91, %cst_114 {dimension_numbers = #tpu.dot_dimension_numbers<[1], [0], [0], [1], [0, 0, 1, 1], [], []>} : vector<16x128xf32>, vector<128x128xf32>, vector<16x128xf32> -> vector<16x128xf32>
    %93 = arith.addf %88, %92 : vector<16x128xf32>
    %c2_115 = arith.constant 2 : index
    %c0_116 = arith.constant 0 : index
    %94 = vector.load %arg5[%c2_115, %c0_116] : memref<18x144xf32, #tpu.memory_space<vmem>>, vector<16x128xf32>
    %c1_117 = arith.constant 1 : index
    %c6_118 = arith.constant 6 : index
    %c0_119 = arith.constant 0 : index
    %c0_120 = arith.constant 0 : index
    %95 = vector.load %arg2[%c1_117, %c6_118, %c0_119, %c0_120] : memref<4x9x128x128xf32, #tpu.memory_space<vmem>>, vector<1x1x128x128xf32>
    %96 = vector.shape_cast %95 : vector<1x1x128x128xf32> to vector<128x128xf32>
    %cst_121 = arith.constant dense<0.000000e+00> : vector<16x128xf32>
    %97 = tpu.matmul %94, %96, %cst_121 {dimension_numbers = #tpu.dot_dimension_numbers<[1], [0], [0], [1], [0, 0, 1, 1], [], []>} : vector<16x128xf32>, vector<128x128xf32>, vector<16x128xf32> -> vector<16x128xf32>
    %98 = arith.addf %93, %97 : vector<16x128xf32>
    %c2_122 = arith.constant 2 : index
    %c8_123 = arith.constant 8 : index
    %99 = vector.load %arg5[%c2_122, %c8_123] : memref<18x144xf32, #tpu.memory_space<vmem>>, vector<16x128xf32>
    %c1_124 = arith.constant 1 : index
    %c7_125 = arith.constant 7 : index
    %c0_126 = arith.constant 0 : index
    %c0_127 = arith.constant 0 : index
    %100 = vector.load %arg2[%c1_124, %c7_125, %c0_126, %c0_127] : memref<4x9x128x128xf32, #tpu.memory_space<vmem>>, vector<1x1x128x128xf32>
    %101 = vector.shape_cast %100 : vector<1x1x128x128xf32> to vector<128x128xf32>
    %cst_128 = arith.constant dense<0.000000e+00> : vector<16x128xf32>
    %102 = tpu.matmul %99, %101, %cst_128 {dimension_numbers = #tpu.dot_dimension_numbers<[1], [0], [0], [1], [0, 0, 1, 1], [], []>} : vector<16x128xf32>, vector<128x128xf32>, vector<16x128xf32> -> vector<16x128xf32>
    %103 = arith.addf %98, %102 : vector<16x128xf32>
    %c2_129 = arith.constant 2 : index
    %c16_130 = arith.constant 16 : index
    %104 = vector.load %arg5[%c2_129, %c16_130] : memref<18x144xf32, #tpu.memory_space<vmem>>, vector<16x128xf32>
    %c1_131 = arith.constant 1 : index
    %c8_132 = arith.constant 8 : index
    %c0_133 = arith.constant 0 : index
    %c0_134 = arith.constant 0 : index
    %105 = vector.load %arg2[%c1_131, %c8_132, %c0_133, %c0_134] : memref<4x9x128x128xf32, #tpu.memory_space<vmem>>, vector<1x1x128x128xf32>
    %106 = vector.shape_cast %105 : vector<1x1x128x128xf32> to vector<128x128xf32>
    %cst_135 = arith.constant dense<0.000000e+00> : vector<16x128xf32>
    %107 = tpu.matmul %104, %106, %cst_135 {dimension_numbers = #tpu.dot_dimension_numbers<[1], [0], [0], [1], [0, 0, 1, 1], [], []>} : vector<16x128xf32>, vector<128x128xf32>, vector<16x128xf32> -> vector<16x128xf32>
    %108 = arith.addf %103, %107 : vector<16x128xf32>
    %c1_136 = arith.constant 1 : index
    %c0_137 = arith.constant 0 : index
    %109 = vector.load %arg3[%c1_136, %c0_137] : memref<4x128xf32, #tpu.memory_space<vmem>>, vector<1x128xf32>
    %110 = vector.broadcast %109 : vector<1x128xf32> to vector<16x128xf32>
    %111 = arith.addf %108, %110 : vector<16x128xf32>
    %c1_138 = arith.constant 1 : index
    %c8_139 = arith.constant 8 : index
    %112 = vector.load %arg6[%c1_138, %c8_139] : memref<18x144xf32, #tpu.memory_space<vmem>>, vector<16x128xf32>
    tpu.vector_store %arg6[%c1_138, %c8_139], %111 {strides = array<i32>} : memref<18x144xf32, #tpu.memory_space<vmem>>, vector<16x128xf32>,
    %cst_140 = arith.constant 0.000000e+00 : f32
    %113 = vector.broadcast %cst_140 : f32 to vector<16x128xf32>
    %c0_141 = arith.constant 0 : index
    %c0_142 = arith.constant 0 : index
    %114 = vector.load %arg6[%c0_141, %c0_142] : memref<18x144xf32, #tpu.memory_space<vmem>>, vector<16x128xf32>
    %c2_143 = arith.constant 2 : index
    %c0_144 = arith.constant 0 : index
    %c0_145 = arith.constant 0 : index
    %c0_146 = arith.constant 0 : index
    %115 = vector.load %arg2[%c2_143, %c0_144, %c0_145, %c0_146] : memref<4x9x128x128xf32, #tpu.memory_space<vmem>>, vector<1x1x128x128xf32>
    %116 = vector.shape_cast %115 : vector<1x1x128x128xf32> to vector<128x128xf32>
    %cst_147 = arith.constant dense<0.000000e+00> : vector<16x128xf32>
    %117 = tpu.matmul %114, %116, %cst_147 {dimension_numbers = #tpu.dot_dimension_numbers<[1], [0], [0], [1], [0, 0, 1, 1], [], []>} : vector<16x128xf32>, vector<128x128xf32>, vector<16x128xf32> -> vector<16x128xf32>
    %118 = arith.addf %113, %117 : vector<16x128xf32>
    %c0_148 = arith.constant 0 : index
    %c8_149 = arith.constant 8 : index
    %119 = vector.load %arg6[%c0_148, %c8_149] : memref<18x144xf32, #tpu.memory_space<vmem>>, vector<16x128xf32>
    %c2_150 = arith.constant 2 : index
    %c1_151 = arith.constant 1 : index
    %c0_152 = arith.constant 0 : index
    %c0_153 = arith.constant 0 : index
    %120 = vector.load %arg2[%c2_150, %c1_151, %c0_152, %c0_153] : memref<4x9x128x128xf32, #tpu.memory_space<vmem>>, vector<1x1x128x128xf32>
    %121 = vector.shape_cast %120 : vector<1x1x128x128xf32> to vector<128x128xf32>
    %cst_154 = arith.constant dense<0.000000e+00> : vector<16x128xf32>
    %122 = tpu.matmul %119, %121, %cst_154 {dimension_numbers = #tpu.dot_dimension_numbers<[1], [0], [0], [1], [0, 0, 1, 1], [], []>} : vector<16x128xf32>, vector<128x128xf32>, vector<16x128xf32> -> vector<16x128xf32>
    %123 = arith.addf %118, %122 : vector<16x128xf32>
    %c0_155 = arith.constant 0 : index
    %c16_156 = arith.constant 16 : index
    %124 = vector.load %arg6[%c0_155, %c16_156] : memref<18x144xf32, #tpu.memory_space<vmem>>, vector<16x128xf32>
    %c2_157 = arith.constant 2 : index
    %c2_158 = arith.constant 2 : index
    %c0_159 = arith.constant 0 : index
    %c0_160 = arith.constant 0 : index
    %125 = vector.load %arg2[%c2_157, %c2_158, %c0_159, %c0_160] : memref<4x9x128x128xf32, #tpu.memory_space<vmem>>, vector<1x1x128x128xf32>
    %126 = vector.shape_cast %125 : vector<1x1x128x128xf32> to vector<128x128xf32>
    %cst_161 = arith.constant dense<0.000000e+00> : vector<16x128xf32>
    %127 = tpu.matmul %124, %126, %cst_161 {dimension_numbers = #tpu.dot_dimension_numbers<[1], [0], [0], [1], [0, 0, 1, 1], [], []>} : vector<16x128xf32>, vector<128x128xf32>, vector<16x128xf32> -> vector<16x128xf32>
    %128 = arith.addf %123, %127 : vector<16x128xf32>
    %c1_162 = arith.constant 1 : index
    %c0_163 = arith.constant 0 : index
    %129 = vector.load %arg6[%c1_162, %c0_163] : memref<18x144xf32, #tpu.memory_space<vmem>>, vector<16x128xf32>
    %c2_164 = arith.constant 2 : index
    %c3_165 = arith.constant 3 : index
    %c0_166 = arith.constant 0 : index
    %c0_167 = arith.constant 0 : index
    %130 = vector.load %arg2[%c2_164, %c3_165, %c0_166, %c0_167] : memref<4x9x128x128xf32, #tpu.memory_space<vmem>>, vector<1x1x128x128xf32>
    %131 = vector.shape_cast %130 : vector<1x1x128x128xf32> to vector<128x128xf32>
    %cst_168 = arith.constant dense<0.000000e+00> : vector<16x128xf32>
    %132 = tpu.matmul %129, %131, %cst_168 {dimension_numbers = #tpu.dot_dimension_numbers<[1], [0], [0], [1], [0, 0, 1, 1], [], []>} : vector<16x128xf32>, vector<128x128xf32>, vector<16x128xf32> -> vector<16x128xf32>
    %133 = arith.addf %128, %132 : vector<16x128xf32>
    %c1_169 = arith.constant 1 : index
    %c8_170 = arith.constant 8 : index
    %134 = vector.load %arg6[%c1_169, %c8_170] : memref<18x144xf32, #tpu.memory_space<vmem>>, vector<16x128xf32>
    %c2_171 = arith.constant 2 : index
    %c4_172 = arith.constant 4 : index
    %c0_173 = arith.constant 0 : index
    %c0_174 = arith.constant 0 : index
    %135 = vector.load %arg2[%c2_171, %c4_172, %c0_173, %c0_174] : memref<4x9x128x128xf32, #tpu.memory_space<vmem>>, vector<1x1x128x128xf32>
    %136 = vector.shape_cast %135 : vector<1x1x128x128xf32> to vector<128x128xf32>
    %cst_175 = arith.constant dense<0.000000e+00> : vector<16x128xf32>
    %137 = tpu.matmul %134, %136, %cst_175 {dimension_numbers = #tpu.dot_dimension_numbers<[1], [0], [0], [1], [0, 0, 1, 1], [], []>} : vector<16x128xf32>, vector<128x128xf32>, vector<16x128xf32> -> vector<16x128xf32>
    %138 = arith.addf %133, %137 : vector<16x128xf32>
    %c1_176 = arith.constant 1 : index
    %c16_177 = arith.constant 16 : index
    %139 = vector.load %arg6[%c1_176, %c16_177] : memref<18x144xf32, #tpu.memory_space<vmem>>, vector<16x128xf32>
    %c2_178 = arith.constant 2 : index
    %c5_179 = arith.constant 5 : index
    %c0_180 = arith.constant 0 : index
    %c0_181 = arith.constant 0 : index
    %140 = vector.load %arg2[%c2_178, %c5_179, %c0_180, %c0_181] : memref<4x9x128x128xf32, #tpu.memory_space<vmem>>, vector<1x1x128x128xf32>
    %141 = vector.shape_cast %140 : vector<1x1x128x128xf32> to vector<128x128xf32>
    %cst_182 = arith.constant dense<0.000000e+00> : vector<16x128xf32>
    %142 = tpu.matmul %139, %141, %cst_182 {dimension_numbers = #tpu.dot_dimension_numbers<[1], [0], [0], [1], [0, 0, 1, 1], [], []>} : vector<16x128xf32>, vector<128x128xf32>, vector<16x128xf32> -> vector<16x128xf32>
    %143 = arith.addf %138, %142 : vector<16x128xf32>
    %c2_183 = arith.constant 2 : index
    %c0_184 = arith.constant 0 : index
    %144 = vector.load %arg6[%c2_183, %c0_184] : memref<18x144xf32, #tpu.memory_space<vmem>>, vector<16x128xf32>
    %c2_185 = arith.constant 2 : index
    %c6_186 = arith.constant 6 : index
    %c0_187 = arith.constant 0 : index
    %c0_188 = arith.constant 0 : index
    %145 = vector.load %arg2[%c2_185, %c6_186, %c0_187, %c0_188] : memref<4x9x128x128xf32, #tpu.memory_space<vmem>>, vector<1x1x128x128xf32>
    %146 = vector.shape_cast %145 : vector<1x1x128x128xf32> to vector<128x128xf32>
    %cst_189 = arith.constant dense<0.000000e+00> : vector<16x128xf32>
    %147 = tpu.matmul %144, %146, %cst_189 {dimension_numbers = #tpu.dot_dimension_numbers<[1], [0], [0], [1], [0, 0, 1, 1], [], []>} : vector<16x128xf32>, vector<128x128xf32>, vector<16x128xf32> -> vector<16x128xf32>
    %148 = arith.addf %143, %147 : vector<16x128xf32>
    %c2_190 = arith.constant 2 : index
    %c8_191 = arith.constant 8 : index
    %149 = vector.load %arg6[%c2_190, %c8_191] : memref<18x144xf32, #tpu.memory_space<vmem>>, vector<16x128xf32>
    %c2_192 = arith.constant 2 : index
    %c7_193 = arith.constant 7 : index
    %c0_194 = arith.constant 0 : index
    %c0_195 = arith.constant 0 : index
    %150 = vector.load %arg2[%c2_192, %c7_193, %c0_194, %c0_195] : memref<4x9x128x128xf32, #tpu.memory_space<vmem>>, vector<1x1x128x128xf32>
    %151 = vector.shape_cast %150 : vector<1x1x128x128xf32> to vector<128x128xf32>
    %cst_196 = arith.constant dense<0.000000e+00> : vector<16x128xf32>
    %152 = tpu.matmul %149, %151, %cst_196 {dimension_numbers = #tpu.dot_dimension_numbers<[1], [0], [0], [1], [0, 0, 1, 1], [], []>} : vector<16x128xf32>, vector<128x128xf32>, vector<16x128xf32> -> vector<16x128xf32>
    %153 = arith.addf %148, %152 : vector<16x128xf32>
    %c2_197 = arith.constant 2 : index
    %c16_198 = arith.constant 16 : index
    %154 = vector.load %arg6[%c2_197, %c16_198] : memref<18x144xf32, #tpu.memory_space<vmem>>, vector<16x128xf32>
    %c2_199 = arith.constant 2 : index
    %c8_200 = arith.constant 8 : index
    %c0_201 = arith.constant 0 : index
    %c0_202 = arith.constant 0 : index
    %155 = vector.load %arg2[%c2_199, %c8_200, %c0_201, %c0_202] : memref<4x9x128x128xf32, #tpu.memory_space<vmem>>, vector<1x1x128x128xf32>
    %156 = vector.shape_cast %155 : vector<1x1x128x128xf32> to vector<128x128xf32>
    %cst_203 = arith.constant dense<0.000000e+00> : vector<16x128xf32>
    %157 = tpu.matmul %154, %156, %cst_203 {dimension_numbers = #tpu.dot_dimension_numbers<[1], [0], [0], [1], [0, 0, 1, 1], [], []>} : vector<16x128xf32>, vector<128x128xf32>, vector<16x128xf32> -> vector<16x128xf32>
    %158 = arith.addf %153, %157 : vector<16x128xf32>
    %c2_204 = arith.constant 2 : index
    %c0_205 = arith.constant 0 : index
    %159 = vector.load %arg3[%c2_204, %c0_205] : memref<4x128xf32, #tpu.memory_space<vmem>>, vector<1x128xf32>
    %160 = vector.broadcast %159 : vector<1x128xf32> to vector<16x128xf32>
    %161 = arith.addf %158, %160 : vector<16x128xf32>
    %c1_206 = arith.constant 1 : index
    %c8_207 = arith.constant 8 : index
    %162 = vector.load %arg5[%c1_206, %c8_207] : memref<18x144xf32, #tpu.memory_space<vmem>>, vector<16x128xf32>
    tpu.vector_store %arg5[%c1_206, %c8_207], %161 {strides = array<i32>} : memref<18x144xf32, #tpu.memory_space<vmem>>, vector<16x128xf32>,
    %c1_208 = arith.constant 1 : index
    %c8_209 = arith.constant 8 : index
    %163 = vector.load %arg6[%c1_208, %c8_209] : memref<18x144xf32, #tpu.memory_space<vmem>>, vector<16x128xf32>
    %cst_210 = arith.constant 0.000000e+00 : f32
    %164 = vector.broadcast %cst_210 : f32 to vector<16x128xf32>
    %c0_211 = arith.constant 0 : index
    %c0_212 = arith.constant 0 : index
    %165 = vector.load %arg5[%c0_211, %c0_212] : memref<18x144xf32, #tpu.memory_space<vmem>>, vector<16x128xf32>
    %c3_213 = arith.constant 3 : index
    %c0_214 = arith.constant 0 : index
    %c0_215 = arith.constant 0 : index
    %c0_216 = arith.constant 0 : index
    %166 = vector.load %arg2[%c3_213, %c0_214, %c0_215, %c0_216] : memref<4x9x128x128xf32, #tpu.memory_space<vmem>>, vector<1x1x128x128xf32>
    %167 = vector.shape_cast %166 : vector<1x1x128x128xf32> to vector<128x128xf32>
    %cst_217 = arith.constant dense<0.000000e+00> : vector<16x128xf32>
    %168 = tpu.matmul %165, %167, %cst_217 {dimension_numbers = #tpu.dot_dimension_numbers<[1], [0], [0], [1], [0, 0, 1, 1], [], []>} : vector<16x128xf32>, vector<128x128xf32>, vector<16x128xf32> -> vector<16x128xf32>
    %169 = arith.addf %164, %168 : vector<16x128xf32>
    %c0_218 = arith.constant 0 : index
    %c8_219 = arith.constant 8 : index
    %170 = vector.load %arg5[%c0_218, %c8_219] : memref<18x144xf32, #tpu.memory_space<vmem>>, vector<16x128xf32>
    %c3_220 = arith.constant 3 : index
    %c1_221 = arith.constant 1 : index
    %c0_222 = arith.constant 0 : index
    %c0_223 = arith.constant 0 : index
    %171 = vector.load %arg2[%c3_220, %c1_221, %c0_222, %c0_223] : memref<4x9x128x128xf32, #tpu.memory_space<vmem>>, vector<1x1x128x128xf32>
    %172 = vector.shape_cast %171 : vector<1x1x128x128xf32> to vector<128x128xf32>
    %cst_224 = arith.constant dense<0.000000e+00> : vector<16x128xf32>
    %173 = tpu.matmul %170, %172, %cst_224 {dimension_numbers = #tpu.dot_dimension_numbers<[1], [0], [0], [1], [0, 0, 1, 1], [], []>} : vector<16x128xf32>, vector<128x128xf32>, vector<16x128xf32> -> vector<16x128xf32>
    %174 = arith.addf %169, %173 : vector<16x128xf32>
    %c0_225 = arith.constant 0 : index
    %c16_226 = arith.constant 16 : index
    %175 = vector.load %arg5[%c0_225, %c16_226] : memref<18x144xf32, #tpu.memory_space<vmem>>, vector<16x128xf32>
    %c3_227 = arith.constant 3 : index
    %c2_228 = arith.constant 2 : index
    %c0_229 = arith.constant 0 : index
    %c0_230 = arith.constant 0 : index
    %176 = vector.load %arg2[%c3_227, %c2_228, %c0_229, %c0_230] : memref<4x9x128x128xf32, #tpu.memory_space<vmem>>, vector<1x1x128x128xf32>
    %177 = vector.shape_cast %176 : vector<1x1x128x128xf32> to vector<128x128xf32>
    %cst_231 = arith.constant dense<0.000000e+00> : vector<16x128xf32>
    %178 = tpu.matmul %175, %177, %cst_231 {dimension_numbers = #tpu.dot_dimension_numbers<[1], [0], [0], [1], [0, 0, 1, 1], [], []>} : vector<16x128xf32>, vector<128x128xf32>, vector<16x128xf32> -> vector<16x128xf32>
    %179 = arith.addf %174, %178 : vector<16x128xf32>
    %c1_232 = arith.constant 1 : index
    %c0_233 = arith.constant 0 : index
    %180 = vector.load %arg5[%c1_232, %c0_233] : memref<18x144xf32, #tpu.memory_space<vmem>>, vector<16x128xf32>
    %c3_234 = arith.constant 3 : index
    %c3_235 = arith.constant 3 : index
    %c0_236 = arith.constant 0 : index
    %c0_237 = arith.constant 0 : index
    %181 = vector.load %arg2[%c3_234, %c3_235, %c0_236, %c0_237] : memref<4x9x128x128xf32, #tpu.memory_space<vmem>>, vector<1x1x128x128xf32>
    %182 = vector.shape_cast %181 : vector<1x1x128x128xf32> to vector<128x128xf32>
    %cst_238 = arith.constant dense<0.000000e+00> : vector<16x128xf32>
    %183 = tpu.matmul %180, %182, %cst_238 {dimension_numbers = #tpu.dot_dimension_numbers<[1], [0], [0], [1], [0, 0, 1, 1], [], []>} : vector<16x128xf32>, vector<128x128xf32>, vector<16x128xf32> -> vector<16x128xf32>
    %184 = arith.addf %179, %183 : vector<16x128xf32>
    %c1_239 = arith.constant 1 : index
    %c8_240 = arith.constant 8 : index
    %185 = vector.load %arg5[%c1_239, %c8_240] : memref<18x144xf32, #tpu.memory_space<vmem>>, vector<16x128xf32>
    %c3_241 = arith.constant 3 : index
    %c4_242 = arith.constant 4 : index
    %c0_243 = arith.constant 0 : index
    %c0_244 = arith.constant 0 : index
    %186 = vector.load %arg2[%c3_241, %c4_242, %c0_243, %c0_244] : memref<4x9x128x128xf32, #tpu.memory_space<vmem>>, vector<1x1x128x128xf32>
    %187 = vector.shape_cast %186 : vector<1x1x128x128xf32> to vector<128x128xf32>
    %cst_245 = arith.constant dense<0.000000e+00> : vector<16x128xf32>
    %188 = tpu.matmul %185, %187, %cst_245 {dimension_numbers = #tpu.dot_dimension_numbers<[1], [0], [0], [1], [0, 0, 1, 1], [], []>} : vector<16x128xf32>, vector<128x128xf32>, vector<16x128xf32> -> vector<16x128xf32>
    %189 = arith.addf %184, %188 : vector<16x128xf32>
    %c1_246 = arith.constant 1 : index
    %c16_247 = arith.constant 16 : index
    %190 = vector.load %arg5[%c1_246, %c16_247] : memref<18x144xf32, #tpu.memory_space<vmem>>, vector<16x128xf32>
    %c3_248 = arith.constant 3 : index
    %c5_249 = arith.constant 5 : index
    %c0_250 = arith.constant 0 : index
    %c0_251 = arith.constant 0 : index
    %191 = vector.load %arg2[%c3_248, %c5_249, %c0_250, %c0_251] : memref<4x9x128x128xf32, #tpu.memory_space<vmem>>, vector<1x1x128x128xf32>
    %192 = vector.shape_cast %191 : vector<1x1x128x128xf32> to vector<128x128xf32>
    %cst_252 = arith.constant dense<0.000000e+00> : vector<16x128xf32>
    %193 = tpu.matmul %190, %192, %cst_252 {dimension_numbers = #tpu.dot_dimension_numbers<[1], [0], [0], [1], [0, 0, 1, 1], [], []>} : vector<16x128xf32>, vector<128x128xf32>, vector<16x128xf32> -> vector<16x128xf32>
    %194 = arith.addf %189, %193 : vector<16x128xf32>
    %c2_253 = arith.constant 2 : index
    %c0_254 = arith.constant 0 : index
    %195 = vector.load %arg5[%c2_253, %c0_254] : memref<18x144xf32, #tpu.memory_space<vmem>>, vector<16x128xf32>
    %c3_255 = arith.constant 3 : index
    %c6_256 = arith.constant 6 : index
    %c0_257 = arith.constant 0 : index
    %c0_258 = arith.constant 0 : index
    %196 = vector.load %arg2[%c3_255, %c6_256, %c0_257, %c0_258] : memref<4x9x128x128xf32, #tpu.memory_space<vmem>>, vector<1x1x128x128xf32>
    %197 = vector.shape_cast %196 : vector<1x1x128x128xf32> to vector<128x128xf32>
    %cst_259 = arith.constant dense<0.000000e+00> : vector<16x128xf32>
    %198 = tpu.matmul %195, %197, %cst_259 {dimension_numbers = #tpu.dot_dimension_numbers<[1], [0], [0], [1], [0, 0, 1, 1], [], []>} : vector<16x128xf32>, vector<128x128xf32>, vector<16x128xf32> -> vector<16x128xf32>
    %199 = arith.addf %194, %198 : vector<16x128xf32>
    %c2_260 = arith.constant 2 : index
    %c8_261 = arith.constant 8 : index
    %200 = vector.load %arg5[%c2_260, %c8_261] : memref<18x144xf32, #tpu.memory_space<vmem>>, vector<16x128xf32>
    %c3_262 = arith.constant 3 : index
    %c7_263 = arith.constant 7 : index
    %c0_264 = arith.constant 0 : index
    %c0_265 = arith.constant 0 : index
    %201 = vector.load %arg2[%c3_262, %c7_263, %c0_264, %c0_265] : memref<4x9x128x128xf32, #tpu.memory_space<vmem>>, vector<1x1x128x128xf32>
    %202 = vector.shape_cast %201 : vector<1x1x128x128xf32> to vector<128x128xf32>
    %cst_266 = arith.constant dense<0.000000e+00> : vector<16x128xf32>
    %203 = tpu.matmul %200, %202, %cst_266 {dimension_numbers = #tpu.dot_dimension_numbers<[1], [0], [0], [1], [0, 0, 1, 1], [], []>} : vector<16x128xf32>, vector<128x128xf32>, vector<16x128xf32> -> vector<16x128xf32>
    %204 = arith.addf %199, %203 : vector<16x128xf32>
    %c2_267 = arith.constant 2 : index
    %c16_268 = arith.constant 16 : index
    %205 = vector.load %arg5[%c2_267, %c16_268] : memref<18x144xf32, #tpu.memory_space<vmem>>, vector<16x128xf32>
    %c3_269 = arith.constant 3 : index
    %c8_270 = arith.constant 8 : index
    %c0_271 = arith.constant 0 : index
    %c0_272 = arith.constant 0 : index
    %206 = vector.load %arg2[%c3_269, %c8_270, %c0_271, %c0_272] : memref<4x9x128x128xf32, #tpu.memory_space<vmem>>, vector<1x1x128x128xf32>
    %207 = vector.shape_cast %206 : vector<1x1x128x128xf32> to vector<128x128xf32>
    %cst_273 = arith.constant dense<0.000000e+00> : vector<16x128xf32>
    %208 = tpu.matmul %205, %207, %cst_273 {dimension_numbers = #tpu.dot_dimension_numbers<[1], [0], [0], [1], [0, 0, 1, 1], [], []>} : vector<16x128xf32>, vector<128x128xf32>, vector<16x128xf32> -> vector<16x128xf32>
    %209 = arith.addf %204, %208 : vector<16x128xf32>
    %c3_274 = arith.constant 3 : index
    %c0_275 = arith.constant 0 : index
    %210 = vector.load %arg3[%c3_274, %c0_275] : memref<4x128xf32, #tpu.memory_space<vmem>>, vector<1x128xf32>
    %211 = vector.broadcast %210 : vector<1x128xf32> to vector<16x128xf32>
    %212 = arith.addf %209, %211 : vector<16x128xf32>
    %213 = arith.addf %163, %212 : vector<16x128xf32>
    %cst_276 = arith.constant 0.000000e+00 : f32
    %214 = vector.broadcast %cst_276 : f32 to vector<18x144xf32>
    %c0_277 = arith.constant 0 : index
    %c0_278 = arith.constant 0 : index
    %215 = vector.load %arg5[%c0_277, %c0_278] : memref<18x144xf32, #tpu.memory_space<vmem>>, vector<18x144xf32>
    tpu.vector_store %arg5[%c0_277, %c0_278], %214 {strides = array<i32>} : memref<18x144xf32, #tpu.memory_space<vmem>>, vector<18x144xf32>,
    %c0_279 = arith.constant 0 : index
    %c0_280 = arith.constant 0 : index
    %216 = vector.load %arg5[%c0_279, %c0_280] : memref<18x144xf32, #tpu.memory_space<vmem>>, vector<16x128xf32>
    tpu.vector_store %arg5[%c0_279, %c0_280], %213 {strides = array<i32>} : memref<18x144xf32, #tpu.memory_space<vmem>>, vector<16x128xf32>,
    %c0_281 = arith.constant 0 : index
    %c0_282 = arith.constant 0 : index
    %217 = vector.load %arg5[%c0_281, %c0_282] : memref<18x144xf32, #tpu.memory_space<vmem>>, vector<16x128xf32>
    %c1_283 = arith.constant 1 : index
    %c0_284 = arith.constant 0 : index
    %218 = vector.load %arg5[%c1_283, %c0_284] : memref<18x144xf32, #tpu.memory_space<vmem>>, vector<16x128xf32>
    %219 = arith.maximumf %217, %218 : vector<16x128xf32>
    %c0_285 = arith.constant 0 : index
    %c8_286 = arith.constant 8 : index
    %220 = vector.load %arg5[%c0_285, %c8_286] : memref<18x144xf32, #tpu.memory_space<vmem>>, vector<16x128xf32>
    %c1_287 = arith.constant 1 : index
    %c8_288 = arith.constant 8 : index
    %221 = vector.load %arg5[%c1_287, %c8_288] : memref<18x144xf32, #tpu.memory_space<vmem>>, vector<16x128xf32>
    %222 = arith.maximumf %220, %221 : vector<16x128xf32>
    %223 = arith.maximumf %219, %222 : vector<16x128xf32>
    %c0_289 = arith.constant 0 : index
    %c0_290 = arith.constant 0 : index
    %c0_291 = arith.constant 0 : index
    %224 = vector.load %arg4[%c0_289, %c0_290, %c0_291] : memref<1x16x128xf32, #tpu.memory_space<vmem>>, vector<1x16x128xf32>
    %225 = vector.shape_cast %224 : vector<1x16x128xf32> to vector<16x128xf32>
    %226 = vector.shape_cast %223 : vector<16x128xf32> to vector<1x16x128xf32>
    tpu.vector_store %arg4[%c0_289, %c0_290, %c0_291], %226 {strides = array<i32>} : memref<1x16x128xf32, #tpu.memory_space<vmem>>, vector<1x16x128xf32>,
    return
  }
  func.func @transform_0(%arg0: i32) -> (i32, i32, i32) {
    %c0_i32 = arith.constant 0 : i32
    %c0_i32_0 = arith.constant 0 : i32
    %c0_i32_1 = arith.constant 0 : i32
    return %arg0, %c0_i32, %c0_i32_0 : i32, i32, i32
  }
  func.func @transform_1(%arg0: i32) -> (i32, i32, i32, i32) {
    %c0_i32 = arith.constant 0 : i32
    %c0_i32_0 = arith.constant 0 : i32
    %c0_i32_1 = arith.constant 0 : i32
    %c0_i32_2 = arith.constant 0 : i32
    %c0_i32_3 = arith.constant 0 : i32
    return %c0_i32, %c0_i32_0, %c0_i32_1, %c0_i32_2 : i32, i32, i32, i32
  }
  func.func @transform_2(%arg0: i32) -> (i32, i32) {
    %c0_i32 = arith.constant 0 : i32
    %c0_i32_0 = arith.constant 0 : i32
    %c0_i32_1 = arith.constant 0 : i32
    return %c0_i32, %c0_i32_0 : i32, i32
  }
  func.func @transform_3(%arg0: i32) -> (i32, i32, i32) {
    %c0_i32 = arith.constant 0 : i32
    %c0_i32_0 = arith.constant 0 : i32
    %c0_i32_1 = arith.constant 0 : i32
    return %arg0, %c0_i32, %c0_i32_0 : i32, i32, i32
  }
}

</mosaic_0001>

<llo_original>
// kernel: my_resnet_block_forward.1
$region0: #{my_resnet_block_forward.1}
  #allocation0 [shape = 'u32[]', space=smem, size = 0x4, offset = 0x4, fixed_abs, tag = 'smem constant byte address 0x4 - core index']
  #allocation1 [shape = 'u32[144,128]{1,0:T(1,128)}', space=vmem, size = 0x12000, scoped, tag = 'internal scratch']
  #allocation2 [shape = 'f32[18,144]{1,0:T(8,128)}', space=vmem, size = 0x6000, scoped, tag = 'scratch operand']
  #allocation3 [shape = 'f32[18,144]{1,0:T(8,128)}', space=vmem, size = 0x6000, scoped, tag = 'scratch operand']
  %s0 = inlined_call_operand.vmem [shape: f32[2,18,144], index: 0, kind: input, shape index: {}]
  %s1 = inlined_call_operand.hbm [shape: f32[4,9,128,128], index: 1, kind: input, shape index: {}]
  %s2 = inlined_call_operand.hbm [shape: f32[4,128], index: 2, kind: input, shape index: {}]
  %s3 = inlined_call_operand.vmem [shape: f32[2,16,128], index: 3, kind: output, shape index: {}]
  %s4 = sld [smem:[#allocation0]]
  $region53: #{my_resnet_block_forward.1} parent=0
    _
  %s6 = ssub.s32 1, %s4
  %s7 = scalar_select 0, %s6, %s4
  $region1: #{my_resnet_block_forward.1} parent=0
    #allocation4 [shape = 'u8[2359296]{0}', space=vmem, size = 0x240000, scoped, tag = 'input window, operand 1, single buffered']
    #allocation5 [shape = 's32[2]{0}', space=sflag, size = 0x8, scoped, tag = 'scoped memory for my_resnet_block_forward.1']
    #allocation6 [shape = 'u8[2048]{0}', space=vmem, size = 0x800, scoped, tag = 'input window, operand 2, single buffered']
    #allocation7 [shape = 's32[1]{0}', space=sflag, size = 0x4, scoped, tag = 'scoped memory for my_resnet_block_forward.1']
    %8 = vsyncpa [#allocation5], 0
    %9 = vsyncpa [#allocation7], 0
    loop: start=0, step=1, limit=4
    $region2: #{my_resnet_block_forward.1} parent=1 // loop_pre_header
      _
    $region3: #{my_resnet_block_forward.1} parent=1 // loop_header
      %s11 = sphi 0, %s15
      %p12 = scmp.ge.s32.totalorder %s11, 4
      %s21 = sphi 0, %s23
      %s24 = sphi 0, %s21
      %s25 = sphi 0, %s24
      %s41 = sphi 0, %s25
      %s45 = sphi 0, %s45
      %s47 = sphi 0, %s45
      %s48 = sphi 0, %s47
      %s62 = sphi 0, %s48
      %s66 = sphi 0, %s66
      %s68 = sphi 0, %s66
      %s69 = sphi 0, %s68
      %s83 = sphi 0, %s69
      %s89 = sphi 0, %s91
      %s92 = sphi 0, %s89
      %s93 = sphi 0, %s92
      %s109 = sphi 0, %s93
    $region4: #{my_resnet_block_forward.1} parent=1 // loop_header_branch
      %14 = sbr.rel (%p12) target = $region8
    $region5: #{my_resnet_block_forward.1} parent=1 // loop_body
      %s16 = ssub.s32 %s11, 1
      %s17 = ssub.s32 %s11, 2
      %s18 = sadd.s32 %s11, 1
      %s19 = ssub.s32 %s11, %s18
      %p20 = scmp.eq.s32.totalorder %s19, 0
      %s22 = sadd.s32 %s21, 1
      %s23 = scalar_select %p20, %s21, %s22
      %p26 = pneg %p20
      %p27 = scmp.eq.s32.totalorder %s11, 1
      %p28 = por %p26, %p27
      %p29 = scmp.ne.s32.totalorder %s21, %s24
      %p30 = scmp.eq.s32.totalorder %s11, 0
      %p31 = por %p29, %p30
      %p32 = scmp.ne.s32.totalorder %s21, %s24
      %p33 = scmp.eq.s32.totalorder %s16, 1
      %p34 = por %p32, %p33
      %p35 = scmp.ne.s32.totalorder %s24, %s25
      %p36 = scmp.eq.s32.totalorder %s16, 0
      %p37 = por %p35, %p36
      %p38 = scmp.ne.s32.totalorder %s24, %s25
      %p39 = scmp.eq.s32.totalorder %s17, 1
      %p40 = por %p38, %p39
      %p42 = scmp.ne.s32.totalorder %s25, %s41
      %p43 = scmp.eq.s32.totalorder %s17, 0
      %p44 = por %p42, %p43
      %s46 = sadd.s32 %s45, 1
      %p49 = scmp.eq.s32.totalorder %s11, 1
      %p50 = scmp.ne.s32.totalorder %s45, %s47
      %p51 = scmp.eq.s32.totalorder %s11, 0
      %p52 = por %p50, %p51
      %p53 = scmp.ne.s32.totalorder %s45, %s47
      %p54 = scmp.eq.s32.totalorder %s16, 1
      %p55 = por %p53, %p54
      %p56 = scmp.ne.s32.totalorder %s47, %s48
      %p57 = scmp.eq.s32.totalorder %s16, 0
      %p58 = por %p56, %p57
      %p59 = scmp.ne.s32.totalorder %s47, %s48
      %p60 = scmp.eq.s32.totalorder %s17, 1
      %p61 = por %p59, %p60
      %p63 = scmp.ne.s32.totalorder %s48, %s62
      %p64 = scmp.eq.s32.totalorder %s17, 0
      %p65 = por %p63, %p64
      %s67 = sadd.s32 %s66, 1
      %p70 = scmp.eq.s32.totalorder %s11, 1
      %p71 = scmp.ne.s32.totalorder %s66, %s68
      %p72 = scmp.eq.s32.totalorder %s11, 0
      %p73 = por %p71, %p72
      %p74 = scmp.ne.s32.totalorder %s66, %s68
      %p75 = scmp.eq.s32.totalorder %s16, 1
      %p76 = por %p74, %p75
      %p77 = scmp.ne.s32.totalorder %s68, %s69
      %p78 = scmp.eq.s32.totalorder %s16, 0
      %p79 = por %p77, %p78
      %p80 = scmp.ne.s32.totalorder %s68, %s69
      %p81 = scmp.eq.s32.totalorder %s17, 1
      %p82 = por %p80, %p81
      %p84 = scmp.ne.s32.totalorder %s69, %s83
      %p85 = scmp.eq.s32.totalorder %s17, 0
      %p86 = por %p84, %p85
      %s87 = ssub.s32 %s11, %s18
      %p88 = scmp.eq.s32.totalorder %s87, 0
      %s90 = sadd.s32 %s89, 1
      %s91 = scalar_select %p88, %s89, %s90
      %p94 = pneg %p88
      %p95 = scmp.eq.s32.totalorder %s11, 1
      %p96 = por %p94, %p95
      %p97 = scmp.ne.s32.totalorder %s89, %s92
      %p98 = scmp.eq.s32.totalorder %s11, 0
      %p99 = por %p97, %p98
      %p100 = scmp.ne.s32.totalorder %s89, %s92
      %p101 = scmp.eq.s32.totalorder %s16, 1
      %p102 = por %p100, %p101
      %p103 = scmp.ne.s32.totalorder %s92, %s93
      %p104 = scmp.eq.s32.totalorder %s16, 0
      %p105 = por %p103, %p104
      %p106 = scmp.ne.s32.totalorder %s92, %s93
      %p107 = scmp.eq.s32.totalorder %s17, 1
      %p108 = por %p106, %p107
      %p110 = scmp.ne.s32.totalorder %s93, %s109
      %p111 = scmp.eq.s32.totalorder %s17, 0
      %p112 = por %p110, %p111
      %p113 = scmp.le.s32.totalorder 1, %s11
      %p114 = scmp.lt.s32.totalorder %s11, 3
      %p115 = pnand %p113, %p114
      %p116 = pneg %p115
      // Predicated region
      $region9: #{my_resnet_block_forward.1} parent=5 // pred_check
        _
      $region10: #{my_resnet_block_forward.1} parent=5 // pred_check_branch
        %118 = sbr.rel (%p115) target = $region12
      $region11: #{my_resnet_block_forward.1} parent=5 // pred_region
        %s119 = ssub.s32 %s11, 1
        // Predicated region
        $region13: #{my_resnet_block_forward.1} parent=11 // pred_check
          %p120 = pneg %p58
        $region14: #{my_resnet_block_forward.1} parent=11 // pred_check_branch
          %122 = sbr.rel (%p120) target = $region16
        $region15: #{my_resnet_block_forward.1} parent=11 // pred_region
          %s124 = ssub.s32 73728, 73728
          %125 = vsyncadd [#allocation5], %s124
          %s126 = sshll.u32 [#allocation4], 4
          %s127 = int_to_ptr.vmem [resolvable:$true] %s126
          %132 = dma.hbm_to_vmem [thread:$0]  %s1, 73728, %s127, [#allocation5], 128, 128, 8
        $region16: #{my_resnet_block_forward.1} parent=11 // pred_fallthru
          _
        // Predicated region
        $region17: #{my_resnet_block_forward.1} parent=11 // pred_check
          %p133 = pneg %p79
        $region18: #{my_resnet_block_forward.1} parent=11 // pred_check_branch
          %135 = sbr.rel (%p133) target = $region20
        $region19: #{my_resnet_block_forward.1} parent=11 // pred_region
          %s137 = ssub.s32 64, 64
          %138 = vsyncadd [#allocation7], %s137
          %s140 = sshll.u32 [#allocation6], 4
          %s141 = int_to_ptr.vmem [resolvable:$true] %s140
          %143 = dma.hbm_to_vmem [thread:$0]  %s2, 64, %s141, [#allocation7]
        $region20: #{my_resnet_block_forward.1} parent=11 // pred_fallthru
          _
      $region12: #{my_resnet_block_forward.1} parent=5 // pred_fallthru
        _
      %p144 = scmp.lt.s32.totalorder %s11, 2
      // Predicated region
      $region21: #{my_resnet_block_forward.1} parent=5 // pred_check
        %p145 = pneg %p144
      $region22: #{my_resnet_block_forward.1} parent=5 // pred_check_branch
        %147 = sbr.rel (%p145) target = $region24
      $region23: #{my_resnet_block_forward.1} parent=5 // pred_region
        // Predicated region
        $region25: #{my_resnet_block_forward.1} parent=23 // pred_check
          %p148 = pneg %p31
        $region26: #{my_resnet_block_forward.1} parent=23 // pred_check_branch
          %150 = sbr.rel (%p148) target = $region28
        $region27: #{my_resnet_block_forward.1} parent=23 // pred_region
          %p151 = scmp.lt.s32.totalorder %s11, 1
          %s152 = scalar_select %p151, %s11, 1
          %s153 = smul.addr %s152, 6
          %s154 = smul.addr %s153, 8
          %s155 = scalar_lea.vmem %s0, %s154
        $region28: #{my_resnet_block_forward.1} parent=23 // pred_fallthru
          _
      $region24: #{my_resnet_block_forward.1} parent=5 // pred_fallthru
        _
      %p156 = scmp.le.s32.totalorder 1, %s11
      %p157 = scmp.lt.s32.totalorder %s11, 3
      %p158 = pnand %p156, %p157
      %p159 = pneg %p158
      // Predicated region
      $region29: #{my_resnet_block_forward.1} parent=5 // pred_check
        _
      $region30: #{my_resnet_block_forward.1} parent=5 // pred_check_branch
        %161 = sbr.rel (%p158) target = $region32
      $region31: #{my_resnet_block_forward.1} parent=5 // pred_region
        %s162 = ssub.s32 %s11, 1
        // Predicated region
        $region33: #{my_resnet_block_forward.1} parent=31 // pred_check
          %p163 = pneg %p58
        $region34: #{my_resnet_block_forward.1} parent=31 // pred_check_branch
          %165 = sbr.rel (%p163) target = $region36
        $region35: #{my_resnet_block_forward.1} parent=31 // pred_region
          %166 = dma.done [#allocation5], 73728
        $region36: #{my_resnet_block_forward.1} parent=31 // pred_fallthru
          _
        // Predicated region
        $region37: #{my_resnet_block_forward.1} parent=31 // pred_check
          %p167 = pneg %p79
        $region38: #{my_resnet_block_forward.1} parent=31 // pred_check_branch
          %169 = sbr.rel (%p167) target = $region40
        $region39: #{my_resnet_block_forward.1} parent=31 // pred_region
          %170 = dma.done [#allocation7], 64
        $region40: #{my_resnet_block_forward.1} parent=31 // pred_fallthru
          _
        %p171 = scmp.lt.s32.totalorder %s16, 1
        %s172 = scalar_select %p171, %s16, 1
        %s173 = smul.addr %s172, 6
        %s174 = smul.addr %s173, 8
        %s175 = scalar_lea.vmem %s0, %s174
        %p176 = pneg %p37
        %p177 = pneg %p34
        %p178 = pneg %p58
        %p179 = pneg %p55
        %p180 = pneg %p79
        %p181 = pneg %p76
        %p182 = pneg %p105
        %p183 = pneg %p102
        %p184 = scmp.lt.s32.totalorder %s16, 1
        %s185 = scalar_select %p184, %s16, 1
        %s186 = smul.addr %s185, 2
        %s187 = smul.addr %s186, 8
        %s188 = scalar_lea.vmem %s3, %s187
        %p189 = scmp.lt.s32.totalorder %s16, 1
        %s190 = scalar_select %p189, %s16, 1
        %s191 = smul.addr %s190, 6
        %s192 = smul.addr %s191, 8
        %s193 = scalar_lea.vmem %s0, %s192
        %p194 = scmp.lt.s32.totalorder %s16, 1
        %s195 = scalar_select %p194, %s16, 1
        %s196 = smul.addr %s195, 2
        %s197 = smul.addr %s196, 8
        %s198 = scalar_lea.vmem %s3, %s197
        %199 = vst [vmem:[#allocation2] sm:$0xff] 0.0
        %vm200 = vcmask 130048
        %201 = vst.msk [vmem:[#allocation2 + $0x8] sm:$0xff] %vm200, 0.0
        %202 = vst [vmem:[#allocation2 + $0x10] sm:$0xff] 0.0
        %203 = vst.msk [vmem:[#allocation2 + $0x18] sm:$0xff] %vm200, 0.0
        %204 = vst [vmem:[#allocation2 + $0x20] sm:$0x3] 0.0
        %vm205 = vcmask 123904
        %206 = vst.msk [vmem:[#allocation2 + $0x28] sm:$0x3] %vm205, 0.0
        %207 = vst [vmem:[#allocation3] sm:$0xff] 0.0
        %208 = vst.msk [vmem:[#allocation3 + $0x8] sm:$0xff] %vm200, 0.0
        %209 = vst [vmem:[#allocation3 + $0x10] sm:$0xff] 0.0
        %210 = vst.msk [vmem:[#allocation3 + $0x18] sm:$0xff] %vm200, 0.0
        %211 = vst [vmem:[#allocation3 + $0x20] sm:$0x3] 0.0
        %212 = vst.msk [vmem:[#allocation3 + $0x28] sm:$0x3] %vm205, 0.0
        %v213 = vld [vmem:[%s193] sm:$0xff]
        %v214 = vld [vmem:[%s193 + $0x10] sm:$0xff]
        %v215 = vld [vmem:[#allocation4] sm:$0xff]
        %v216 = vld [vmem:[#allocation4 + $0x8] sm:$0xff]
        %v217 = vld [vmem:[#allocation4 + $0x10] sm:$0xff]
        %v218 = vld [vmem:[#allocation4 + $0x18] sm:$0xff]
        %v219 = vld [vmem:[#allocation4 + $0x20] sm:$0xff]
        %v220 = vld [vmem:[#allocation4 + $0x28] sm:$0xff]
        %v221 = vld [vmem:[#allocation4 + $0x30] sm:$0xff]
        %v222 = vld [vmem:[#allocation4 + $0x38] sm:$0xff]
        %v223 = vld [vmem:[#allocation4 + $0x40] sm:$0xff]
        %v224 = vld [vmem:[#allocation4 + $0x48] sm:$0xff]
        %v225 = vld [vmem:[#allocation4 + $0x50] sm:$0xff]
        %v226 = vld [vmem:[#allocation4 + $0x58] sm:$0xff]
        %v227 = vld [vmem:[#allocation4 + $0x60] sm:$0xff]
        %v228 = vld [vmem:[#allocation4 + $0x68] sm:$0xff]
        %v229 = vld [vmem:[#allocation4 + $0x70] sm:$0xff]
        %v230 = vld [vmem:[#allocation4 + $0x78] sm:$0xff]
        %v231 = vld [vmem:[%s193 + $0x8] sm:$0xff]
        %v232 = vld [vmem:[%s193 + $0x18] sm:$0xff]
        %s233 = scalar_lea.vmem [#allocation4], 128
        %v234 = vld [vmem:[%s233] sm:$0xff]
        %v235 = vld [vmem:[%s233 + $0x8] sm:$0xff]
        %v236 = vld [vmem:[%s233 + $0x10] sm:$0xff]
        %v237 = vld [vmem:[%s233 + $0x18] sm:$0xff]
        %v238 = vld [vmem:[%s233 + $0x20] sm:$0xff]
        %v239 = vld [vmem:[%s233 + $0x28] sm:$0xff]
        %v240 = vld [vmem:[%s233 + $0x30] sm:$0xff]
        %v241 = vld [vmem:[%s233 + $0x38] sm:$0xff]
        %v242 = vld [vmem:[%s233 + $0x40] sm:$0xff]
        %v243 = vld [vmem:[%s233 + $0x48] sm:$0xff]
        %v244 = vld [vmem:[%s233 + $0x50] sm:$0xff]
        %v245 = vld [vmem:[%s233 + $0x58] sm:$0xff]
        %v246 = vld [vmem:[%s233 + $0x60] sm:$0xff]
        %v247 = vld [vmem:[%s233 + $0x68] sm:$0xff]
        %v248 = vld [vmem:[%s233 + $0x70] sm:$0xff]
        %v249 = vld [vmem:[%s233 + $0x78] sm:$0xff]
        %254 = vrot.lane.b32.xlu0 %v213, 120
        %v255 = vpop.permute.xlu0 %254
        %256 = vrot.lane.b32.xlu0 %v231, 120
        %v257 = vpop.permute.xlu0 %256
        %258 = vrot.lane.b32.xlu0 %v214, 120
        %v259 = vpop.permute.xlu0 %258
        %260 = vrot.lane.b32.xlu0 %v232, 120
        %v261 = vpop.permute.xlu0 %260
        %vm262 = vcmask 982016
        %v263 = vsel %vm262, %v255, %v257
        %v264 = vsel %vm262, %v259, %v261
        %267 = vmatprep.subr.mxu0 0.0
        %268 = vmatpush1.msra.mxu0 %v249
        %269 = vmatprep.subr.mxu0 0.0
        %270 = vmatpush1.msra.mxu0 %v248
        %271 = vmatprep.subr.mxu0 0.0
        %272 = vmatpush1.msra.mxu0 %v247
        %273 = vmatprep.subr.mxu0 0.0
        %274 = vmatpush1.msra.mxu0 %v246
        %275 = vmatprep.subr.mxu0 0.0
        %276 = vmatpush1.msra.mxu0 %v245
        %277 = vmatprep.subr.mxu0 0.0
        %278 = vmatpush1.msra.mxu0 %v244
        %279 = vmatprep.subr.mxu0 0.0
        %280 = vmatpush1.msra.mxu0 %v243
        %281 = vmatprep.subr.mxu0 0.0
        %282 = vmatpush1.msra.mxu0 %v242
        %283 = vmatprep.subr.mxu0 0.0
        %284 = vmatpush1.msra.mxu0 %v241
        %285 = vmatprep.subr.mxu0 0.0
        %286 = vmatpush1.msra.mxu0 %v240
        %287 = vmatprep.subr.mxu0 0.0
        %288 = vmatpush1.msra.mxu0 %v239
        %289 = vmatprep.subr.mxu0 0.0
        %290 = vmatpush1.msra.mxu0 %v238
        %291 = vmatprep.subr.mxu0 0.0
        %292 = vmatpush1.msra.mxu0 %v237
        %293 = vmatprep.subr.mxu0 0.0
        %294 = vmatpush1.msra.mxu0 %v236
        %295 = vmatprep.subr.mxu0 0.0
        %296 = vmatpush1.msra.mxu0 %v235
        %297 = vmatprep.subr.mxu0 0.0
        %298 = vmatpush1.msra.mxu0 %v234
        %299 = vmatprep.subr.mxu0 0.0
        %300 = vmatpush2.msra.mxu0 0.0
        %301 = vmatprep.subr.mxu0 0.0
        %302 = vmatpush2.msra.mxu0 0.0
        %303 = vmatprep.subr.mxu0 0.0
        %304 = vmatpush2.msra.mxu0 0.0
        %305 = vmatprep.subr.mxu0 0.0
        %306 = vmatpush2.msra.mxu0 0.0
        %307 = vmatprep.subr.mxu0 0.0
        %308 = vmatpush2.msra.mxu0 0.0
        %309 = vmatprep.subr.mxu0 0.0
        %310 = vmatpush2.msra.mxu0 0.0
        %311 = vmatprep.subr.mxu0 0.0
        %312 = vmatpush2.msra.mxu0 0.0
        %313 = vmatprep.subr.mxu0 0.0
        %314 = vmatpush2.msra.mxu0 0.0
        %315 = vmatprep.subr.mxu0 0.0
        %316 = vmatpush2.msra.mxu0 0.0
        %317 = vmatprep.subr.mxu0 0.0
        %318 = vmatpush2.msra.mxu0 0.0
        %319 = vmatprep.subr.mxu0 0.0
        %320 = vmatpush2.msra.mxu0 0.0
        %321 = vmatprep.subr.mxu0 0.0
        %322 = vmatpush2.msra.mxu0 0.0
        %323 = vmatprep.subr.mxu0 0.0
        %324 = vmatpush2.msra.mxu0 0.0
        %325 = vmatprep.subr.mxu0 0.0
        %326 = vmatpush2.msra.mxu0 0.0
        %327 = vmatprep.subr.mxu0 0.0
        %328 = vmatpush2.msra.mxu0 0.0
        %329 = vmatprep.subr.mxu0 0.0
        %330 = vmatpush2.msra.mxu0 0.0
        %331 = vmatprep.mubr.f32.mxu0 0.0
        %332 = vmatmul.mubr.f32.gmra.mxu0 %v263
        %v333 = vpop.f32.mrf.mxu0
        %v334 = vadd.f32 0.0, %v333
        %v335 = vpop.f32.mrf.mxu0
        %336 = vmatprep.mubr.f32.mxu0 0.0
        %337 = vmatmul.mubr.f32.gmra.mxu0 %v264
        %v338 = vpop.f32.mrf.mxu0
        %v339 = vadd.f32 0.0, %v338
        %v340 = vpop.f32.mrf.mxu0
        %341 = vdwg.mxu0
        %342 = vmatprep.subr.mxu0 0.0
        %343 = vmatpush1.msra.mxu0 %v230
        %344 = vmatprep.subr.mxu0 0.0
        %345 = vmatpush1.msra.mxu0 %v229
        %346 = vmatprep.subr.mxu0 0.0
        %347 = vmatpush1.msra.mxu0 %v228
        %348 = vmatprep.subr.mxu0 0.0
        %349 = vmatpush1.msra.mxu0 %v227
        %350 = vmatprep.subr.mxu0 0.0
        %351 = vmatpush1.msra.mxu0 %v226
        %352 = vmatprep.subr.mxu0 0.0
        %353 = vmatpush1.msra.mxu0 %v225
        %354 = vmatprep.subr.mxu0 0.0
        %355 = vmatpush1.msra.mxu0 %v224
        %356 = vmatprep.subr.mxu0 0.0
        %357 = vmatpush1.msra.mxu0 %v223
        %358 = vmatprep.subr.mxu0 0.0
        %359 = vmatpush1.msra.mxu0 %v222
        %360 = vmatprep.subr.mxu0 0.0
        %361 = vmatpush1.msra.mxu0 %v221
        %362 = vmatprep.subr.mxu0 0.0
        %363 = vmatpush1.msra.mxu0 %v220
        %364 = vmatprep.subr.mxu0 0.0
        %365 = vmatpush1.msra.mxu0 %v219
        %366 = vmatprep.subr.mxu0 0.0
        %367 = vmatpush1.msra.mxu0 %v218
        %368 = vmatprep.subr.mxu0 0.0
        %369 = vmatpush1.msra.mxu0 %v217
        %370 = vmatprep.subr.mxu0 0.0
        %371 = vmatpush1.msra.mxu0 %v216
        %372 = vmatprep.subr.mxu0 0.0
        %373 = vmatpush1.msra.mxu0 %v215
        %374 = vmatprep.subr.mxu0 0.0
        %375 = vmatpush2.msra.mxu0 0.0
        %376 = vmatprep.subr.mxu0 0.0
        %377 = vmatpush2.msra.mxu0 0.0
        %378 = vmatprep.subr.mxu0 0.0
        %379 = vmatpush2.msra.mxu0 0.0
        %380 = vmatprep.subr.mxu0 0.0
        %381 = vmatpush2.msra.mxu0 0.0
        %382 = vmatprep.subr.mxu0 0.0
        %383 = vmatpush2.msra.mxu0 0.0
        %384 = vmatprep.subr.mxu0 0.0
        %385 = vmatpush2.msra.mxu0 0.0
        %386 = vmatprep.subr.mxu0 0.0
        %387 = vmatpush2.msra.mxu0 0.0
        %388 = vmatprep.subr.mxu0 0.0
        %389 = vmatpush2.msra.mxu0 0.0
        %390 = vmatprep.subr.mxu0 0.0
        %391 = vmatpush2.msra.mxu0 0.0
        %392 = vmatprep.subr.mxu0 0.0
        %393 = vmatpush2.msra.mxu0 0.0
        %394 = vmatprep.subr.mxu0 0.0
        %395 = vmatpush2.msra.mxu0 0.0
        %396 = vmatprep.subr.mxu0 0.0
        %397 = vmatpush2.msra.mxu0 0.0
        %398 = vmatprep.subr.mxu0 0.0
        %399 = vmatpush2.msra.mxu0 0.0
        %400 = vmatprep.subr.mxu0 0.0
        %401 = vmatpush2.msra.mxu0 0.0
        %402 = vmatprep.subr.mxu0 0.0
        %403 = vmatpush2.msra.mxu0 0.0
        %404 = vmatprep.subr.mxu0 0.0
        %405 = vmatpush2.msra.mxu0 0.0
        %406 = vmatprep.mubr.f32.mxu0 0.0
        %407 = vmatmul.mubr.f32.gmra.mxu0 %v213
        %v408 = vpop.f32.mrf.mxu0
        %v409 = vadd.f32 %v334, %v408
        %v410 = vpop.f32.mrf.mxu0
        %411 = vmatprep.mubr.f32.mxu0 0.0
        %412 = vmatmul.mubr.f32.gmra.mxu0 %v214
        %v413 = vpop.f32.mrf.mxu0
        %v414 = vadd.f32 %v339, %v413
        %v415 = vpop.f32.mrf.mxu0
        %416 = vdwg.mxu0
        %s417 = scalar_lea.vmem [#allocation4], 256
        %v418 = vld [vmem:[%s417] sm:$0xff]
        %v419 = vld [vmem:[%s417 + $0x8] sm:$0xff]
        %v420 = vld [vmem:[%s417 + $0x10] sm:$0xff]
        %v421 = vld [vmem:[%s417 + $0x18] sm:$0xff]
        %v422 = vld [vmem:[%s417 + $0x20] sm:$0xff]
        %v423 = vld [vmem:[%s417 + $0x28] sm:$0xff]
        %v424 = vld [vmem:[%s417 + $0x30] sm:$0xff]
        %v425 = vld [vmem:[%s417 + $0x38] sm:$0xff]
        %v426 = vld [vmem:[%s417 + $0x40] sm:$0xff]
        %v427 = vld [vmem:[%s417 + $0x48] sm:$0xff]
        %v428 = vld [vmem:[%s417 + $0x50] sm:$0xff]
        %v429 = vld [vmem:[%s417 + $0x58] sm:$0xff]
        %v430 = vld [vmem:[%s417 + $0x60] sm:$0xff]
        %v431 = vld [vmem:[%s417 + $0x68] sm:$0xff]
        %v432 = vld [vmem:[%s417 + $0x70] sm:$0xff]
        %v433 = vld [vmem:[%s417 + $0x78] sm:$0xff]
        %434 = vrot.lane.b32.xlu0 %v213, 112
        %v435 = vpop.permute.xlu0 %434
        %436 = vrot.lane.b32.xlu0 %v231, 112
        %v437 = vpop.permute.xlu0 %436
        %438 = vrot.lane.b32.xlu0 %v214, 112
        %v439 = vpop.permute.xlu0 %438
        %440 = vrot.lane.b32.xlu0 %v232, 112
        %v441 = vpop.permute.xlu0 %440
        %vm442 = vcmask 916480
        %v443 = vsel %vm442, %v435, %v437
        %v444 = vsel %vm442, %v439, %v441
        %447 = vmatprep.subr.mxu0 0.0
        %448 = vmatpush1.msra.mxu0 %v433
        %449 = vmatprep.subr.mxu0 0.0
        %450 = vmatpush1.msra.mxu0 %v432
        %451 = vmatprep.subr.mxu0 0.0
        %452 = vmatpush1.msra.mxu0 %v431
        %453 = vmatprep.subr.mxu0 0.0
        %454 = vmatpush1.msra.mxu0 %v430
        %455 = vmatprep.subr.mxu0 0.0
        %456 = vmatpush1.msra.mxu0 %v429
        %457 = vmatprep.subr.mxu0 0.0
        %458 = vmatpush1.msra.mxu0 %v428
        %459 = vmatprep.subr.mxu0 0.0
        %460 = vmatpush1.msra.mxu0 %v427
        %461 = vmatprep.subr.mxu0 0.0
        %462 = vmatpush1.msra.mxu0 %v426
        %463 = vmatprep.subr.mxu0 0.0
        %464 = vmatpush1.msra.mxu0 %v425
        %465 = vmatprep.subr.mxu0 0.0
        %466 = vmatpush1.msra.mxu0 %v424
        %467 = vmatprep.subr.mxu0 0.0
        %468 = vmatpush1.msra.mxu0 %v423
        %469 = vmatprep.subr.mxu0 0.0
        %470 = vmatpush1.msra.mxu0 %v422
        %471 = vmatprep.subr.mxu0 0.0
        %472 = vmatpush1.msra.mxu0 %v421
        %473 = vmatprep.subr.mxu0 0.0
        %474 = vmatpush1.msra.mxu0 %v420
        %475 = vmatprep.subr.mxu0 0.0
        %476 = vmatpush1.msra.mxu0 %v419
        %477 = vmatprep.subr.mxu0 0.0
        %478 = vmatpush1.msra.mxu0 %v418
        %479 = vmatprep.subr.mxu0 0.0
        %480 = vmatpush2.msra.mxu0 0.0
        %481 = vmatprep.subr.mxu0 0.0
        %482 = vmatpush2.msra.mxu0 0.0
        %483 = vmatprep.subr.mxu0 0.0
        %484 = vmatpush2.msra.mxu0 0.0
        %485 = vmatprep.subr.mxu0 0.0
        %486 = vmatpush2.msra.mxu0 0.0
        %487 = vmatprep.subr.mxu0 0.0
        %488 = vmatpush2.msra.mxu0 0.0
        %489 = vmatprep.subr.mxu0 0.0
        %490 = vmatpush2.msra.mxu0 0.0
        %491 = vmatprep.subr.mxu0 0.0
        %492 = vmatpush2.msra.mxu0 0.0
        %493 = vmatprep.subr.mxu0 0.0
        %494 = vmatpush2.msra.mxu0 0.0
        %495 = vmatprep.subr.mxu0 0.0
        %496 = vmatpush2.msra.mxu0 0.0
        %497 = vmatprep.subr.mxu0 0.0
        %498 = vmatpush2.msra.mxu0 0.0
        %499 = vmatprep.subr.mxu0 0.0
        %500 = vmatpush2.msra.mxu0 0.0
        %501 = vmatprep.subr.mxu0 0.0
        %502 = vmatpush2.msra.mxu0 0.0
        %503 = vmatprep.subr.mxu0 0.0
        %504 = vmatpush2.msra.mxu0 0.0
        %505 = vmatprep.subr.mxu0 0.0
        %506 = vmatpush2.msra.mxu0 0.0
        %507 = vmatprep.subr.mxu0 0.0
        %508 = vmatpush2.msra.mxu0 0.0
        %509 = vmatprep.subr.mxu0 0.0
        %510 = vmatpush2.msra.mxu0 0.0
        %511 = vmatprep.mubr.f32.mxu0 0.0
        %512 = vmatmul.mubr.f32.gmra.mxu0 %v443
        %v513 = vpop.f32.mrf.mxu0
        %v514 = vadd.f32 0.0, %v513
        %v515 = vpop.f32.mrf.mxu0
        %516 = vmatprep.mubr.f32.mxu0 0.0
        %517 = vmatmul.mubr.f32.gmra.mxu0 %v444
        %v518 = vpop.f32.mrf.mxu0
        %v519 = vadd.f32 0.0, %v518
        %v520 = vpop.f32.mrf.mxu0
        %521 = vdwg.mxu0
        %v522 = vadd.f32 %v409, %v514
        %v523 = vadd.f32 %v414, %v519
        %v524 = vld [vmem:[%s193] sm:$0xfe]
        %v525 = vld [vmem:[%s193 + $0x10] sm:$0xff]
        %v526 = vld [vmem:[%s193 + $0x20] sm:$0x1]
        %s527 = scalar_lea.vmem [#allocation4], 384
        %v528 = vld [vmem:[%s527] sm:$0xff]
        %v529 = vld [vmem:[%s527 + $0x8] sm:$0xff]
        %v530 = vld [vmem:[%s527 + $0x10] sm:$0xff]
        %v531 = vld [vmem:[%s527 + $0x18] sm:$0xff]
        %v532 = vld [vmem:[%s527 + $0x20] sm:$0xff]
        %v533 = vld [vmem:[%s527 + $0x28] sm:$0xff]
        %v534 = vld [vmem:[%s527 + $0x30] sm:$0xff]
        %v535 = vld [vmem:[%s527 + $0x38] sm:$0xff]
        %v536 = vld [vmem:[%s527 + $0x40] sm:$0xff]
        %v537 = vld [vmem:[%s527 + $0x48] sm:$0xff]
        %v538 = vld [vmem:[%s527 + $0x50] sm:$0xff]
        %v539 = vld [vmem:[%s527 + $0x58] sm:$0xff]
        %v540 = vld [vmem:[%s527 + $0x60] sm:$0xff]
        %v541 = vld [vmem:[%s527 + $0x68] sm:$0xff]
        %v542 = vld [vmem:[%s527 + $0x70] sm:$0xff]
        %v543 = vld [vmem:[%s527 + $0x78] sm:$0xff]
        %vm547 = vcmask 1046528
        %v548 = vrot.slane %v524, 1
        %v549 = vrot.slane %v525, 1
        %v550 = vsel %vm547, %v548, %v549
        %v551 = vrot.slane %v526, 1
        %v552 = vsel %vm547, %v549, %v551
        %555 = vmatprep.subr.mxu0 0.0
        %556 = vmatpush1.msra.mxu0 %v543
        %557 = vmatprep.subr.mxu0 0.0
        %558 = vmatpush1.msra.mxu0 %v542
        %559 = vmatprep.subr.mxu0 0.0
        %560 = vmatpush1.msra.mxu0 %v541
        %561 = vmatprep.subr.mxu0 0.0
        %562 = vmatpush1.msra.mxu0 %v540
        %563 = vmatprep.subr.mxu0 0.0
        %564 = vmatpush1.msra.mxu0 %v539
        %565 = vmatprep.subr.mxu0 0.0
        %566 = vmatpush1.msra.mxu0 %v538
        %567 = vmatprep.subr.mxu0 0.0
        %568 = vmatpush1.msra.mxu0 %v537
        %569 = vmatprep.subr.mxu0 0.0
        %570 = vmatpush1.msra.mxu0 %v536
        %571 = vmatprep.subr.mxu0 0.0
        %572 = vmatpush1.msra.mxu0 %v535
        %573 = vmatprep.subr.mxu0 0.0
        %574 = vmatpush1.msra.mxu0 %v534
        %575 = vmatprep.subr.mxu0 0.0
        %576 = vmatpush1.msra.mxu0 %v533
        %577 = vmatprep.subr.mxu0 0.0
        %578 = vmatpush1.msra.mxu0 %v532
        %579 = vmatprep.subr.mxu0 0.0
        %580 = vmatpush1.msra.mxu0 %v531
        %581 = vmatprep.subr.mxu0 0.0
        %582 = vmatpush1.msra.mxu0 %v530
        %583 = vmatprep.subr.mxu0 0.0
        %584 = vmatpush1.msra.mxu0 %v529
        %585 = vmatprep.subr.mxu0 0.0
        %586 = vmatpush1.msra.mxu0 %v528
        %587 = vmatprep.subr.mxu0 0.0
        %588 = vmatpush2.msra.mxu0 0.0
        %589 = vmatprep.subr.mxu0 0.0
        %590 = vmatpush2.msra.mxu0 0.0
        %591 = vmatprep.subr.mxu0 0.0
        %592 = vmatpush2.msra.mxu0 0.0
        %593 = vmatprep.subr.mxu0 0.0
        %594 = vmatpush2.msra.mxu0 0.0
        %595 = vmatprep.subr.mxu0 0.0
        %596 = vmatpush2.msra.mxu0 0.0
        %597 = vmatprep.subr.mxu0 0.0
        %598 = vmatpush2.msra.mxu0 0.0
        %599 = vmatprep.subr.mxu0 0.0
        %600 = vmatpush2.msra.mxu0 0.0
        %601 = vmatprep.subr.mxu0 0.0
        %602 = vmatpush2.msra.mxu0 0.0
        %603 = vmatprep.subr.mxu0 0.0
        %604 = vmatpush2.msra.mxu0 0.0
        %605 = vmatprep.subr.mxu0 0.0
        %606 = vmatpush2.msra.mxu0 0.0
        %607 = vmatprep.subr.mxu0 0.0
        %608 = vmatpush2.msra.mxu0 0.0
        %609 = vmatprep.subr.mxu0 0.0
        %610 = vmatpush2.msra.mxu0 0.0
        %611 = vmatprep.subr.mxu0 0.0
        %612 = vmatpush2.msra.mxu0 0.0
        %613 = vmatprep.subr.mxu0 0.0
        %614 = vmatpush2.msra.mxu0 0.0
        %615 = vmatprep.subr.mxu0 0.0
        %616 = vmatpush2.msra.mxu0 0.0
        %617 = vmatprep.subr.mxu0 0.0
        %618 = vmatpush2.msra.mxu0 0.0
        %619 = vmatprep.mubr.f32.mxu0 0.0
        %620 = vmatmul.mubr.f32.gmra.mxu0 %v550
        %v621 = vpop.f32.mrf.mxu0
        %v622 = vadd.f32 0.0, %v621
        %v623 = vpop.f32.mrf.mxu0
        %624 = vmatprep.mubr.f32.mxu0 0.0
        %625 = vmatmul.mubr.f32.gmra.mxu0 %v552
        %v626 = vpop.f32.mrf.mxu0
        %v627 = vadd.f32 0.0, %v626
        %v628 = vpop.f32.mrf.mxu0
        %629 = vdwg.mxu0
        %v630 = vadd.f32 %v522, %v622
        %v631 = vadd.f32 %v523, %v627
        %v632 = vld [vmem:[%s193] sm:$0xfe]
        %v633 = vld [vmem:[%s193 + $0x8] sm:$0xfe]
        %v634 = vld [vmem:[%s193 + $0x10] sm:$0xff]
        %v635 = vld [vmem:[%s193 + $0x18] sm:$0xff]
        %v636 = vld [vmem:[%s193 + $0x20] sm:$0x1]
        %v637 = vld [vmem:[%s193 + $0x28] sm:$0x1]
        %s638 = scalar_lea.vmem [#allocation4], 512
        %v639 = vld [vmem:[%s638] sm:$0xff]
        %v640 = vld [vmem:[%s638 + $0x8] sm:$0xff]
        %v641 = vld [vmem:[%s638 + $0x10] sm:$0xff]
        %v642 = vld [vmem:[%s638 + $0x18] sm:$0xff]
        %v643 = vld [vmem:[%s638 + $0x20] sm:$0xff]
        %v644 = vld [vmem:[%s638 + $0x28] sm:$0xff]
        %v645 = vld [vmem:[%s638 + $0x30] sm:$0xff]
        %v646 = vld [vmem:[%s638 + $0x38] sm:$0xff]
        %v647 = vld [vmem:[%s638 + $0x40] sm:$0xff]
        %v648 = vld [vmem:[%s638 + $0x48] sm:$0xff]
        %v649 = vld [vmem:[%s638 + $0x50] sm:$0xff]
        %v650 = vld [vmem:[%s638 + $0x58] sm:$0xff]
        %v651 = vld [vmem:[%s638 + $0x60] sm:$0xff]
        %v652 = vld [vmem:[%s638 + $0x68] sm:$0xff]
        %v653 = vld [vmem:[%s638 + $0x70] sm:$0xff]
        %v654 = vld [vmem:[%s638 + $0x78] sm:$0xff]
        %v661 = vrot.slane %v632, 1
        %v662 = vrot.slane %v634, 1
        %v663 = vsel %vm547, %v661, %v662
        %v664 = vrot.slane %v633, 1
        %v665 = vrot.slane %v635, 1
        %v666 = vsel %vm547, %v664, %v665
        %v667 = vrot.slane %v636, 1
        %v668 = vsel %vm547, %v662, %v667
        %v669 = vrot.slane %v637, 1
        %v670 = vsel %vm547, %v665, %v669
        %671 = vrot.lane.b32.xlu0 %v663, 120
        %v672 = vpop.permute.xlu0 %671
        %673 = vrot.lane.b32.xlu0 %v666, 120
        %v674 = vpop.permute.xlu0 %673
        %675 = vrot.lane.b32.xlu0 %v668, 120
        %v676 = vpop.permute.xlu0 %675
        %677 = vrot.lane.b32.xlu0 %v670, 120
        %v678 = vpop.permute.xlu0 %677
        %v679 = vsel %vm262, %v672, %v674
        %v680 = vsel %vm262, %v676, %v678
        %683 = vmatprep.subr.mxu0 0.0
        %684 = vmatpush1.msra.mxu0 %v654
        %685 = vmatprep.subr.mxu0 0.0
        %686 = vmatpush1.msra.mxu0 %v653
        %687 = vmatprep.subr.mxu0 0.0
        %688 = vmatpush1.msra.mxu0 %v652
        %689 = vmatprep.subr.mxu0 0.0
        %690 = vmatpush1.msra.mxu0 %v651
        %691 = vmatprep.subr.mxu0 0.0
        %692 = vmatpush1.msra.mxu0 %v650
        %693 = vmatprep.subr.mxu0 0.0
        %694 = vmatpush1.msra.mxu0 %v649
        %695 = vmatprep.subr.mxu0 0.0
        %696 = vmatpush1.msra.mxu0 %v648
        %697 = vmatprep.subr.mxu0 0.0
        %698 = vmatpush1.msra.mxu0 %v647
        %699 = vmatprep.subr.mxu0 0.0
        %700 = vmatpush1.msra.mxu0 %v646
        %701 = vmatprep.subr.mxu0 0.0
        %702 = vmatpush1.msra.mxu0 %v645
        %703 = vmatprep.subr.mxu0 0.0
        %704 = vmatpush1.msra.mxu0 %v644
        %705 = vmatprep.subr.mxu0 0.0
        %706 = vmatpush1.msra.mxu0 %v643
        %707 = vmatprep.subr.mxu0 0.0
        %708 = vmatpush1.msra.mxu0 %v642
        %709 = vmatprep.subr.mxu0 0.0
        %710 = vmatpush1.msra.mxu0 %v641
        %711 = vmatprep.subr.mxu0 0.0
        %712 = vmatpush1.msra.mxu0 %v640
        %713 = vmatprep.subr.mxu0 0.0
        %714 = vmatpush1.msra.mxu0 %v639
        %715 = vmatprep.subr.mxu0 0.0
        %716 = vmatpush2.msra.mxu0 0.0
        %717 = vmatprep.subr.mxu0 0.0
        %718 = vmatpush2.msra.mxu0 0.0
        %719 = vmatprep.subr.mxu0 0.0
        %720 = vmatpush2.msra.mxu0 0.0
        %721 = vmatprep.subr.mxu0 0.0
        %722 = vmatpush2.msra.mxu0 0.0
        %723 = vmatprep.subr.mxu0 0.0
        %724 = vmatpush2.msra.mxu0 0.0
        %725 = vmatprep.subr.mxu0 0.0
        %726 = vmatpush2.msra.mxu0 0.0
        %727 = vmatprep.subr.mxu0 0.0
        %728 = vmatpush2.msra.mxu0 0.0
        %729 = vmatprep.subr.mxu0 0.0
        %730 = vmatpush2.msra.mxu0 0.0
        %731 = vmatprep.subr.mxu0 0.0
        %732 = vmatpush2.msra.mxu0 0.0
        %733 = vmatprep.subr.mxu0 0.0
        %734 = vmatpush2.msra.mxu0 0.0
        %735 = vmatprep.subr.mxu0 0.0
        %736 = vmatpush2.msra.mxu0 0.0
        %737 = vmatprep.subr.mxu0 0.0
        %738 = vmatpush2.msra.mxu0 0.0
        %739 = vmatprep.subr.mxu0 0.0
        %740 = vmatpush2.msra.mxu0 0.0
        %741 = vmatprep.subr.mxu0 0.0
        %742 = vmatpush2.msra.mxu0 0.0
        %743 = vmatprep.subr.mxu0 0.0
        %744 = vmatpush2.msra.mxu0 0.0
        %745 = vmatprep.subr.mxu0 0.0
        %746 = vmatpush2.msra.mxu0 0.0
        %747 = vmatprep.mubr.f32.mxu0 0.0
        %748 = vmatmul.mubr.f32.gmra.mxu0 %v679
        %v749 = vpop.f32.mrf.mxu0
        %v750 = vadd.f32 0.0, %v749
        %v751 = vpop.f32.mrf.mxu0
        %752 = vmatprep.mubr.f32.mxu0 0.0
        %753 = vmatmul.mubr.f32.gmra.mxu0 %v680
        %v754 = vpop.f32.mrf.mxu0
        %v755 = vadd.f32 0.0, %v754
        %v756 = vpop.f32.mrf.mxu0
        %757 = vdwg.mxu0
        %v758 = vadd.f32 %v630, %v750
        %v759 = vadd.f32 %v631, %v755
        %s760 = scalar_lea.vmem [#allocation4], 640
        %v761 = vld [vmem:[%s760] sm:$0xff]
        %v762 = vld [vmem:[%s760 + $0x8] sm:$0xff]
        %v763 = vld [vmem:[%s760 + $0x10] sm:$0xff]
        %v764 = vld [vmem:[%s760 + $0x18] sm:$0xff]
        %v765 = vld [vmem:[%s760 + $0x20] sm:$0xff]
        %v766 = vld [vmem:[%s760 + $0x28] sm:$0xff]
        %v767 = vld [vmem:[%s760 + $0x30] sm:$0xff]
        %v768 = vld [vmem:[%s760 + $0x38] sm:$0xff]
        %v769 = vld [vmem:[%s760 + $0x40] sm:$0xff]
        %v770 = vld [vmem:[%s760 + $0x48] sm:$0xff]
        %v771 = vld [vmem:[%s760 + $0x50] sm:$0xff]
        %v772 = vld [vmem:[%s760 + $0x58] sm:$0xff]
        %v773 = vld [vmem:[%s760 + $0x60] sm:$0xff]
        %v774 = vld [vmem:[%s760 + $0x68] sm:$0xff]
        %v775 = vld [vmem:[%s760 + $0x70] sm:$0xff]
        %v776 = vld [vmem:[%s760 + $0x78] sm:$0xff]
        %777 = vrot.lane.b32.xlu0 %v663, 112
        %v778 = vpop.permute.xlu0 %777
        %779 = vrot.lane.b32.xlu0 %v666, 112
        %v780 = vpop.permute.xlu0 %779
        %781 = vrot.lane.b32.xlu0 %v668, 112
        %v782 = vpop.permute.xlu0 %781
        %783 = vrot.lane.b32.xlu0 %v670, 112
        %v784 = vpop.permute.xlu0 %783
        %v785 = vsel %vm442, %v778, %v780
        %v786 = vsel %vm442, %v782, %v784
        %789 = vmatprep.subr.mxu0 0.0
        %790 = vmatpush1.msra.mxu0 %v776
        %791 = vmatprep.subr.mxu0 0.0
        %792 = vmatpush1.msra.mxu0 %v775
        %793 = vmatprep.subr.mxu0 0.0
        %794 = vmatpush1.msra.mxu0 %v774
        %795 = vmatprep.subr.mxu0 0.0
        %796 = vmatpush1.msra.mxu0 %v773
        %797 = vmatprep.subr.mxu0 0.0
        %798 = vmatpush1.msra.mxu0 %v772
        %799 = vmatprep.subr.mxu0 0.0
        %800 = vmatpush1.msra.mxu0 %v771
        %801 = vmatprep.subr.mxu0 0.0
        %802 = vmatpush1.msra.mxu0 %v770
        %803 = vmatprep.subr.mxu0 0.0
        %804 = vmatpush1.msra.mxu0 %v769
        %805 = vmatprep.subr.mxu0 0.0
        %806 = vmatpush1.msra.mxu0 %v768
        %807 = vmatprep.subr.mxu0 0.0
        %808 = vmatpush1.msra.mxu0 %v767
        %809 = vmatprep.subr.mxu0 0.0
        %810 = vmatpush1.msra.mxu0 %v766
        %811 = vmatprep.subr.mxu0 0.0
        %812 = vmatpush1.msra.mxu0 %v765
        %813 = vmatprep.subr.mxu0 0.0
        %814 = vmatpush1.msra.mxu0 %v764
        %815 = vmatprep.subr.mxu0 0.0
        %816 = vmatpush1.msra.mxu0 %v763
        %817 = vmatprep.subr.mxu0 0.0
        %818 = vmatpush1.msra.mxu0 %v762
        %819 = vmatprep.subr.mxu0 0.0
        %820 = vmatpush1.msra.mxu0 %v761
        %821 = vmatprep.subr.mxu0 0.0
        %822 = vmatpush2.msra.mxu0 0.0
        %823 = vmatprep.subr.mxu0 0.0
        %824 = vmatpush2.msra.mxu0 0.0
        %825 = vmatprep.subr.mxu0 0.0
        %826 = vmatpush2.msra.mxu0 0.0
        %827 = vmatprep.subr.mxu0 0.0
        %828 = vmatpush2.msra.mxu0 0.0
        %829 = vmatprep.subr.mxu0 0.0
        %830 = vmatpush2.msra.mxu0 0.0
        %831 = vmatprep.subr.mxu0 0.0
        %832 = vmatpush2.msra.mxu0 0.0
        %833 = vmatprep.subr.mxu0 0.0
        %834 = vmatpush2.msra.mxu0 0.0
        %835 = vmatprep.subr.mxu0 0.0
        %836 = vmatpush2.msra.mxu0 0.0
        %837 = vmatprep.subr.mxu0 0.0
        %838 = vmatpush2.msra.mxu0 0.0
        %839 = vmatprep.subr.mxu0 0.0
        %840 = vmatpush2.msra.mxu0 0.0
        %841 = vmatprep.subr.mxu0 0.0
        %842 = vmatpush2.msra.mxu0 0.0
        %843 = vmatprep.subr.mxu0 0.0
        %844 = vmatpush2.msra.mxu0 0.0
        %845 = vmatprep.subr.mxu0 0.0
        %846 = vmatpush2.msra.mxu0 0.0
        %847 = vmatprep.subr.mxu0 0.0
        %848 = vmatpush2.msra.mxu0 0.0
        %849 = vmatprep.subr.mxu0 0.0
        %850 = vmatpush2.msra.mxu0 0.0
        %851 = vmatprep.subr.mxu0 0.0
        %852 = vmatpush2.msra.mxu0 0.0
        %853 = vmatprep.mubr.f32.mxu0 0.0
        %854 = vmatmul.mubr.f32.gmra.mxu0 %v785
        %v855 = vpop.f32.mrf.mxu0
        %v856 = vadd.f32 0.0, %v855
        %v857 = vpop.f32.mrf.mxu0
        %858 = vmatprep.mubr.f32.mxu0 0.0
        %859 = vmatmul.mubr.f32.gmra.mxu0 %v786
        %v860 = vpop.f32.mrf.mxu0
        %v861 = vadd.f32 0.0, %v860
        %v862 = vpop.f32.mrf.mxu0
        %863 = vdwg.mxu0
        %v864 = vadd.f32 %v758, %v856
        %v865 = vadd.f32 %v759, %v861
        %v866 = vld [vmem:[%s193] sm:$0xfc]
        %v867 = vld [vmem:[%s193 + $0x20] sm:$0x3]
        %s868 = scalar_lea.vmem [#allocation4], 768
        %v869 = vld [vmem:[%s868] sm:$0xff]
        %v870 = vld [vmem:[%s868 + $0x8] sm:$0xff]
        %v871 = vld [vmem:[%s868 + $0x10] sm:$0xff]
        %v872 = vld [vmem:[%s868 + $0x18] sm:$0xff]
        %v873 = vld [vmem:[%s868 + $0x20] sm:$0xff]
        %v874 = vld [vmem:[%s868 + $0x28] sm:$0xff]
        %v875 = vld [vmem:[%s868 + $0x30] sm:$0xff]
        %v876 = vld [vmem:[%s868 + $0x38] sm:$0xff]
        %v877 = vld [vmem:[%s868 + $0x40] sm:$0xff]
        %v878 = vld [vmem:[%s868 + $0x48] sm:$0xff]
        %v879 = vld [vmem:[%s868 + $0x50] sm:$0xff]
        %v880 = vld [vmem:[%s868 + $0x58] sm:$0xff]
        %v881 = vld [vmem:[%s868 + $0x60] sm:$0xff]
        %v882 = vld [vmem:[%s868 + $0x68] sm:$0xff]
        %v883 = vld [vmem:[%s868 + $0x70] sm:$0xff]
        %v884 = vld [vmem:[%s868 + $0x78] sm:$0xff]
        %vm887 = vcmask 1045504
        %v888 = vrot.slane %v866, 2
        %v889 = vrot.slane %v525, 2
        %v890 = vsel %vm887, %v888, %v889
        %v891 = vrot.slane %v867, 2
        %v892 = vsel %vm887, %v889, %v891
        %895 = vmatprep.subr.mxu0 0.0
        %896 = vmatpush1.msra.mxu0 %v884
        %897 = vmatprep.subr.mxu0 0.0
        %898 = vmatpush1.msra.mxu0 %v883
        %899 = vmatprep.subr.mxu0 0.0
        %900 = vmatpush1.msra.mxu0 %v882
        %901 = vmatprep.subr.mxu0 0.0
        %902 = vmatpush1.msra.mxu0 %v881
        %903 = vmatprep.subr.mxu0 0.0
        %904 = vmatpush1.msra.mxu0 %v880
        %905 = vmatprep.subr.mxu0 0.0
        %906 = vmatpush1.msra.mxu0 %v879
        %907 = vmatprep.subr.mxu0 0.0
        %908 = vmatpush1.msra.mxu0 %v878
        %909 = vmatprep.subr.mxu0 0.0
        %910 = vmatpush1.msra.mxu0 %v877
        %911 = vmatprep.subr.mxu0 0.0
        %912 = vmatpush1.msra.mxu0 %v876
        %913 = vmatprep.subr.mxu0 0.0
        %914 = vmatpush1.msra.mxu0 %v875
        %915 = vmatprep.subr.mxu0 0.0
        %916 = vmatpush1.msra.mxu0 %v874
        %917 = vmatprep.subr.mxu0 0.0
        %918 = vmatpush1.msra.mxu0 %v873
        %919 = vmatprep.subr.mxu0 0.0
        %920 = vmatpush1.msra.mxu0 %v872
        %921 = vmatprep.subr.mxu0 0.0
        %922 = vmatpush1.msra.mxu0 %v871
        %923 = vmatprep.subr.mxu0 0.0
        %924 = vmatpush1.msra.mxu0 %v870
        %925 = vmatprep.subr.mxu0 0.0
        %926 = vmatpush1.msra.mxu0 %v869
        %927 = vmatprep.subr.mxu0 0.0
        %928 = vmatpush2.msra.mxu0 0.0
        %929 = vmatprep.subr.mxu0 0.0
        %930 = vmatpush2.msra.mxu0 0.0
        %931 = vmatprep.subr.mxu0 0.0
        %932 = vmatpush2.msra.mxu0 0.0
        %933 = vmatprep.subr.mxu0 0.0
        %934 = vmatpush2.msra.mxu0 0.0
        %935 = vmatprep.subr.mxu0 0.0
        %936 = vmatpush2.msra.mxu0 0.0
        %937 = vmatprep.subr.mxu0 0.0
        %938 = vmatpush2.msra.mxu0 0.0
        %939 = vmatprep.subr.mxu0 0.0
        %940 = vmatpush2.msra.mxu0 0.0
        %941 = vmatprep.subr.mxu0 0.0
        %942 = vmatpush2.msra.mxu0 0.0
        %943 = vmatprep.subr.mxu0 0.0
        %944 = vmatpush2.msra.mxu0 0.0
        %945 = vmatprep.subr.mxu0 0.0
        %946 = vmatpush2.msra.mxu0 0.0
        %947 = vmatprep.subr.mxu0 0.0
        %948 = vmatpush2.msra.mxu0 0.0
        %949 = vmatprep.subr.mxu0 0.0
        %950 = vmatpush2.msra.mxu0 0.0
        %951 = vmatprep.subr.mxu0 0.0
        %952 = vmatpush2.msra.mxu0 0.0
        %953 = vmatprep.subr.mxu0 0.0
        %954 = vmatpush2.msra.mxu0 0.0
        %955 = vmatprep.subr.mxu0 0.0
        %956 = vmatpush2.msra.mxu0 0.0
        %957 = vmatprep.subr.mxu0 0.0
        %958 = vmatpush2.msra.mxu0 0.0
        %959 = vmatprep.mubr.f32.mxu0 0.0
        %960 = vmatmul.mubr.f32.gmra.mxu0 %v890
        %v961 = vpop.f32.mrf.mxu0
        %v962 = vadd.f32 0.0, %v961
        %v963 = vpop.f32.mrf.mxu0
        %964 = vmatprep.mubr.f32.mxu0 0.0
        %965 = vmatmul.mubr.f32.gmra.mxu0 %v892
        %v966 = vpop.f32.mrf.mxu0
        %v967 = vadd.f32 0.0, %v966
        %v968 = vpop.f32.mrf.mxu0
        %969 = vdwg.mxu0
        %v970 = vadd.f32 %v864, %v962
        %v971 = vadd.f32 %v865, %v967
        %v972 = vld [vmem:[%s193] sm:$0xfc]
        %v973 = vld [vmem:[%s193 + $0x8] sm:$0xfc]
        %v974 = vld [vmem:[%s193 + $0x20] sm:$0x3]
        %v975 = vld [vmem:[%s193 + $0x28] sm:$0x3]
        %s976 = scalar_lea.vmem [#allocation4], 896
        %v977 = vld [vmem:[%s976] sm:$0xff]
        %v978 = vld [vmem:[%s976 + $0x8] sm:$0xff]
        %v979 = vld [vmem:[%s976 + $0x10] sm:$0xff]
        %v980 = vld [vmem:[%s976 + $0x18] sm:$0xff]
        %v981 = vld [vmem:[%s976 + $0x20] sm:$0xff]
        %v982 = vld [vmem:[%s976 + $0x28] sm:$0xff]
        %v983 = vld [vmem:[%s976 + $0x30] sm:$0xff]
        %v984 = vld [vmem:[%s976 + $0x38] sm:$0xff]
        %v985 = vld [vmem:[%s976 + $0x40] sm:$0xff]
        %v986 = vld [vmem:[%s976 + $0x48] sm:$0xff]
        %v987 = vld [vmem:[%s976 + $0x50] sm:$0xff]
        %v988 = vld [vmem:[%s976 + $0x58] sm:$0xff]
        %v989 = vld [vmem:[%s976 + $0x60] sm:$0xff]
        %v990 = vld [vmem:[%s976 + $0x68] sm:$0xff]
        %v991 = vld [vmem:[%s976 + $0x70] sm:$0xff]
        %v992 = vld [vmem:[%s976 + $0x78] sm:$0xff]
        %v997 = vrot.slane %v972, 2
        %v998 = vrot.slane %v634, 2
        %v999 = vsel %vm887, %v997, %v998
        %v1000 = vrot.slane %v973, 2
        %v1001 = vrot.slane %v635, 2
        %v1002 = vsel %vm887, %v1000, %v1001
        %v1003 = vrot.slane %v974, 2
        %v1004 = vsel %vm887, %v998, %v1003
        %v1005 = vrot.slane %v975, 2
        %v1006 = vsel %vm887, %v1001, %v1005
        %1007 = vrot.lane.b32.xlu0 %v999, 120
        %v1008 = vpop.permute.xlu0 %1007
        %1009 = vrot.lane.b32.xlu0 %v1002, 120
        %v1010 = vpop.permute.xlu0 %1009
        %1011 = vrot.lane.b32.xlu0 %v1004, 120
        %v1012 = vpop.permute.xlu0 %1011
        %1013 = vrot.lane.b32.xlu0 %v1006, 120
        %v1014 = vpop.permute.xlu0 %1013
        %v1015 = vsel %vm262, %v1008, %v1010
        %v1016 = vsel %vm262, %v1012, %v1014
        %1019 = vmatprep.subr.mxu0 0.0
        %1020 = vmatpush1.msra.mxu0 %v992
        %1021 = vmatprep.subr.mxu0 0.0
        %1022 = vmatpush1.msra.mxu0 %v991
        %1023 = vmatprep.subr.mxu0 0.0
        %1024 = vmatpush1.msra.mxu0 %v990
        %1025 = vmatprep.subr.mxu0 0.0
        %1026 = vmatpush1.msra.mxu0 %v989
        %1027 = vmatprep.subr.mxu0 0.0
        %1028 = vmatpush1.msra.mxu0 %v988
        %1029 = vmatprep.subr.mxu0 0.0
        %1030 = vmatpush1.msra.mxu0 %v987
        %1031 = vmatprep.subr.mxu0 0.0
        %1032 = vmatpush1.msra.mxu0 %v986
        %1033 = vmatprep.subr.mxu0 0.0
        %1034 = vmatpush1.msra.mxu0 %v985
        %1035 = vmatprep.subr.mxu0 0.0
        %1036 = vmatpush1.msra.mxu0 %v984
        %1037 = vmatprep.subr.mxu0 0.0
        %1038 = vmatpush1.msra.mxu0 %v983
        %1039 = vmatprep.subr.mxu0 0.0
        %1040 = vmatpush1.msra.mxu0 %v982
        %1041 = vmatprep.subr.mxu0 0.0
        %1042 = vmatpush1.msra.mxu0 %v981
        %1043 = vmatprep.subr.mxu0 0.0
        %1044 = vmatpush1.msra.mxu0 %v980
        %1045 = vmatprep.subr.mxu0 0.0
        %1046 = vmatpush1.msra.mxu0 %v979
        %1047 = vmatprep.subr.mxu0 0.0
        %1048 = vmatpush1.msra.mxu0 %v978
        %1049 = vmatprep.subr.mxu0 0.0
        %1050 = vmatpush1.msra.mxu0 %v977
        %1051 = vmatprep.subr.mxu0 0.0
        %1052 = vmatpush2.msra.mxu0 0.0
        %1053 = vmatprep.subr.mxu0 0.0
        %1054 = vmatpush2.msra.mxu0 0.0
        %1055 = vmatprep.subr.mxu0 0.0
        %1056 = vmatpush2.msra.mxu0 0.0
        %1057 = vmatprep.subr.mxu0 0.0
        %1058 = vmatpush2.msra.mxu0 0.0
        %1059 = vmatprep.subr.mxu0 0.0
        %1060 = vmatpush2.msra.mxu0 0.0
        %1061 = vmatprep.subr.mxu0 0.0
        %1062 = vmatpush2.msra.mxu0 0.0
        %1063 = vmatprep.subr.mxu0 0.0
        %1064 = vmatpush2.msra.mxu0 0.0
        %1065 = vmatprep.subr.mxu0 0.0
        %1066 = vmatpush2.msra.mxu0 0.0
        %1067 = vmatprep.subr.mxu0 0.0
        %1068 = vmatpush2.msra.mxu0 0.0
        %1069 = vmatprep.subr.mxu0 0.0
        %1070 = vmatpush2.msra.mxu0 0.0
        %1071 = vmatprep.subr.mxu0 0.0
        %1072 = vmatpush2.msra.mxu0 0.0
        %1073 = vmatprep.subr.mxu0 0.0
        %1074 = vmatpush2.msra.mxu0 0.0
        %1075 = vmatprep.subr.mxu0 0.0
        %1076 = vmatpush2.msra.mxu0 0.0
        %1077 = vmatprep.subr.mxu0 0.0
        %1078 = vmatpush2.msra.mxu0 0.0
        %1079 = vmatprep.subr.mxu0 0.0
        %1080 = vmatpush2.msra.mxu0 0.0
        %1081 = vmatprep.subr.mxu0 0.0
        %1082 = vmatpush2.msra.mxu0 0.0
        %1083 = vmatprep.mubr.f32.mxu0 0.0
        %1084 = vmatmul.mubr.f32.gmra.mxu0 %v1015
        %v1085 = vpop.f32.mrf.mxu0
        %v1086 = vadd.f32 0.0, %v1085
        %v1087 = vpop.f32.mrf.mxu0
        %1088 = vmatprep.mubr.f32.mxu0 0.0
        %1089 = vmatmul.mubr.f32.gmra.mxu0 %v1016
        %v1090 = vpop.f32.mrf.mxu0
        %v1091 = vadd.f32 0.0, %v1090
        %v1092 = vpop.f32.mrf.mxu0
        %1093 = vdwg.mxu0
        %v1094 = vadd.f32 %v970, %v1086
        %v1095 = vadd.f32 %v971, %v1091
        %s1096 = scalar_lea.vmem [#allocation4], 1024
        %v1097 = vld [vmem:[%s1096] sm:$0xff]
        %v1098 = vld [vmem:[%s1096 + $0x8] sm:$0xff]
        %v1099 = vld [vmem:[%s1096 + $0x10] sm:$0xff]
        %v1100 = vld [vmem:[%s1096 + $0x18] sm:$0xff]
        %v1101 = vld [vmem:[%s1096 + $0x20] sm:$0xff]
        %v1102 = vld [vmem:[%s1096 + $0x28] sm:$0xff]
        %v1103 = vld [vmem:[%s1096 + $0x30] sm:$0xff]
        %v1104 = vld [vmem:[%s1096 + $0x38] sm:$0xff]
        %v1105 = vld [vmem:[%s1096 + $0x40] sm:$0xff]
        %v1106 = vld [vmem:[%s1096 + $0x48] sm:$0xff]
        %v1107 = vld [vmem:[%s1096 + $0x50] sm:$0xff]
        %v1108 = vld [vmem:[%s1096 + $0x58] sm:$0xff]
        %v1109 = vld [vmem:[%s1096 + $0x60] sm:$0xff]
        %v1110 = vld [vmem:[%s1096 + $0x68] sm:$0xff]
        %v1111 = vld [vmem:[%s1096 + $0x70] sm:$0xff]
        %v1112 = vld [vmem:[%s1096 + $0x78] sm:$0xff]
        %1113 = vrot.lane.b32.xlu0 %v999, 112
        %v1114 = vpop.permute.xlu0 %1113
        %1115 = vrot.lane.b32.xlu0 %v1002, 112
        %v1116 = vpop.permute.xlu0 %1115
        %1117 = vrot.lane.b32.xlu0 %v1004, 112
        %v1118 = vpop.permute.xlu0 %1117
        %1119 = vrot.lane.b32.xlu0 %v1006, 112
        %v1120 = vpop.permute.xlu0 %1119
        %v1121 = vsel %vm442, %v1114, %v1116
        %v1122 = vsel %vm442, %v1118, %v1120
        %1125 = vmatprep.subr.mxu0 0.0
        %1126 = vmatpush1.msra.mxu0 %v1112
        %1127 = vmatprep.subr.mxu0 0.0
        %1128 = vmatpush1.msra.mxu0 %v1111
        %1129 = vmatprep.subr.mxu0 0.0
        %1130 = vmatpush1.msra.mxu0 %v1110
        %1131 = vmatprep.subr.mxu0 0.0
        %1132 = vmatpush1.msra.mxu0 %v1109
        %1133 = vmatprep.subr.mxu0 0.0
        %1134 = vmatpush1.msra.mxu0 %v1108
        %1135 = vmatprep.subr.mxu0 0.0
        %1136 = vmatpush1.msra.mxu0 %v1107
        %1137 = vmatprep.subr.mxu0 0.0
        %1138 = vmatpush1.msra.mxu0 %v1106
        %1139 = vmatprep.subr.mxu0 0.0
        %1140 = vmatpush1.msra.mxu0 %v1105
        %1141 = vmatprep.subr.mxu0 0.0
        %1142 = vmatpush1.msra.mxu0 %v1104
        %1143 = vmatprep.subr.mxu0 0.0
        %1144 = vmatpush1.msra.mxu0 %v1103
        %1145 = vmatprep.subr.mxu0 0.0
        %1146 = vmatpush1.msra.mxu0 %v1102
        %1147 = vmatprep.subr.mxu0 0.0
        %1148 = vmatpush1.msra.mxu0 %v1101
        %1149 = vmatprep.subr.mxu0 0.0
        %1150 = vmatpush1.msra.mxu0 %v1100
        %1151 = vmatprep.subr.mxu0 0.0
        %1152 = vmatpush1.msra.mxu0 %v1099
        %1153 = vmatprep.subr.mxu0 0.0
        %1154 = vmatpush1.msra.mxu0 %v1098
        %1155 = vmatprep.subr.mxu0 0.0
        %1156 = vmatpush1.msra.mxu0 %v1097
        %1157 = vmatprep.subr.mxu0 0.0
        %1158 = vmatpush2.msra.mxu0 0.0
        %1159 = vmatprep.subr.mxu0 0.0
        %1160 = vmatpush2.msra.mxu0 0.0
        %1161 = vmatprep.subr.mxu0 0.0
        %1162 = vmatpush2.msra.mxu0 0.0
        %1163 = vmatprep.subr.mxu0 0.0
        %1164 = vmatpush2.msra.mxu0 0.0
        %1165 = vmatprep.subr.mxu0 0.0
        %1166 = vmatpush2.msra.mxu0 0.0
        %1167 = vmatprep.subr.mxu0 0.0
        %1168 = vmatpush2.msra.mxu0 0.0
        %1169 = vmatprep.subr.mxu0 0.0
        %1170 = vmatpush2.msra.mxu0 0.0
        %1171 = vmatprep.subr.mxu0 0.0
        %1172 = vmatpush2.msra.mxu0 0.0
        %1173 = vmatprep.subr.mxu0 0.0
        %1174 = vmatpush2.msra.mxu0 0.0
        %1175 = vmatprep.subr.mxu0 0.0
        %1176 = vmatpush2.msra.mxu0 0.0
        %1177 = vmatprep.subr.mxu0 0.0
        %1178 = vmatpush2.msra.mxu0 0.0
        %1179 = vmatprep.subr.mxu0 0.0
        %1180 = vmatpush2.msra.mxu0 0.0
        %1181 = vmatprep.subr.mxu0 0.0
        %1182 = vmatpush2.msra.mxu0 0.0
        %1183 = vmatprep.subr.mxu0 0.0
        %1184 = vmatpush2.msra.mxu0 0.0
        %1185 = vmatprep.subr.mxu0 0.0
        %1186 = vmatpush2.msra.mxu0 0.0
        %1187 = vmatprep.subr.mxu0 0.0
        %1188 = vmatpush2.msra.mxu0 0.0
        %1189 = vmatprep.mubr.f32.mxu0 0.0
        %1190 = vmatmul.mubr.f32.gmra.mxu0 %v1121
        %v1191 = vpop.f32.mrf.mxu0
        %v1192 = vadd.f32 0.0, %v1191
        %v1193 = vpop.f32.mrf.mxu0
        %1194 = vmatprep.mubr.f32.mxu0 0.0
        %1195 = vmatmul.mubr.f32.gmra.mxu0 %v1122
        %v1196 = vpop.f32.mrf.mxu0
        %v1197 = vadd.f32 0.0, %v1196
        %v1198 = vpop.f32.mrf.mxu0
        %1199 = vdwg.mxu0
        %v1200 = vadd.f32 %v1094, %v1192
        %v1201 = vadd.f32 %v1095, %v1197
        %v1202 = vld [vmem:[#allocation6] sm:$0x1]
        %v1203 = vlaneseq
        %v1204 = vshrl.u32 %v1203, 7
        %v1205 = vsub.s32 0, %v1204
        %v1206 = vrot.slane %v1202, %v1205
        %v1207 = vadd.f32 %v1200, %v1206
        %v1208 = vadd.f32 %v1201, %v1206
        %vm1211 = vcmask 1040384
        %v1212 = vrot.slane %v1207, 7
        %v1213 = vrot.slane %v1208, 7
        %v1214 = vsel %vm1211, %v1212, %v1213
        %1215 = vrot.lane.b32.xlu0 %v1212, 8
        %v1216 = vpop.permute.xlu0 %1215
        %1217 = vrot.lane.b32.xlu0 %v1214, 8
        %v1218 = vpop.permute.xlu0 %1217
        %1219 = vrot.lane.b32.xlu0 %v1213, 8
        %v1220 = vpop.permute.xlu0 %1219
        %vm1224 = vcmask 1047617
        %1225 = vst.msk [vmem:[#allocation2] sm:$0xfe] %vm1224, %v1216
        %vm1226 = vcmask 64513
        %1227 = vst.msk [vmem:[#allocation2 + $0x8] sm:$0xfe] %vm1226, %v1216
        %vm1228 = vcmask 1047616
        %1229 = vst.msk [vmem:[#allocation2 + $0x10] sm:$0xff] %vm1228, %v1218
        %vm1230 = vcmask 64512
        %1231 = vst.msk [vmem:[#allocation2 + $0x18] sm:$0xff] %vm1230, %v1218
        %vm1232 = vcmask 1040448
        %1233 = vst.msk [vmem:[#allocation2 + $0x20] sm:$0x1] %vm1232, %v1220
        %vm1234 = vcmask 57344
        %1235 = vst.msk [vmem:[#allocation2 + $0x28] sm:$0x1] %vm1234, %v1220
        %v1236 = vld [vmem:[#allocation2] sm:$0xff]
        %v1237 = vld [vmem:[#allocation2 + $0x10] sm:$0xff]
        %s1238 = scalar_lea.vmem [#allocation4], 1152
        %v1239 = vld [vmem:[%s1238] sm:$0xff]
        %v1240 = vld [vmem:[%s1238 + $0x8] sm:$0xff]
        %v1241 = vld [vmem:[%s1238 + $0x10] sm:$0xff]
        %v1242 = vld [vmem:[%s1238 + $0x18] sm:$0xff]
        %v1243 = vld [vmem:[%s1238 + $0x20] sm:$0xff]
        %v1244 = vld [vmem:[%s1238 + $0x28] sm:$0xff]
        %v1245 = vld [vmem:[%s1238 + $0x30] sm:$0xff]
        %v1246 = vld [vmem:[%s1238 + $0x38] sm:$0xff]
        %v1247 = vld [vmem:[%s1238 + $0x40] sm:$0xff]
        %v1248 = vld [vmem:[%s1238 + $0x48] sm:$0xff]
        %v1249 = vld [vmem:[%s1238 + $0x50] sm:$0xff]
        %v1250 = vld [vmem:[%s1238 + $0x58] sm:$0xff]
        %v1251 = vld [vmem:[%s1238 + $0x60] sm:$0xff]
        %v1252 = vld [vmem:[%s1238 + $0x68] sm:$0xff]
        %v1253 = vld [vmem:[%s1238 + $0x70] sm:$0xff]
        %v1254 = vld [vmem:[%s1238 + $0x78] sm:$0xff]
        %v1255 = vld [vmem:[#allocation2 + $0x8] sm:$0xff]
        %v1256 = vld [vmem:[#allocation2 + $0x18] sm:$0xff]
        %s1257 = scalar_lea.vmem [#allocation4], 1280
        %v1258 = vld [vmem:[%s1257] sm:$0xff]
        %v1259 = vld [vmem:[%s1257 + $0x8] sm:$0xff]
        %v1260 = vld [vmem:[%s1257 + $0x10] sm:$0xff]
        %v1261 = vld [vmem:[%s1257 + $0x18] sm:$0xff]
        %v1262 = vld [vmem:[%s1257 + $0x20] sm:$0xff]
        %v1263 = vld [vmem:[%s1257 + $0x28] sm:$0xff]
        %v1264 = vld [vmem:[%s1257 + $0x30] sm:$0xff]
        %v1265 = vld [vmem:[%s1257 + $0x38] sm:$0xff]
        %v1266 = vld [vmem:[%s1257 + $0x40] sm:$0xff]
        %v1267 = vld [vmem:[%s1257 + $0x48] sm:$0xff]
        %v1268 = vld [vmem:[%s1257 + $0x50] sm:$0xff]
        %v1269 = vld [vmem:[%s1257 + $0x58] sm:$0xff]
        %v1270 = vld [vmem:[%s1257 + $0x60] sm:$0xff]
        %v1271 = vld [vmem:[%s1257 + $0x68] sm:$0xff]
        %v1272 = vld [vmem:[%s1257 + $0x70] sm:$0xff]
        %v1273 = vld [vmem:[%s1257 + $0x78] sm:$0xff]
        %1278 = vrot.lane.b32.xlu0 %v1236, 120
        %v1279 = vpop.permute.xlu0 %1278
        %1280 = vrot.lane.b32.xlu0 %v1255, 120
        %v1281 = vpop.permute.xlu0 %1280
        %1282 = vrot.lane.b32.xlu0 %v1237, 120
        %v1283 = vpop.permute.xlu0 %1282
        %1284 = vrot.lane.b32.xlu0 %v1256, 120
        %v1285 = vpop.permute.xlu0 %1284
        %v1286 = vsel %vm262, %v1279, %v1281
        %v1287 = vsel %vm262, %v1283, %v1285
        %1290 = vmatprep.subr.mxu0 0.0
        %1291 = vmatpush1.msra.mxu0 %v1273
        %1292 = vmatprep.subr.mxu0 0.0
        %1293 = vmatpush1.msra.mxu0 %v1272
        %1294 = vmatprep.subr.mxu0 0.0
        %1295 = vmatpush1.msra.mxu0 %v1271
        %1296 = vmatprep.subr.mxu0 0.0
        %1297 = vmatpush1.msra.mxu0 %v1270
        %1298 = vmatprep.subr.mxu0 0.0
        %1299 = vmatpush1.msra.mxu0 %v1269
        %1300 = vmatprep.subr.mxu0 0.0
        %1301 = vmatpush1.msra.mxu0 %v1268
        %1302 = vmatprep.subr.mxu0 0.0
        %1303 = vmatpush1.msra.mxu0 %v1267
        %1304 = vmatprep.subr.mxu0 0.0
        %1305 = vmatpush1.msra.mxu0 %v1266
        %1306 = vmatprep.subr.mxu0 0.0
        %1307 = vmatpush1.msra.mxu0 %v1265
        %1308 = vmatprep.subr.mxu0 0.0
        %1309 = vmatpush1.msra.mxu0 %v1264
        %1310 = vmatprep.subr.mxu0 0.0
        %1311 = vmatpush1.msra.mxu0 %v1263
        %1312 = vmatprep.subr.mxu0 0.0
        %1313 = vmatpush1.msra.mxu0 %v1262
        %1314 = vmatprep.subr.mxu0 0.0
        %1315 = vmatpush1.msra.mxu0 %v1261
        %1316 = vmatprep.subr.mxu0 0.0
        %1317 = vmatpush1.msra.mxu0 %v1260
        %1318 = vmatprep.subr.mxu0 0.0
        %1319 = vmatpush1.msra.mxu0 %v1259
        %1320 = vmatprep.subr.mxu0 0.0
        %1321 = vmatpush1.msra.mxu0 %v1258
        %1322 = vmatprep.subr.mxu0 0.0
        %1323 = vmatpush2.msra.mxu0 0.0
        %1324 = vmatprep.subr.mxu0 0.0
        %1325 = vmatpush2.msra.mxu0 0.0
        %1326 = vmatprep.subr.mxu0 0.0
        %1327 = vmatpush2.msra.mxu0 0.0
        %1328 = vmatprep.subr.mxu0 0.0
        %1329 = vmatpush2.msra.mxu0 0.0
        %1330 = vmatprep.subr.mxu0 0.0
        %1331 = vmatpush2.msra.mxu0 0.0
        %1332 = vmatprep.subr.mxu0 0.0
        %1333 = vmatpush2.msra.mxu0 0.0
        %1334 = vmatprep.subr.mxu0 0.0
        %1335 = vmatpush2.msra.mxu0 0.0
        %1336 = vmatprep.subr.mxu0 0.0
        %1337 = vmatpush2.msra.mxu0 0.0
        %1338 = vmatprep.subr.mxu0 0.0
        %1339 = vmatpush2.msra.mxu0 0.0
        %1340 = vmatprep.subr.mxu0 0.0
        %1341 = vmatpush2.msra.mxu0 0.0
        %1342 = vmatprep.subr.mxu0 0.0
        %1343 = vmatpush2.msra.mxu0 0.0
        %1344 = vmatprep.subr.mxu0 0.0
        %1345 = vmatpush2.msra.mxu0 0.0
        %1346 = vmatprep.subr.mxu0 0.0
        %1347 = vmatpush2.msra.mxu0 0.0
        %1348 = vmatprep.subr.mxu0 0.0
        %1349 = vmatpush2.msra.mxu0 0.0
        %1350 = vmatprep.subr.mxu0 0.0
        %1351 = vmatpush2.msra.mxu0 0.0
        %1352 = vmatprep.subr.mxu0 0.0
        %1353 = vmatpush2.msra.mxu0 0.0
        %1354 = vmatprep.mubr.f32.mxu0 0.0
        %1355 = vmatmul.mubr.f32.gmra.mxu0 %v1286
        %v1356 = vpop.f32.mrf.mxu0
        %v1357 = vadd.f32 0.0, %v1356
        %v1358 = vpop.f32.mrf.mxu0
        %1359 = vmatprep.mubr.f32.mxu0 0.0
        %1360 = vmatmul.mubr.f32.gmra.mxu0 %v1287
        %v1361 = vpop.f32.mrf.mxu0
        %v1362 = vadd.f32 0.0, %v1361
        %v1363 = vpop.f32.mrf.mxu0
        %1364 = vdwg.mxu0
        %1365 = vmatprep.subr.mxu0 0.0
        %1366 = vmatpush1.msra.mxu0 %v1254
        %1367 = vmatprep.subr.mxu0 0.0
        %1368 = vmatpush1.msra.mxu0 %v1253
        %1369 = vmatprep.subr.mxu0 0.0
        %1370 = vmatpush1.msra.mxu0 %v1252
        %1371 = vmatprep.subr.mxu0 0.0
        %1372 = vmatpush1.msra.mxu0 %v1251
        %1373 = vmatprep.subr.mxu0 0.0
        %1374 = vmatpush1.msra.mxu0 %v1250
        %1375 = vmatprep.subr.mxu0 0.0
        %1376 = vmatpush1.msra.mxu0 %v1249
        %1377 = vmatprep.subr.mxu0 0.0
        %1378 = vmatpush1.msra.mxu0 %v1248
        %1379 = vmatprep.subr.mxu0 0.0
        %1380 = vmatpush1.msra.mxu0 %v1247
        %1381 = vmatprep.subr.mxu0 0.0
        %1382 = vmatpush1.msra.mxu0 %v1246
        %1383 = vmatprep.subr.mxu0 0.0
        %1384 = vmatpush1.msra.mxu0 %v1245
        %1385 = vmatprep.subr.mxu0 0.0
        %1386 = vmatpush1.msra.mxu0 %v1244
        %1387 = vmatprep.subr.mxu0 0.0
        %1388 = vmatpush1.msra.mxu0 %v1243
        %1389 = vmatprep.subr.mxu0 0.0
        %1390 = vmatpush1.msra.mxu0 %v1242
        %1391 = vmatprep.subr.mxu0 0.0
        %1392 = vmatpush1.msra.mxu0 %v1241
        %1393 = vmatprep.subr.mxu0 0.0
        %1394 = vmatpush1.msra.mxu0 %v1240
        %1395 = vmatprep.subr.mxu0 0.0
        %1396 = vmatpush1.msra.mxu0 %v1239
        %1397 = vmatprep.subr.mxu0 0.0
        %1398 = vmatpush2.msra.mxu0 0.0
        %1399 = vmatprep.subr.mxu0 0.0
        %1400 = vmatpush2.msra.mxu0 0.0
        %1401 = vmatprep.subr.mxu0 0.0
        %1402 = vmatpush2.msra.mxu0 0.0
        %1403 = vmatprep.subr.mxu0 0.0
        %1404 = vmatpush2.msra.mxu0 0.0
        %1405 = vmatprep.subr.mxu0 0.0
        %1406 = vmatpush2.msra.mxu0 0.0
        %1407 = vmatprep.subr.mxu0 0.0
        %1408 = vmatpush2.msra.mxu0 0.0
        %1409 = vmatprep.subr.mxu0 0.0
        %1410 = vmatpush2.msra.mxu0 0.0
        %1411 = vmatprep.subr.mxu0 0.0
        %1412 = vmatpush2.msra.mxu0 0.0
        %1413 = vmatprep.subr.mxu0 0.0
        %1414 = vmatpush2.msra.mxu0 0.0
        %1415 = vmatprep.subr.mxu0 0.0
        %1416 = vmatpush2.msra.mxu0 0.0
        %1417 = vmatprep.subr.mxu0 0.0
        %1418 = vmatpush2.msra.mxu0 0.0
        %1419 = vmatprep.subr.mxu0 0.0
        %1420 = vmatpush2.msra.mxu0 0.0
        %1421 = vmatprep.subr.mxu0 0.0
        %1422 = vmatpush2.msra.mxu0 0.0
        %1423 = vmatprep.subr.mxu0 0.0
        %1424 = vmatpush2.msra.mxu0 0.0
        %1425 = vmatprep.subr.mxu0 0.0
        %1426 = vmatpush2.msra.mxu0 0.0
        %1427 = vmatprep.subr.mxu0 0.0
        %1428 = vmatpush2.msra.mxu0 0.0
        %1429 = vmatprep.mubr.f32.mxu0 0.0
        %1430 = vmatmul.mubr.f32.gmra.mxu0 %v1236
        %v1431 = vpop.f32.mrf.mxu0
        %v1432 = vadd.f32 %v1357, %v1431
        %v1433 = vpop.f32.mrf.mxu0
        %1434 = vmatprep.mubr.f32.mxu0 0.0
        %1435 = vmatmul.mubr.f32.gmra.mxu0 %v1237
        %v1436 = vpop.f32.mrf.mxu0
        %v1437 = vadd.f32 %v1362, %v1436
        %v1438 = vpop.f32.mrf.mxu0
        %1439 = vdwg.mxu0
        %s1440 = scalar_lea.vmem [#allocation4], 1408
        %v1441 = vld [vmem:[%s1440] sm:$0xff]
        %v1442 = vld [vmem:[%s1440 + $0x8] sm:$0xff]
        %v1443 = vld [vmem:[%s1440 + $0x10] sm:$0xff]
        %v1444 = vld [vmem:[%s1440 + $0x18] sm:$0xff]
        %v1445 = vld [vmem:[%s1440 + $0x20] sm:$0xff]
        %v1446 = vld [vmem:[%s1440 + $0x28] sm:$0xff]
        %v1447 = vld [vmem:[%s1440 + $0x30] sm:$0xff]
        %v1448 = vld [vmem:[%s1440 + $0x38] sm:$0xff]
        %v1449 = vld [vmem:[%s1440 + $0x40] sm:$0xff]
        %v1450 = vld [vmem:[%s1440 + $0x48] sm:$0xff]
        %v1451 = vld [vmem:[%s1440 + $0x50] sm:$0xff]
        %v1452 = vld [vmem:[%s1440 + $0x58] sm:$0xff]
        %v1453 = vld [vmem:[%s1440 + $0x60] sm:$0xff]
        %v1454 = vld [vmem:[%s1440 + $0x68] sm:$0xff]
        %v1455 = vld [vmem:[%s1440 + $0x70] sm:$0xff]
        %v1456 = vld [vmem:[%s1440 + $0x78] sm:$0xff]
        %1457 = vrot.lane.b32.xlu0 %v1236, 112
        %v1458 = vpop.permute.xlu0 %1457
        %1459 = vrot.lane.b32.xlu0 %v1255, 112
        %v1460 = vpop.permute.xlu0 %1459
        %1461 = vrot.lane.b32.xlu0 %v1237, 112
        %v1462 = vpop.permute.xlu0 %1461
        %1463 = vrot.lane.b32.xlu0 %v1256, 112
        %v1464 = vpop.permute.xlu0 %1463
        %v1465 = vsel %vm442, %v1458, %v1460
        %v1466 = vsel %vm442, %v1462, %v1464
        %1469 = vmatprep.subr.mxu0 0.0
        %1470 = vmatpush1.msra.mxu0 %v1456
        %1471 = vmatprep.subr.mxu0 0.0
        %1472 = vmatpush1.msra.mxu0 %v1455
        %1473 = vmatprep.subr.mxu0 0.0
        %1474 = vmatpush1.msra.mxu0 %v1454
        %1475 = vmatprep.subr.mxu0 0.0
        %1476 = vmatpush1.msra.mxu0 %v1453
        %1477 = vmatprep.subr.mxu0 0.0
        %1478 = vmatpush1.msra.mxu0 %v1452
        %1479 = vmatprep.subr.mxu0 0.0
        %1480 = vmatpush1.msra.mxu0 %v1451
        %1481 = vmatprep.subr.mxu0 0.0
        %1482 = vmatpush1.msra.mxu0 %v1450
        %1483 = vmatprep.subr.mxu0 0.0
        %1484 = vmatpush1.msra.mxu0 %v1449
        %1485 = vmatprep.subr.mxu0 0.0
        %1486 = vmatpush1.msra.mxu0 %v1448
        %1487 = vmatprep.subr.mxu0 0.0
        %1488 = vmatpush1.msra.mxu0 %v1447
        %1489 = vmatprep.subr.mxu0 0.0
        %1490 = vmatpush1.msra.mxu0 %v1446
        %1491 = vmatprep.subr.mxu0 0.0
        %1492 = vmatpush1.msra.mxu0 %v1445
        %1493 = vmatprep.subr.mxu0 0.0
        %1494 = vmatpush1.msra.mxu0 %v1444
        %1495 = vmatprep.subr.mxu0 0.0
        %1496 = vmatpush1.msra.mxu0 %v1443
        %1497 = vmatprep.subr.mxu0 0.0
        %1498 = vmatpush1.msra.mxu0 %v1442
        %1499 = vmatprep.subr.mxu0 0.0
        %1500 = vmatpush1.msra.mxu0 %v1441
        %1501 = vmatprep.subr.mxu0 0.0
        %1502 = vmatpush2.msra.mxu0 0.0
        %1503 = vmatprep.subr.mxu0 0.0
        %1504 = vmatpush2.msra.mxu0 0.0
        %1505 = vmatprep.subr.mxu0 0.0
        %1506 = vmatpush2.msra.mxu0 0.0
        %1507 = vmatprep.subr.mxu0 0.0
        %1508 = vmatpush2.msra.mxu0 0.0
        %1509 = vmatprep.subr.mxu0 0.0
        %1510 = vmatpush2.msra.mxu0 0.0
        %1511 = vmatprep.subr.mxu0 0.0
        %1512 = vmatpush2.msra.mxu0 0.0
        %1513 = vmatprep.subr.mxu0 0.0
        %1514 = vmatpush2.msra.mxu0 0.0
        %1515 = vmatprep.subr.mxu0 0.0
        %1516 = vmatpush2.msra.mxu0 0.0
        %1517 = vmatprep.subr.mxu0 0.0
        %1518 = vmatpush2.msra.mxu0 0.0
        %1519 = vmatprep.subr.mxu0 0.0
        %1520 = vmatpush2.msra.mxu0 0.0
        %1521 = vmatprep.subr.mxu0 0.0
        %1522 = vmatpush2.msra.mxu0 0.0
        %1523 = vmatprep.subr.mxu0 0.0
        %1524 = vmatpush2.msra.mxu0 0.0
        %1525 = vmatprep.subr.mxu0 0.0
        %1526 = vmatpush2.msra.mxu0 0.0
        %1527 = vmatprep.subr.mxu0 0.0
        %1528 = vmatpush2.msra.mxu0 0.0
        %1529 = vmatprep.subr.mxu0 0.0
        %1530 = vmatpush2.msra.mxu0 0.0
        %1531 = vmatprep.subr.mxu0 0.0
        %1532 = vmatpush2.msra.mxu0 0.0
        %1533 = vmatprep.mubr.f32.mxu0 0.0
        %1534 = vmatmul.mubr.f32.gmra.mxu0 %v1465
        %v1535 = vpop.f32.mrf.mxu0
        %v1536 = vadd.f32 0.0, %v1535
        %v1537 = vpop.f32.mrf.mxu0
        %1538 = vmatprep.mubr.f32.mxu0 0.0
        %1539 = vmatmul.mubr.f32.gmra.mxu0 %v1466
        %v1540 = vpop.f32.mrf.mxu0
        %v1541 = vadd.f32 0.0, %v1540
        %v1542 = vpop.f32.mrf.mxu0
        %1543 = vdwg.mxu0
        %v1544 = vadd.f32 %v1432, %v1536
        %v1545 = vadd.f32 %v1437, %v1541
        %v1546 = vld [vmem:[#allocation2] sm:$0xfe]
        %v1547 = vld [vmem:[#allocation2 + $0x10] sm:$0xff]
        %v1548 = vld [vmem:[#allocation2 + $0x20] sm:$0x1]
        %s1549 = scalar_lea.vmem [#allocation4], 1536
        %v1550 = vld [vmem:[%s1549] sm:$0xff]
        %v1551 = vld [vmem:[%s1549 + $0x8] sm:$0xff]
        %v1552 = vld [vmem:[%s1549 + $0x10] sm:$0xff]
        %v1553 = vld [vmem:[%s1549 + $0x18] sm:$0xff]
        %v1554 = vld [vmem:[%s1549 + $0x20] sm:$0xff]
        %v1555 = vld [vmem:[%s1549 + $0x28] sm:$0xff]
        %v1556 = vld [vmem:[%s1549 + $0x30] sm:$0xff]
        %v1557 = vld [vmem:[%s1549 + $0x38] sm:$0xff]
        %v1558 = vld [vmem:[%s1549 + $0x40] sm:$0xff]
        %v1559 = vld [vmem:[%s1549 + $0x48] sm:$0xff]
        %v1560 = vld [vmem:[%s1549 + $0x50] sm:$0xff]
        %v1561 = vld [vmem:[%s1549 + $0x58] sm:$0xff]
        %v1562 = vld [vmem:[%s1549 + $0x60] sm:$0xff]
        %v1563 = vld [vmem:[%s1549 + $0x68] sm:$0xff]
        %v1564 = vld [vmem:[%s1549 + $0x70] sm:$0xff]
        %v1565 = vld [vmem:[%s1549 + $0x78] sm:$0xff]
        %v1569 = vrot.slane %v1546, 1
        %v1570 = vrot.slane %v1547, 1
        %v1571 = vsel %vm547, %v1569, %v1570
        %v1572 = vrot.slane %v1548, 1
        %v1573 = vsel %vm547, %v1570, %v1572
        %1576 = vmatprep.subr.mxu0 0.0
        %1577 = vmatpush1.msra.mxu0 %v1565
        %1578 = vmatprep.subr.mxu0 0.0
        %1579 = vmatpush1.msra.mxu0 %v1564
        %1580 = vmatprep.subr.mxu0 0.0
        %1581 = vmatpush1.msra.mxu0 %v1563
        %1582 = vmatprep.subr.mxu0 0.0
        %1583 = vmatpush1.msra.mxu0 %v1562
        %1584 = vmatprep.subr.mxu0 0.0
        %1585 = vmatpush1.msra.mxu0 %v1561
        %1586 = vmatprep.subr.mxu0 0.0
        %1587 = vmatpush1.msra.mxu0 %v1560
        %1588 = vmatprep.subr.mxu0 0.0
        %1589 = vmatpush1.msra.mxu0 %v1559
        %1590 = vmatprep.subr.mxu0 0.0
        %1591 = vmatpush1.msra.mxu0 %v1558
        %1592 = vmatprep.subr.mxu0 0.0
        %1593 = vmatpush1.msra.mxu0 %v1557
        %1594 = vmatprep.subr.mxu0 0.0
        %1595 = vmatpush1.msra.mxu0 %v1556
        %1596 = vmatprep.subr.mxu0 0.0
        %1597 = vmatpush1.msra.mxu0 %v1555
        %1598 = vmatprep.subr.mxu0 0.0
        %1599 = vmatpush1.msra.mxu0 %v1554
        %1600 = vmatprep.subr.mxu0 0.0
        %1601 = vmatpush1.msra.mxu0 %v1553
        %1602 = vmatprep.subr.mxu0 0.0
        %1603 = vmatpush1.msra.mxu0 %v1552
        %1604 = vmatprep.subr.mxu0 0.0
        %1605 = vmatpush1.msra.mxu0 %v1551
        %1606 = vmatprep.subr.mxu0 0.0
        %1607 = vmatpush1.msra.mxu0 %v1550
        %1608 = vmatprep.subr.mxu0 0.0
        %1609 = vmatpush2.msra.mxu0 0.0
        %1610 = vmatprep.subr.mxu0 0.0
        %1611 = vmatpush2.msra.mxu0 0.0
        %1612 = vmatprep.subr.mxu0 0.0
        %1613 = vmatpush2.msra.mxu0 0.0
        %1614 = vmatprep.subr.mxu0 0.0
        %1615 = vmatpush2.msra.mxu0 0.0
        %1616 = vmatprep.subr.mxu0 0.0
        %1617 = vmatpush2.msra.mxu0 0.0
        %1618 = vmatprep.subr.mxu0 0.0
        %1619 = vmatpush2.msra.mxu0 0.0
        %1620 = vmatprep.subr.mxu0 0.0
        %1621 = vmatpush2.msra.mxu0 0.0
        %1622 = vmatprep.subr.mxu0 0.0
        %1623 = vmatpush2.msra.mxu0 0.0
        %1624 = vmatprep.subr.mxu0 0.0
        %1625 = vmatpush2.msra.mxu0 0.0
        %1626 = vmatprep.subr.mxu0 0.0
        %1627 = vmatpush2.msra.mxu0 0.0
        %1628 = vmatprep.subr.mxu0 0.0
        %1629 = vmatpush2.msra.mxu0 0.0
        %1630 = vmatprep.subr.mxu0 0.0
        %1631 = vmatpush2.msra.mxu0 0.0
        %1632 = vmatprep.subr.mxu0 0.0
        %1633 = vmatpush2.msra.mxu0 0.0
        %1634 = vmatprep.subr.mxu0 0.0
        %1635 = vmatpush2.msra.mxu0 0.0
        %1636 = vmatprep.subr.mxu0 0.0
        %1637 = vmatpush2.msra.mxu0 0.0
        %1638 = vmatprep.subr.mxu0 0.0
        %1639 = vmatpush2.msra.mxu0 0.0
        %1640 = vmatprep.mubr.f32.mxu0 0.0
        %1641 = vmatmul.mubr.f32.gmra.mxu0 %v1571
        %v1642 = vpop.f32.mrf.mxu0
        %v1643 = vadd.f32 0.0, %v1642
        %v1644 = vpop.f32.mrf.mxu0
        %1645 = vmatprep.mubr.f32.mxu0 0.0
        %1646 = vmatmul.mubr.f32.gmra.mxu0 %v1573
        %v1647 = vpop.f32.mrf.mxu0
        %v1648 = vadd.f32 0.0, %v1647
        %v1649 = vpop.f32.mrf.mxu0
        %1650 = vdwg.mxu0
        %v1651 = vadd.f32 %v1544, %v1643
        %v1652 = vadd.f32 %v1545, %v1648
        %v1653 = vld [vmem:[#allocation2] sm:$0xfe]
        %v1654 = vld [vmem:[#allocation2 + $0x8] sm:$0xfe]
        %v1655 = vld [vmem:[#allocation2 + $0x10] sm:$0xff]
        %v1656 = vld [vmem:[#allocation2 + $0x18] sm:$0xff]
        %v1657 = vld [vmem:[#allocation2 + $0x20] sm:$0x1]
        %v1658 = vld [vmem:[#allocation2 + $0x28] sm:$0x1]
        %s1659 = scalar_lea.vmem [#allocation4], 1664
        %v1660 = vld [vmem:[%s1659] sm:$0xff]
        %v1661 = vld [vmem:[%s1659 + $0x8] sm:$0xff]
        %v1662 = vld [vmem:[%s1659 + $0x10] sm:$0xff]
        %v1663 = vld [vmem:[%s1659 + $0x18] sm:$0xff]
        %v1664 = vld [vmem:[%s1659 + $0x20] sm:$0xff]
        %v1665 = vld [vmem:[%s1659 + $0x28] sm:$0xff]
        %v1666 = vld [vmem:[%s1659 + $0x30] sm:$0xff]
        %v1667 = vld [vmem:[%s1659 + $0x38] sm:$0xff]
        %v1668 = vld [vmem:[%s1659 + $0x40] sm:$0xff]
        %v1669 = vld [vmem:[%s1659 + $0x48] sm:$0xff]
        %v1670 = vld [vmem:[%s1659 + $0x50] sm:$0xff]
        %v1671 = vld [vmem:[%s1659 + $0x58] sm:$0xff]
        %v1672 = vld [vmem:[%s1659 + $0x60] sm:$0xff]
        %v1673 = vld [vmem:[%s1659 + $0x68] sm:$0xff]
        %v1674 = vld [vmem:[%s1659 + $0x70] sm:$0xff]
        %v1675 = vld [vmem:[%s1659 + $0x78] sm:$0xff]
        %v1682 = vrot.slane %v1653, 1
        %v1683 = vrot.slane %v1655, 1
        %v1684 = vsel %vm547, %v1682, %v1683
        %v1685 = vrot.slane %v1654, 1
        %v1686 = vrot.slane %v1656, 1
        %v1687 = vsel %vm547, %v1685, %v1686
        %v1688 = vrot.slane %v1657, 1
        %v1689 = vsel %vm547, %v1683, %v1688
        %v1690 = vrot.slane %v1658, 1
        %v1691 = vsel %vm547, %v1686, %v1690
        %1692 = vrot.lane.b32.xlu0 %v1684, 120
        %v1693 = vpop.permute.xlu0 %1692
        %1694 = vrot.lane.b32.xlu0 %v1687, 120
        %v1695 = vpop.permute.xlu0 %1694
        %1696 = vrot.lane.b32.xlu0 %v1689, 120
        %v1697 = vpop.permute.xlu0 %1696
        %1698 = vrot.lane.b32.xlu0 %v1691, 120
        %v1699 = vpop.permute.xlu0 %1698
        %v1700 = vsel %vm262, %v1693, %v1695
        %v1701 = vsel %vm262, %v1697, %v1699
        %1704 = vmatprep.subr.mxu0 0.0
        %1705 = vmatpush1.msra.mxu0 %v1675
        %1706 = vmatprep.subr.mxu0 0.0
        %1707 = vmatpush1.msra.mxu0 %v1674
        %1708 = vmatprep.subr.mxu0 0.0
        %1709 = vmatpush1.msra.mxu0 %v1673
        %1710 = vmatprep.subr.mxu0 0.0
        %1711 = vmatpush1.msra.mxu0 %v1672
        %1712 = vmatprep.subr.mxu0 0.0
        %1713 = vmatpush1.msra.mxu0 %v1671
        %1714 = vmatprep.subr.mxu0 0.0
        %1715 = vmatpush1.msra.mxu0 %v1670
        %1716 = vmatprep.subr.mxu0 0.0
        %1717 = vmatpush1.msra.mxu0 %v1669
        %1718 = vmatprep.subr.mxu0 0.0
        %1719 = vmatpush1.msra.mxu0 %v1668
        %1720 = vmatprep.subr.mxu0 0.0
        %1721 = vmatpush1.msra.mxu0 %v1667
        %1722 = vmatprep.subr.mxu0 0.0
        %1723 = vmatpush1.msra.mxu0 %v1666
        %1724 = vmatprep.subr.mxu0 0.0
        %1725 = vmatpush1.msra.mxu0 %v1665
        %1726 = vmatprep.subr.mxu0 0.0
        %1727 = vmatpush1.msra.mxu0 %v1664
        %1728 = vmatprep.subr.mxu0 0.0
        %1729 = vmatpush1.msra.mxu0 %v1663
        %1730 = vmatprep.subr.mxu0 0.0
        %1731 = vmatpush1.msra.mxu0 %v1662
        %1732 = vmatprep.subr.mxu0 0.0
        %1733 = vmatpush1.msra.mxu0 %v1661
        %1734 = vmatprep.subr.mxu0 0.0
        %1735 = vmatpush1.msra.mxu0 %v1660
        %1736 = vmatprep.subr.mxu0 0.0
        %1737 = vmatpush2.msra.mxu0 0.0
        %1738 = vmatprep.subr.mxu0 0.0
        %1739 = vmatpush2.msra.mxu0 0.0
        %1740 = vmatprep.subr.mxu0 0.0
        %1741 = vmatpush2.msra.mxu0 0.0
        %1742 = vmatprep.subr.mxu0 0.0
        %1743 = vmatpush2.msra.mxu0 0.0
        %1744 = vmatprep.subr.mxu0 0.0
        %1745 = vmatpush2.msra.mxu0 0.0
        %1746 = vmatprep.subr.mxu0 0.0
        %1747 = vmatpush2.msra.mxu0 0.0
        %1748 = vmatprep.subr.mxu0 0.0
        %1749 = vmatpush2.msra.mxu0 0.0
        %1750 = vmatprep.subr.mxu0 0.0
        %1751 = vmatpush2.msra.mxu0 0.0
        %1752 = vmatprep.subr.mxu0 0.0
        %1753 = vmatpush2.msra.mxu0 0.0
        %1754 = vmatprep.subr.mxu0 0.0
        %1755 = vmatpush2.msra.mxu0 0.0
        %1756 = vmatprep.subr.mxu0 0.0
        %1757 = vmatpush2.msra.mxu0 0.0
        %1758 = vmatprep.subr.mxu0 0.0
        %1759 = vmatpush2.msra.mxu0 0.0
        %1760 = vmatprep.subr.mxu0 0.0
        %1761 = vmatpush2.msra.mxu0 0.0
        %1762 = vmatprep.subr.mxu0 0.0
        %1763 = vmatpush2.msra.mxu0 0.0
        %1764 = vmatprep.subr.mxu0 0.0
        %1765 = vmatpush2.msra.mxu0 0.0
        %1766 = vmatprep.subr.mxu0 0.0
        %1767 = vmatpush2.msra.mxu0 0.0
        %1768 = vmatprep.mubr.f32.mxu0 0.0
        %1769 = vmatmul.mubr.f32.gmra.mxu0 %v1700
        %v1770 = vpop.f32.mrf.mxu0
        %v1771 = vadd.f32 0.0, %v1770
        %v1772 = vpop.f32.mrf.mxu0
        %1773 = vmatprep.mubr.f32.mxu0 0.0
        %1774 = vmatmul.mubr.f32.gmra.mxu0 %v1701
        %v1775 = vpop.f32.mrf.mxu0
        %v1776 = vadd.f32 0.0, %v1775
        %v1777 = vpop.f32.mrf.mxu0
        %1778 = vdwg.mxu0
        %v1779 = vadd.f32 %v1651, %v1771
        %v1780 = vadd.f32 %v1652, %v1776
        %s1781 = scalar_lea.vmem [#allocation4], 1792
        %v1782 = vld [vmem:[%s1781] sm:$0xff]
        %v1783 = vld [vmem:[%s1781 + $0x8] sm:$0xff]
        %v1784 = vld [vmem:[%s1781 + $0x10] sm:$0xff]
        %v1785 = vld [vmem:[%s1781 + $0x18] sm:$0xff]
        %v1786 = vld [vmem:[%s1781 + $0x20] sm:$0xff]
        %v1787 = vld [vmem:[%s1781 + $0x28] sm:$0xff]
        %v1788 = vld [vmem:[%s1781 + $0x30] sm:$0xff]
        %v1789 = vld [vmem:[%s1781 + $0x38] sm:$0xff]
        %v1790 = vld [vmem:[%s1781 + $0x40] sm:$0xff]
        %v1791 = vld [vmem:[%s1781 + $0x48] sm:$0xff]
        %v1792 = vld [vmem:[%s1781 + $0x50] sm:$0xff]
        %v1793 = vld [vmem:[%s1781 + $0x58] sm:$0xff]
        %v1794 = vld [vmem:[%s1781 + $0x60] sm:$0xff]
        %v1795 = vld [vmem:[%s1781 + $0x68] sm:$0xff]
        %v1796 = vld [vmem:[%s1781 + $0x70] sm:$0xff]
        %v1797 = vld [vmem:[%s1781 + $0x78] sm:$0xff]
        %1798 = vrot.lane.b32.xlu0 %v1684, 112
        %v1799 = vpop.permute.xlu0 %1798
        %1800 = vrot.lane.b32.xlu0 %v1687, 112
        %v1801 = vpop.permute.xlu0 %1800
        %1802 = vrot.lane.b32.xlu0 %v1689, 112
        %v1803 = vpop.permute.xlu0 %1802
        %1804 = vrot.lane.b32.xlu0 %v1691, 112
        %v1805 = vpop.permute.xlu0 %1804
        %v1806 = vsel %vm442, %v1799, %v1801
        %v1807 = vsel %vm442, %v1803, %v1805
        %1810 = vmatprep.subr.mxu0 0.0
        %1811 = vmatpush1.msra.mxu0 %v1797
        %1812 = vmatprep.subr.mxu0 0.0
        %1813 = vmatpush1.msra.mxu0 %v1796
        %1814 = vmatprep.subr.mxu0 0.0
        %1815 = vmatpush1.msra.mxu0 %v1795
        %1816 = vmatprep.subr.mxu0 0.0
        %1817 = vmatpush1.msra.mxu0 %v1794
        %1818 = vmatprep.subr.mxu0 0.0
        %1819 = vmatpush1.msra.mxu0 %v1793
        %1820 = vmatprep.subr.mxu0 0.0
        %1821 = vmatpush1.msra.mxu0 %v1792
        %1822 = vmatprep.subr.mxu0 0.0
        %1823 = vmatpush1.msra.mxu0 %v1791
        %1824 = vmatprep.subr.mxu0 0.0
        %1825 = vmatpush1.msra.mxu0 %v1790
        %1826 = vmatprep.subr.mxu0 0.0
        %1827 = vmatpush1.msra.mxu0 %v1789
        %1828 = vmatprep.subr.mxu0 0.0
        %1829 = vmatpush1.msra.mxu0 %v1788
        %1830 = vmatprep.subr.mxu0 0.0
        %1831 = vmatpush1.msra.mxu0 %v1787
        %1832 = vmatprep.subr.mxu0 0.0
        %1833 = vmatpush1.msra.mxu0 %v1786
        %1834 = vmatprep.subr.mxu0 0.0
        %1835 = vmatpush1.msra.mxu0 %v1785
        %1836 = vmatprep.subr.mxu0 0.0
        %1837 = vmatpush1.msra.mxu0 %v1784
        %1838 = vmatprep.subr.mxu0 0.0
        %1839 = vmatpush1.msra.mxu0 %v1783
        %1840 = vmatprep.subr.mxu0 0.0
        %1841 = vmatpush1.msra.mxu0 %v1782
        %1842 = vmatprep.subr.mxu0 0.0
        %1843 = vmatpush2.msra.mxu0 0.0
        %1844 = vmatprep.subr.mxu0 0.0
        %1845 = vmatpush2.msra.mxu0 0.0
        %1846 = vmatprep.subr.mxu0 0.0
        %1847 = vmatpush2.msra.mxu0 0.0
        %1848 = vmatprep.subr.mxu0 0.0
        %1849 = vmatpush2.msra.mxu0 0.0
        %1850 = vmatprep.subr.mxu0 0.0
        %1851 = vmatpush2.msra.mxu0 0.0
        %1852 = vmatprep.subr.mxu0 0.0
        %1853 = vmatpush2.msra.mxu0 0.0
        %1854 = vmatprep.subr.mxu0 0.0
        %1855 = vmatpush2.msra.mxu0 0.0
        %1856 = vmatprep.subr.mxu0 0.0
        %1857 = vmatpush2.msra.mxu0 0.0
        %1858 = vmatprep.subr.mxu0 0.0
        %1859 = vmatpush2.msra.mxu0 0.0
        %1860 = vmatprep.subr.mxu0 0.0
        %1861 = vmatpush2.msra.mxu0 0.0
        %1862 = vmatprep.subr.mxu0 0.0
        %1863 = vmatpush2.msra.mxu0 0.0
        %1864 = vmatprep.subr.mxu0 0.0
        %1865 = vmatpush2.msra.mxu0 0.0
        %1866 = vmatprep.subr.mxu0 0.0
        %1867 = vmatpush2.msra.mxu0 0.0
        %1868 = vmatprep.subr.mxu0 0.0
        %1869 = vmatpush2.msra.mxu0 0.0
        %1870 = vmatprep.subr.mxu0 0.0
        %1871 = vmatpush2.msra.mxu0 0.0
        %1872 = vmatprep.subr.mxu0 0.0
        %1873 = vmatpush2.msra.mxu0 0.0
        %1874 = vmatprep.mubr.f32.mxu0 0.0
        %1875 = vmatmul.mubr.f32.gmra.mxu0 %v1806
        %v1876 = vpop.f32.mrf.mxu0
        %v1877 = vadd.f32 0.0, %v1876
        %v1878 = vpop.f32.mrf.mxu0
        %1879 = vmatprep.mubr.f32.mxu0 0.0
        %1880 = vmatmul.mubr.f32.gmra.mxu0 %v1807
        %v1881 = vpop.f32.mrf.mxu0
        %v1882 = vadd.f32 0.0, %v1881
        %v1883 = vpop.f32.mrf.mxu0
        %1884 = vdwg.mxu0
        %v1885 = vadd.f32 %v1779, %v1877
        %v1886 = vadd.f32 %v1780, %v1882
        %v1887 = vld [vmem:[#allocation2] sm:$0xfc]
        %v1888 = vld [vmem:[#allocation2 + $0x20] sm:$0x3]
        %s1889 = scalar_lea.vmem [#allocation4], 1920
        %v1890 = vld [vmem:[%s1889] sm:$0xff]
        %v1891 = vld [vmem:[%s1889 + $0x8] sm:$0xff]
        %v1892 = vld [vmem:[%s1889 + $0x10] sm:$0xff]
        %v1893 = vld [vmem:[%s1889 + $0x18] sm:$0xff]
        %v1894 = vld [vmem:[%s1889 + $0x20] sm:$0xff]
        %v1895 = vld [vmem:[%s1889 + $0x28] sm:$0xff]
        %v1896 = vld [vmem:[%s1889 + $0x30] sm:$0xff]
        %v1897 = vld [vmem:[%s1889 + $0x38] sm:$0xff]
        %v1898 = vld [vmem:[%s1889 + $0x40] sm:$0xff]
        %v1899 = vld [vmem:[%s1889 + $0x48] sm:$0xff]
        %v1900 = vld [vmem:[%s1889 + $0x50] sm:$0xff]
        %v1901 = vld [vmem:[%s1889 + $0x58] sm:$0xff]
        %v1902 = vld [vmem:[%s1889 + $0x60] sm:$0xff]
        %v1903 = vld [vmem:[%s1889 + $0x68] sm:$0xff]
        %v1904 = vld [vmem:[%s1889 + $0x70] sm:$0xff]
        %v1905 = vld [vmem:[%s1889 + $0x78] sm:$0xff]
        %v1908 = vrot.slane %v1887, 2
        %v1909 = vrot.slane %v1547, 2
        %v1910 = vsel %vm887, %v1908, %v1909
        %v1911 = vrot.slane %v1888, 2
        %v1912 = vsel %vm887, %v1909, %v1911
        %1915 = vmatprep.subr.mxu0 0.0
        %1916 = vmatpush1.msra.mxu0 %v1905
        %1917 = vmatprep.subr.mxu0 0.0
        %1918 = vmatpush1.msra.mxu0 %v1904
        %1919 = vmatprep.subr.mxu0 0.0
        %1920 = vmatpush1.msra.mxu0 %v1903
        %1921 = vmatprep.subr.mxu0 0.0
        %1922 = vmatpush1.msra.mxu0 %v1902
        %1923 = vmatprep.subr.mxu0 0.0
        %1924 = vmatpush1.msra.mxu0 %v1901
        %1925 = vmatprep.subr.mxu0 0.0
        %1926 = vmatpush1.msra.mxu0 %v1900
        %1927 = vmatprep.subr.mxu0 0.0
        %1928 = vmatpush1.msra.mxu0 %v1899
        %1929 = vmatprep.subr.mxu0 0.0
        %1930 = vmatpush1.msra.mxu0 %v1898
        %1931 = vmatprep.subr.mxu0 0.0
        %1932 = vmatpush1.msra.mxu0 %v1897
        %1933 = vmatprep.subr.mxu0 0.0
        %1934 = vmatpush1.msra.mxu0 %v1896
        %1935 = vmatprep.subr.mxu0 0.0
        %1936 = vmatpush1.msra.mxu0 %v1895
        %1937 = vmatprep.subr.mxu0 0.0
        %1938 = vmatpush1.msra.mxu0 %v1894
        %1939 = vmatprep.subr.mxu0 0.0
        %1940 = vmatpush1.msra.mxu0 %v1893
        %1941 = vmatprep.subr.mxu0 0.0
        %1942 = vmatpush1.msra.mxu0 %v1892
        %1943 = vmatprep.subr.mxu0 0.0
        %1944 = vmatpush1.msra.mxu0 %v1891
        %1945 = vmatprep.subr.mxu0 0.0
        %1946 = vmatpush1.msra.mxu0 %v1890
        %1947 = vmatprep.subr.mxu0 0.0
        %1948 = vmatpush2.msra.mxu0 0.0
        %1949 = vmatprep.subr.mxu0 0.0
        %1950 = vmatpush2.msra.mxu0 0.0
        %1951 = vmatprep.subr.mxu0 0.0
        %1952 = vmatpush2.msra.mxu0 0.0
        %1953 = vmatprep.subr.mxu0 0.0
        %1954 = vmatpush2.msra.mxu0 0.0
        %1955 = vmatprep.subr.mxu0 0.0
        %1956 = vmatpush2.msra.mxu0 0.0
        %1957 = vmatprep.subr.mxu0 0.0
        %1958 = vmatpush2.msra.mxu0 0.0
        %1959 = vmatprep.subr.mxu0 0.0
        %1960 = vmatpush2.msra.mxu0 0.0
        %1961 = vmatprep.subr.mxu0 0.0
        %1962 = vmatpush2.msra.mxu0 0.0
        %1963 = vmatprep.subr.mxu0 0.0
        %1964 = vmatpush2.msra.mxu0 0.0
        %1965 = vmatprep.subr.mxu0 0.0
        %1966 = vmatpush2.msra.mxu0 0.0
        %1967 = vmatprep.subr.mxu0 0.0
        %1968 = vmatpush2.msra.mxu0 0.0
        %1969 = vmatprep.subr.mxu0 0.0
        %1970 = vmatpush2.msra.mxu0 0.0
        %1971 = vmatprep.subr.mxu0 0.0
        %1972 = vmatpush2.msra.mxu0 0.0
        %1973 = vmatprep.subr.mxu0 0.0
        %1974 = vmatpush2.msra.mxu0 0.0
        %1975 = vmatprep.subr.mxu0 0.0
        %1976 = vmatpush2.msra.mxu0 0.0
        %1977 = vmatprep.subr.mxu0 0.0
        %1978 = vmatpush2.msra.mxu0 0.0
        %1979 = vmatprep.mubr.f32.mxu0 0.0
        %1980 = vmatmul.mubr.f32.gmra.mxu0 %v1910
        %v1981 = vpop.f32.mrf.mxu0
        %v1982 = vadd.f32 0.0, %v1981
        %v1983 = vpop.f32.mrf.mxu0
        %1984 = vmatprep.mubr.f32.mxu0 0.0
        %1985 = vmatmul.mubr.f32.gmra.mxu0 %v1912
        %v1986 = vpop.f32.mrf.mxu0
        %v1987 = vadd.f32 0.0, %v1986
        %v1988 = vpop.f32.mrf.mxu0
        %1989 = vdwg.mxu0
        %v1990 = vadd.f32 %v1885, %v1982
        %v1991 = vadd.f32 %v1886, %v1987
        %v1992 = vld [vmem:[#allocation2] sm:$0xfc]
        %v1993 = vld [vmem:[#allocation2 + $0x8] sm:$0xfc]
        %v1994 = vld [vmem:[#allocation2 + $0x20] sm:$0x3]
        %v1995 = vld [vmem:[#allocation2 + $0x28] sm:$0x3]
        %s1996 = scalar_lea.vmem [#allocation4], 2048
        %v1997 = vld [vmem:[%s1996] sm:$0xff]
        %v1998 = vld [vmem:[%s1996 + $0x8] sm:$0xff]
        %v1999 = vld [vmem:[%s1996 + $0x10] sm:$0xff]
        %v2000 = vld [vmem:[%s1996 + $0x18] sm:$0xff]
        %v2001 = vld [vmem:[%s1996 + $0x20] sm:$0xff]
        %v2002 = vld [vmem:[%s1996 + $0x28] sm:$0xff]
        %v2003 = vld [vmem:[%s1996 + $0x30] sm:$0xff]
        %v2004 = vld [vmem:[%s1996 + $0x38] sm:$0xff]
        %v2005 = vld [vmem:[%s1996 + $0x40] sm:$0xff]
        %v2006 = vld [vmem:[%s1996 + $0x48] sm:$0xff]
        %v2007 = vld [vmem:[%s1996 + $0x50] sm:$0xff]
        %v2008 = vld [vmem:[%s1996 + $0x58] sm:$0xff]
        %v2009 = vld [vmem:[%s1996 + $0x60] sm:$0xff]
        %v2010 = vld [vmem:[%s1996 + $0x68] sm:$0xff]
        %v2011 = vld [vmem:[%s1996 + $0x70] sm:$0xff]
        %v2012 = vld [vmem:[%s1996 + $0x78] sm:$0xff]
        %v2017 = vrot.slane %v1992, 2
        %v2018 = vrot.slane %v1655, 2
        %v2019 = vsel %vm887, %v2017, %v2018
        %v2020 = vrot.slane %v1993, 2
        %v2021 = vrot.slane %v1656, 2
        %v2022 = vsel %vm887, %v2020, %v2021
        %v2023 = vrot.slane %v1994, 2
        %v2024 = vsel %vm887, %v2018, %v2023
        %v2025 = vrot.slane %v1995, 2
        %v2026 = vsel %vm887, %v2021, %v2025
        %2027 = vrot.lane.b32.xlu0 %v2019, 120
        %v2028 = vpop.permute.xlu0 %2027
        %2029 = vrot.lane.b32.xlu0 %v2022, 120
        %v2030 = vpop.permute.xlu0 %2029
        %2031 = vrot.lane.b32.xlu0 %v2024, 120
        %v2032 = vpop.permute.xlu0 %2031
        %2033 = vrot.lane.b32.xlu0 %v2026, 120
        %v2034 = vpop.permute.xlu0 %2033
        %v2035 = vsel %vm262, %v2028, %v2030
        %v2036 = vsel %vm262, %v2032, %v2034
        %2039 = vmatprep.subr.mxu0 0.0
        %2040 = vmatpush1.msra.mxu0 %v2012
        %2041 = vmatprep.subr.mxu0 0.0
        %2042 = vmatpush1.msra.mxu0 %v2011
        %2043 = vmatprep.subr.mxu0 0.0
        %2044 = vmatpush1.msra.mxu0 %v2010
        %2045 = vmatprep.subr.mxu0 0.0
        %2046 = vmatpush1.msra.mxu0 %v2009
        %2047 = vmatprep.subr.mxu0 0.0
        %2048 = vmatpush1.msra.mxu0 %v2008
        %2049 = vmatprep.subr.mxu0 0.0
        %2050 = vmatpush1.msra.mxu0 %v2007
        %2051 = vmatprep.subr.mxu0 0.0
        %2052 = vmatpush1.msra.mxu0 %v2006
        %2053 = vmatprep.subr.mxu0 0.0
        %2054 = vmatpush1.msra.mxu0 %v2005
        %2055 = vmatprep.subr.mxu0 0.0
        %2056 = vmatpush1.msra.mxu0 %v2004
        %2057 = vmatprep.subr.mxu0 0.0
        %2058 = vmatpush1.msra.mxu0 %v2003
        %2059 = vmatprep.subr.mxu0 0.0
        %2060 = vmatpush1.msra.mxu0 %v2002
        %2061 = vmatprep.subr.mxu0 0.0
        %2062 = vmatpush1.msra.mxu0 %v2001
        %2063 = vmatprep.subr.mxu0 0.0
        %2064 = vmatpush1.msra.mxu0 %v2000
        %2065 = vmatprep.subr.mxu0 0.0
        %2066 = vmatpush1.msra.mxu0 %v1999
        %2067 = vmatprep.subr.mxu0 0.0
        %2068 = vmatpush1.msra.mxu0 %v1998
        %2069 = vmatprep.subr.mxu0 0.0
        %2070 = vmatpush1.msra.mxu0 %v1997
        %2071 = vmatprep.subr.mxu0 0.0
        %2072 = vmatpush2.msra.mxu0 0.0
        %2073 = vmatprep.subr.mxu0 0.0
        %2074 = vmatpush2.msra.mxu0 0.0
        %2075 = vmatprep.subr.mxu0 0.0
        %2076 = vmatpush2.msra.mxu0 0.0
        %2077 = vmatprep.subr.mxu0 0.0
        %2078 = vmatpush2.msra.mxu0 0.0
        %2079 = vmatprep.subr.mxu0 0.0
        %2080 = vmatpush2.msra.mxu0 0.0
        %2081 = vmatprep.subr.mxu0 0.0
        %2082 = vmatpush2.msra.mxu0 0.0
        %2083 = vmatprep.subr.mxu0 0.0
        %2084 = vmatpush2.msra.mxu0 0.0
        %2085 = vmatprep.subr.mxu0 0.0
        %2086 = vmatpush2.msra.mxu0 0.0
        %2087 = vmatprep.subr.mxu0 0.0
        %2088 = vmatpush2.msra.mxu0 0.0
        %2089 = vmatprep.subr.mxu0 0.0
        %2090 = vmatpush2.msra.mxu0 0.0
        %2091 = vmatprep.subr.mxu0 0.0
        %2092 = vmatpush2.msra.mxu0 0.0
        %2093 = vmatprep.subr.mxu0 0.0
        %2094 = vmatpush2.msra.mxu0 0.0
        %2095 = vmatprep.subr.mxu0 0.0
        %2096 = vmatpush2.msra.mxu0 0.0
        %2097 = vmatprep.subr.mxu0 0.0
        %2098 = vmatpush2.msra.mxu0 0.0
        %2099 = vmatprep.subr.mxu0 0.0
        %2100 = vmatpush2.msra.mxu0 0.0
        %2101 = vmatprep.subr.mxu0 0.0
        %2102 = vmatpush2.msra.mxu0 0.0
        %2103 = vmatprep.mubr.f32.mxu0 0.0
        %2104 = vmatmul.mubr.f32.gmra.mxu0 %v2035
        %v2105 = vpop.f32.mrf.mxu0
        %v2106 = vadd.f32 0.0, %v2105
        %v2107 = vpop.f32.mrf.mxu0
        %2108 = vmatprep.mubr.f32.mxu0 0.0
        %2109 = vmatmul.mubr.f32.gmra.mxu0 %v2036
        %v2110 = vpop.f32.mrf.mxu0
        %v2111 = vadd.f32 0.0, %v2110
        %v2112 = vpop.f32.mrf.mxu0
        %2113 = vdwg.mxu0
        %v2114 = vadd.f32 %v1990, %v2106
        %v2115 = vadd.f32 %v1991, %v2111
        %s2116 = scalar_lea.vmem [#allocation4], 2176
        %v2117 = vld [vmem:[%s2116] sm:$0xff]
        %v2118 = vld [vmem:[%s2116 + $0x8] sm:$0xff]
        %v2119 = vld [vmem:[%s2116 + $0x10] sm:$0xff]
        %v2120 = vld [vmem:[%s2116 + $0x18] sm:$0xff]
        %v2121 = vld [vmem:[%s2116 + $0x20] sm:$0xff]
        %v2122 = vld [vmem:[%s2116 + $0x28] sm:$0xff]
        %v2123 = vld [vmem:[%s2116 + $0x30] sm:$0xff]
        %v2124 = vld [vmem:[%s2116 + $0x38] sm:$0xff]
        %v2125 = vld [vmem:[%s2116 + $0x40] sm:$0xff]
        %v2126 = vld [vmem:[%s2116 + $0x48] sm:$0xff]
        %v2127 = vld [vmem:[%s2116 + $0x50] sm:$0xff]
        %v2128 = vld [vmem:[%s2116 + $0x58] sm:$0xff]
        %v2129 = vld [vmem:[%s2116 + $0x60] sm:$0xff]
        %v2130 = vld [vmem:[%s2116 + $0x68] sm:$0xff]
        %v2131 = vld [vmem:[%s2116 + $0x70] sm:$0xff]
        %v2132 = vld [vmem:[%s2116 + $0x78] sm:$0xff]
        %2133 = vrot.lane.b32.xlu0 %v2019, 112
        %v2134 = vpop.permute.xlu0 %2133
        %2135 = vrot.lane.b32.xlu0 %v2022, 112
        %v2136 = vpop.permute.xlu0 %2135
        %2137 = vrot.lane.b32.xlu0 %v2024, 112
        %v2138 = vpop.permute.xlu0 %2137
        %2139 = vrot.lane.b32.xlu0 %v2026, 112
        %v2140 = vpop.permute.xlu0 %2139
        %v2141 = vsel %vm442, %v2134, %v2136
        %v2142 = vsel %vm442, %v2138, %v2140
        %2145 = vmatprep.subr.mxu0 0.0
        %2146 = vmatpush1.msra.mxu0 %v2132
        %2147 = vmatprep.subr.mxu0 0.0
        %2148 = vmatpush1.msra.mxu0 %v2131
        %2149 = vmatprep.subr.mxu0 0.0
        %2150 = vmatpush1.msra.mxu0 %v2130
        %2151 = vmatprep.subr.mxu0 0.0
        %2152 = vmatpush1.msra.mxu0 %v2129
        %2153 = vmatprep.subr.mxu0 0.0
        %2154 = vmatpush1.msra.mxu0 %v2128
        %2155 = vmatprep.subr.mxu0 0.0
        %2156 = vmatpush1.msra.mxu0 %v2127
        %2157 = vmatprep.subr.mxu0 0.0
        %2158 = vmatpush1.msra.mxu0 %v2126
        %2159 = vmatprep.subr.mxu0 0.0
        %2160 = vmatpush1.msra.mxu0 %v2125
        %2161 = vmatprep.subr.mxu0 0.0
        %2162 = vmatpush1.msra.mxu0 %v2124
        %2163 = vmatprep.subr.mxu0 0.0
        %2164 = vmatpush1.msra.mxu0 %v2123
        %2165 = vmatprep.subr.mxu0 0.0
        %2166 = vmatpush1.msra.mxu0 %v2122
        %2167 = vmatprep.subr.mxu0 0.0
        %2168 = vmatpush1.msra.mxu0 %v2121
        %2169 = vmatprep.subr.mxu0 0.0
        %2170 = vmatpush1.msra.mxu0 %v2120
        %2171 = vmatprep.subr.mxu0 0.0
        %2172 = vmatpush1.msra.mxu0 %v2119
        %2173 = vmatprep.subr.mxu0 0.0
        %2174 = vmatpush1.msra.mxu0 %v2118
        %2175 = vmatprep.subr.mxu0 0.0
        %2176 = vmatpush1.msra.mxu0 %v2117
        %2177 = vmatprep.subr.mxu0 0.0
        %2178 = vmatpush2.msra.mxu0 0.0
        %2179 = vmatprep.subr.mxu0 0.0
        %2180 = vmatpush2.msra.mxu0 0.0
        %2181 = vmatprep.subr.mxu0 0.0
        %2182 = vmatpush2.msra.mxu0 0.0
        %2183 = vmatprep.subr.mxu0 0.0
        %2184 = vmatpush2.msra.mxu0 0.0
        %2185 = vmatprep.subr.mxu0 0.0
        %2186 = vmatpush2.msra.mxu0 0.0
        %2187 = vmatprep.subr.mxu0 0.0
        %2188 = vmatpush2.msra.mxu0 0.0
        %2189 = vmatprep.subr.mxu0 0.0
        %2190 = vmatpush2.msra.mxu0 0.0
        %2191 = vmatprep.subr.mxu0 0.0
        %2192 = vmatpush2.msra.mxu0 0.0
        %2193 = vmatprep.subr.mxu0 0.0
        %2194 = vmatpush2.msra.mxu0 0.0
        %2195 = vmatprep.subr.mxu0 0.0
        %2196 = vmatpush2.msra.mxu0 0.0
        %2197 = vmatprep.subr.mxu0 0.0
        %2198 = vmatpush2.msra.mxu0 0.0
        %2199 = vmatprep.subr.mxu0 0.0
        %2200 = vmatpush2.msra.mxu0 0.0
        %2201 = vmatprep.subr.mxu0 0.0
        %2202 = vmatpush2.msra.mxu0 0.0
        %2203 = vmatprep.subr.mxu0 0.0
        %2204 = vmatpush2.msra.mxu0 0.0
        %2205 = vmatprep.subr.mxu0 0.0
        %2206 = vmatpush2.msra.mxu0 0.0
        %2207 = vmatprep.subr.mxu0 0.0
        %2208 = vmatpush2.msra.mxu0 0.0
        %2209 = vmatprep.mubr.f32.mxu0 0.0
        %2210 = vmatmul.mubr.f32.gmra.mxu0 %v2141
        %v2211 = vpop.f32.mrf.mxu0
        %v2212 = vadd.f32 0.0, %v2211
        %v2213 = vpop.f32.mrf.mxu0
        %2214 = vmatprep.mubr.f32.mxu0 0.0
        %2215 = vmatmul.mubr.f32.gmra.mxu0 %v2142
        %v2216 = vpop.f32.mrf.mxu0
        %v2217 = vadd.f32 0.0, %v2216
        %v2218 = vpop.f32.mrf.mxu0
        %2219 = vdwg.mxu0
        %v2220 = vadd.f32 %v2114, %v2212
        %v2221 = vadd.f32 %v2115, %v2217
        %v2222 = vld [vmem:[#allocation6 + $0x1] sm:$0x1]
        %v2223 = vlaneseq
        %v2224 = vshrl.u32 %v2223, 7
        %v2225 = vsub.s32 0, %v2224
        %v2226 = vrot.slane %v2222, %v2225
        %v2227 = vadd.f32 %v2220, %v2226
        %v2228 = vadd.f32 %v2221, %v2226
        %v2231 = vrot.slane %v2227, 7
        %v2232 = vrot.slane %v2228, 7
        %v2233 = vsel %vm1211, %v2231, %v2232
        %2234 = vrot.lane.b32.xlu0 %v2231, 8
        %v2235 = vpop.permute.xlu0 %2234
        %2236 = vrot.lane.b32.xlu0 %v2233, 8
        %v2237 = vpop.permute.xlu0 %2236
        %2238 = vrot.lane.b32.xlu0 %v2232, 8
        %v2239 = vpop.permute.xlu0 %2238
        %2243 = vst.msk [vmem:[#allocation3] sm:$0xfe] %vm1224, %v2235
        %2244 = vst.msk [vmem:[#allocation3 + $0x8] sm:$0xfe] %vm1226, %v2235
        %2245 = vst.msk [vmem:[#allocation3 + $0x10] sm:$0xff] %vm1228, %v2237
        %2246 = vst.msk [vmem:[#allocation3 + $0x18] sm:$0xff] %vm1230, %v2237
        %2247 = vst.msk [vmem:[#allocation3 + $0x20] sm:$0x1] %vm1232, %v2239
        %2248 = vst.msk [vmem:[#allocation3 + $0x28] sm:$0x1] %vm1234, %v2239
        %v2249 = vld [vmem:[#allocation3] sm:$0xff]
        %v2250 = vld [vmem:[#allocation3 + $0x10] sm:$0xff]
        %s2251 = scalar_lea.vmem [#allocation4], 2304
        %v2252 = vld [vmem:[%s2251] sm:$0xff]
        %v2253 = vld [vmem:[%s2251 + $0x8] sm:$0xff]
        %v2254 = vld [vmem:[%s2251 + $0x10] sm:$0xff]
        %v2255 = vld [vmem:[%s2251 + $0x18] sm:$0xff]
        %v2256 = vld [vmem:[%s2251 + $0x20] sm:$0xff]
        %v2257 = vld [vmem:[%s2251 + $0x28] sm:$0xff]
        %v2258 = vld [vmem:[%s2251 + $0x30] sm:$0xff]
        %v2259 = vld [vmem:[%s2251 + $0x38] sm:$0xff]
        %v2260 = vld [vmem:[%s2251 + $0x40] sm:$0xff]
        %v2261 = vld [vmem:[%s2251 + $0x48] sm:$0xff]
        %v2262 = vld [vmem:[%s2251 + $0x50] sm:$0xff]
        %v2263 = vld [vmem:[%s2251 + $0x58] sm:$0xff]
        %v2264 = vld [vmem:[%s2251 + $0x60] sm:$0xff]
        %v2265 = vld [vmem:[%s2251 + $0x68] sm:$0xff]
        %v2266 = vld [vmem:[%s2251 + $0x70] sm:$0xff]
        %v2267 = vld [vmem:[%s2251 + $0x78] sm:$0xff]
        %v2268 = vld [vmem:[#allocation3 + $0x8] sm:$0xff]
        %v2269 = vld [vmem:[#allocation3 + $0x18] sm:$0xff]
        %s2270 = scalar_lea.vmem [#allocation4], 2432
        %v2271 = vld [vmem:[%s2270] sm:$0xff]
        %v2272 = vld [vmem:[%s2270 + $0x8] sm:$0xff]
        %v2273 = vld [vmem:[%s2270 + $0x10] sm:$0xff]
        %v2274 = vld [vmem:[%s2270 + $0x18] sm:$0xff]
        %v2275 = vld [vmem:[%s2270 + $0x20] sm:$0xff]
        %v2276 = vld [vmem:[%s2270 + $0x28] sm:$0xff]
        %v2277 = vld [vmem:[%s2270 + $0x30] sm:$0xff]
        %v2278 = vld [vmem:[%s2270 + $0x38] sm:$0xff]
        %v2279 = vld [vmem:[%s2270 + $0x40] sm:$0xff]
        %v2280 = vld [vmem:[%s2270 + $0x48] sm:$0xff]
        %v2281 = vld [vmem:[%s2270 + $0x50] sm:$0xff]
        %v2282 = vld [vmem:[%s2270 + $0x58] sm:$0xff]
        %v2283 = vld [vmem:[%s2270 + $0x60] sm:$0xff]
        %v2284 = vld [vmem:[%s2270 + $0x68] sm:$0xff]
        %v2285 = vld [vmem:[%s2270 + $0x70] sm:$0xff]
        %v2286 = vld [vmem:[%s2270 + $0x78] sm:$0xff]
        %2291 = vrot.lane.b32.xlu0 %v2249, 120
        %v2292 = vpop.permute.xlu0 %2291
        %2293 = vrot.lane.b32.xlu0 %v2268, 120
        %v2294 = vpop.permute.xlu0 %2293
        %2295 = vrot.lane.b32.xlu0 %v2250, 120
        %v2296 = vpop.permute.xlu0 %2295
        %2297 = vrot.lane.b32.xlu0 %v2269, 120
        %v2298 = vpop.permute.xlu0 %2297
        %v2299 = vsel %vm262, %v2292, %v2294
        %v2300 = vsel %vm262, %v2296, %v2298
        %2303 = vmatprep.subr.mxu0 0.0
        %2304 = vmatpush1.msra.mxu0 %v2286
        %2305 = vmatprep.subr.mxu0 0.0
        %2306 = vmatpush1.msra.mxu0 %v2285
        %2307 = vmatprep.subr.mxu0 0.0
        %2308 = vmatpush1.msra.mxu0 %v2284
        %2309 = vmatprep.subr.mxu0 0.0
        %2310 = vmatpush1.msra.mxu0 %v2283
        %2311 = vmatprep.subr.mxu0 0.0
        %2312 = vmatpush1.msra.mxu0 %v2282
        %2313 = vmatprep.subr.mxu0 0.0
        %2314 = vmatpush1.msra.mxu0 %v2281
        %2315 = vmatprep.subr.mxu0 0.0
        %2316 = vmatpush1.msra.mxu0 %v2280
        %2317 = vmatprep.subr.mxu0 0.0
        %2318 = vmatpush1.msra.mxu0 %v2279
        %2319 = vmatprep.subr.mxu0 0.0
        %2320 = vmatpush1.msra.mxu0 %v2278
        %2321 = vmatprep.subr.mxu0 0.0
        %2322 = vmatpush1.msra.mxu0 %v2277
        %2323 = vmatprep.subr.mxu0 0.0
        %2324 = vmatpush1.msra.mxu0 %v2276
        %2325 = vmatprep.subr.mxu0 0.0
        %2326 = vmatpush1.msra.mxu0 %v2275
        %2327 = vmatprep.subr.mxu0 0.0
        %2328 = vmatpush1.msra.mxu0 %v2274
        %2329 = vmatprep.subr.mxu0 0.0
        %2330 = vmatpush1.msra.mxu0 %v2273
        %2331 = vmatprep.subr.mxu0 0.0
        %2332 = vmatpush1.msra.mxu0 %v2272
        %2333 = vmatprep.subr.mxu0 0.0
        %2334 = vmatpush1.msra.mxu0 %v2271
        %2335 = vmatprep.subr.mxu0 0.0
        %2336 = vmatpush2.msra.mxu0 0.0
        %2337 = vmatprep.subr.mxu0 0.0
        %2338 = vmatpush2.msra.mxu0 0.0
        %2339 = vmatprep.subr.mxu0 0.0
        %2340 = vmatpush2.msra.mxu0 0.0
        %2341 = vmatprep.subr.mxu0 0.0
        %2342 = vmatpush2.msra.mxu0 0.0
        %2343 = vmatprep.subr.mxu0 0.0
        %2344 = vmatpush2.msra.mxu0 0.0
        %2345 = vmatprep.subr.mxu0 0.0
        %2346 = vmatpush2.msra.mxu0 0.0
        %2347 = vmatprep.subr.mxu0 0.0
        %2348 = vmatpush2.msra.mxu0 0.0
        %2349 = vmatprep.subr.mxu0 0.0
        %2350 = vmatpush2.msra.mxu0 0.0
        %2351 = vmatprep.subr.mxu0 0.0
        %2352 = vmatpush2.msra.mxu0 0.0
        %2353 = vmatprep.subr.mxu0 0.0
        %2354 = vmatpush2.msra.mxu0 0.0
        %2355 = vmatprep.subr.mxu0 0.0
        %2356 = vmatpush2.msra.mxu0 0.0
        %2357 = vmatprep.subr.mxu0 0.0
        %2358 = vmatpush2.msra.mxu0 0.0
        %2359 = vmatprep.subr.mxu0 0.0
        %2360 = vmatpush2.msra.mxu0 0.0
        %2361 = vmatprep.subr.mxu0 0.0
        %2362 = vmatpush2.msra.mxu0 0.0
        %2363 = vmatprep.subr.mxu0 0.0
        %2364 = vmatpush2.msra.mxu0 0.0
        %2365 = vmatprep.subr.mxu0 0.0
        %2366 = vmatpush2.msra.mxu0 0.0
        %2367 = vmatprep.mubr.f32.mxu0 0.0
        %2368 = vmatmul.mubr.f32.gmra.mxu0 %v2299
        %v2369 = vpop.f32.mrf.mxu0
        %v2370 = vadd.f32 0.0, %v2369
        %v2371 = vpop.f32.mrf.mxu0
        %2372 = vmatprep.mubr.f32.mxu0 0.0
        %2373 = vmatmul.mubr.f32.gmra.mxu0 %v2300
        %v2374 = vpop.f32.mrf.mxu0
        %v2375 = vadd.f32 0.0, %v2374
        %v2376 = vpop.f32.mrf.mxu0
        %2377 = vdwg.mxu0
        %2378 = vmatprep.subr.mxu0 0.0
        %2379 = vmatpush1.msra.mxu0 %v2267
        %2380 = vmatprep.subr.mxu0 0.0
        %2381 = vmatpush1.msra.mxu0 %v2266
        %2382 = vmatprep.subr.mxu0 0.0
        %2383 = vmatpush1.msra.mxu0 %v2265
        %2384 = vmatprep.subr.mxu0 0.0
        %2385 = vmatpush1.msra.mxu0 %v2264
        %2386 = vmatprep.subr.mxu0 0.0
        %2387 = vmatpush1.msra.mxu0 %v2263
        %2388 = vmatprep.subr.mxu0 0.0
        %2389 = vmatpush1.msra.mxu0 %v2262
        %2390 = vmatprep.subr.mxu0 0.0
        %2391 = vmatpush1.msra.mxu0 %v2261
        %2392 = vmatprep.subr.mxu0 0.0
        %2393 = vmatpush1.msra.mxu0 %v2260
        %2394 = vmatprep.subr.mxu0 0.0
        %2395 = vmatpush1.msra.mxu0 %v2259
        %2396 = vmatprep.subr.mxu0 0.0
        %2397 = vmatpush1.msra.mxu0 %v2258
        %2398 = vmatprep.subr.mxu0 0.0
        %2399 = vmatpush1.msra.mxu0 %v2257
        %2400 = vmatprep.subr.mxu0 0.0
        %2401 = vmatpush1.msra.mxu0 %v2256
        %2402 = vmatprep.subr.mxu0 0.0
        %2403 = vmatpush1.msra.mxu0 %v2255
        %2404 = vmatprep.subr.mxu0 0.0
        %2405 = vmatpush1.msra.mxu0 %v2254
        %2406 = vmatprep.subr.mxu0 0.0
        %2407 = vmatpush1.msra.mxu0 %v2253
        %2408 = vmatprep.subr.mxu0 0.0
        %2409 = vmatpush1.msra.mxu0 %v2252
        %2410 = vmatprep.subr.mxu0 0.0
        %2411 = vmatpush2.msra.mxu0 0.0
        %2412 = vmatprep.subr.mxu0 0.0
        %2413 = vmatpush2.msra.mxu0 0.0
        %2414 = vmatprep.subr.mxu0 0.0
        %2415 = vmatpush2.msra.mxu0 0.0
        %2416 = vmatprep.subr.mxu0 0.0
        %2417 = vmatpush2.msra.mxu0 0.0
        %2418 = vmatprep.subr.mxu0 0.0
        %2419 = vmatpush2.msra.mxu0 0.0
        %2420 = vmatprep.subr.mxu0 0.0
        %2421 = vmatpush2.msra.mxu0 0.0
        %2422 = vmatprep.subr.mxu0 0.0
        %2423 = vmatpush2.msra.mxu0 0.0
        %2424 = vmatprep.subr.mxu0 0.0
        %2425 = vmatpush2.msra.mxu0 0.0
        %2426 = vmatprep.subr.mxu0 0.0
        %2427 = vmatpush2.msra.mxu0 0.0
        %2428 = vmatprep.subr.mxu0 0.0
        %2429 = vmatpush2.msra.mxu0 0.0
        %2430 = vmatprep.subr.mxu0 0.0
        %2431 = vmatpush2.msra.mxu0 0.0
        %2432 = vmatprep.subr.mxu0 0.0
        %2433 = vmatpush2.msra.mxu0 0.0
        %2434 = vmatprep.subr.mxu0 0.0
        %2435 = vmatpush2.msra.mxu0 0.0
        %2436 = vmatprep.subr.mxu0 0.0
        %2437 = vmatpush2.msra.mxu0 0.0
        %2438 = vmatprep.subr.mxu0 0.0
        %2439 = vmatpush2.msra.mxu0 0.0
        %2440 = vmatprep.subr.mxu0 0.0
        %2441 = vmatpush2.msra.mxu0 0.0
        %2442 = vmatprep.mubr.f32.mxu0 0.0
        %2443 = vmatmul.mubr.f32.gmra.mxu0 %v2249
        %v2444 = vpop.f32.mrf.mxu0
        %v2445 = vadd.f32 %v2370, %v2444
        %v2446 = vpop.f32.mrf.mxu0
        %2447 = vmatprep.mubr.f32.mxu0 0.0
        %2448 = vmatmul.mubr.f32.gmra.mxu0 %v2250
        %v2449 = vpop.f32.mrf.mxu0
        %v2450 = vadd.f32 %v2375, %v2449
        %v2451 = vpop.f32.mrf.mxu0
        %2452 = vdwg.mxu0
        %s2453 = scalar_lea.vmem [#allocation4], 2560
        %v2454 = vld [vmem:[%s2453] sm:$0xff]
        %v2455 = vld [vmem:[%s2453 + $0x8] sm:$0xff]
        %v2456 = vld [vmem:[%s2453 + $0x10] sm:$0xff]
        %v2457 = vld [vmem:[%s2453 + $0x18] sm:$0xff]
        %v2458 = vld [vmem:[%s2453 + $0x20] sm:$0xff]
        %v2459 = vld [vmem:[%s2453 + $0x28] sm:$0xff]
        %v2460 = vld [vmem:[%s2453 + $0x30] sm:$0xff]
        %v2461 = vld [vmem:[%s2453 + $0x38] sm:$0xff]
        %v2462 = vld [vmem:[%s2453 + $0x40] sm:$0xff]
        %v2463 = vld [vmem:[%s2453 + $0x48] sm:$0xff]
        %v2464 = vld [vmem:[%s2453 + $0x50] sm:$0xff]
        %v2465 = vld [vmem:[%s2453 + $0x58] sm:$0xff]
        %v2466 = vld [vmem:[%s2453 + $0x60] sm:$0xff]
        %v2467 = vld [vmem:[%s2453 + $0x68] sm:$0xff]
        %v2468 = vld [vmem:[%s2453 + $0x70] sm:$0xff]
        %v2469 = vld [vmem:[%s2453 + $0x78] sm:$0xff]
        %2470 = vrot.lane.b32.xlu0 %v2249, 112
        %v2471 = vpop.permute.xlu0 %2470
        %2472 = vrot.lane.b32.xlu0 %v2268, 112
        %v2473 = vpop.permute.xlu0 %2472
        %2474 = vrot.lane.b32.xlu0 %v2250, 112
        %v2475 = vpop.permute.xlu0 %2474
        %2476 = vrot.lane.b32.xlu0 %v2269, 112
        %v2477 = vpop.permute.xlu0 %2476
        %v2478 = vsel %vm442, %v2471, %v2473
        %v2479 = vsel %vm442, %v2475, %v2477
        %2482 = vmatprep.subr.mxu0 0.0
        %2483 = vmatpush1.msra.mxu0 %v2469
        %2484 = vmatprep.subr.mxu0 0.0
        %2485 = vmatpush1.msra.mxu0 %v2468
        %2486 = vmatprep.subr.mxu0 0.0
        %2487 = vmatpush1.msra.mxu0 %v2467
        %2488 = vmatprep.subr.mxu0 0.0
        %2489 = vmatpush1.msra.mxu0 %v2466
        %2490 = vmatprep.subr.mxu0 0.0
        %2491 = vmatpush1.msra.mxu0 %v2465
        %2492 = vmatprep.subr.mxu0 0.0
        %2493 = vmatpush1.msra.mxu0 %v2464
        %2494 = vmatprep.subr.mxu0 0.0
        %2495 = vmatpush1.msra.mxu0 %v2463
        %2496 = vmatprep.subr.mxu0 0.0
        %2497 = vmatpush1.msra.mxu0 %v2462
        %2498 = vmatprep.subr.mxu0 0.0
        %2499 = vmatpush1.msra.mxu0 %v2461
        %2500 = vmatprep.subr.mxu0 0.0
        %2501 = vmatpush1.msra.mxu0 %v2460
        %2502 = vmatprep.subr.mxu0 0.0
        %2503 = vmatpush1.msra.mxu0 %v2459
        %2504 = vmatprep.subr.mxu0 0.0
        %2505 = vmatpush1.msra.mxu0 %v2458
        %2506 = vmatprep.subr.mxu0 0.0
        %2507 = vmatpush1.msra.mxu0 %v2457
        %2508 = vmatprep.subr.mxu0 0.0
        %2509 = vmatpush1.msra.mxu0 %v2456
        %2510 = vmatprep.subr.mxu0 0.0
        %2511 = vmatpush1.msra.mxu0 %v2455
        %2512 = vmatprep.subr.mxu0 0.0
        %2513 = vmatpush1.msra.mxu0 %v2454
        %2514 = vmatprep.subr.mxu0 0.0
        %2515 = vmatpush2.msra.mxu0 0.0
        %2516 = vmatprep.subr.mxu0 0.0
        %2517 = vmatpush2.msra.mxu0 0.0
        %2518 = vmatprep.subr.mxu0 0.0
        %2519 = vmatpush2.msra.mxu0 0.0
        %2520 = vmatprep.subr.mxu0 0.0
        %2521 = vmatpush2.msra.mxu0 0.0
        %2522 = vmatprep.subr.mxu0 0.0
        %2523 = vmatpush2.msra.mxu0 0.0
        %2524 = vmatprep.subr.mxu0 0.0
        %2525 = vmatpush2.msra.mxu0 0.0
        %2526 = vmatprep.subr.mxu0 0.0
        %2527 = vmatpush2.msra.mxu0 0.0
        %2528 = vmatprep.subr.mxu0 0.0
        %2529 = vmatpush2.msra.mxu0 0.0
        %2530 = vmatprep.subr.mxu0 0.0
        %2531 = vmatpush2.msra.mxu0 0.0
        %2532 = vmatprep.subr.mxu0 0.0
        %2533 = vmatpush2.msra.mxu0 0.0
        %2534 = vmatprep.subr.mxu0 0.0
        %2535 = vmatpush2.msra.mxu0 0.0
        %2536 = vmatprep.subr.mxu0 0.0
        %2537 = vmatpush2.msra.mxu0 0.0
        %2538 = vmatprep.subr.mxu0 0.0
        %2539 = vmatpush2.msra.mxu0 0.0
        %2540 = vmatprep.subr.mxu0 0.0
        %2541 = vmatpush2.msra.mxu0 0.0
        %2542 = vmatprep.subr.mxu0 0.0
        %2543 = vmatpush2.msra.mxu0 0.0
        %2544 = vmatprep.subr.mxu0 0.0
        %2545 = vmatpush2.msra.mxu0 0.0
        %2546 = vmatprep.mubr.f32.mxu0 0.0
        %2547 = vmatmul.mubr.f32.gmra.mxu0 %v2478
        %v2548 = vpop.f32.mrf.mxu0
        %v2549 = vadd.f32 0.0, %v2548
        %v2550 = vpop.f32.mrf.mxu0
        %2551 = vmatprep.mubr.f32.mxu0 0.0
        %2552 = vmatmul.mubr.f32.gmra.mxu0 %v2479
        %v2553 = vpop.f32.mrf.mxu0
        %v2554 = vadd.f32 0.0, %v2553
        %v2555 = vpop.f32.mrf.mxu0
        %2556 = vdwg.mxu0
        %v2557 = vadd.f32 %v2445, %v2549
        %v2558 = vadd.f32 %v2450, %v2554
        %v2559 = vld [vmem:[#allocation3] sm:$0xfe]
        %v2560 = vld [vmem:[#allocation3 + $0x10] sm:$0xff]
        %v2561 = vld [vmem:[#allocation3 + $0x20] sm:$0x1]
        %s2562 = scalar_lea.vmem [#allocation4], 2688
        %v2563 = vld [vmem:[%s2562] sm:$0xff]
        %v2564 = vld [vmem:[%s2562 + $0x8] sm:$0xff]
        %v2565 = vld [vmem:[%s2562 + $0x10] sm:$0xff]
        %v2566 = vld [vmem:[%s2562 + $0x18] sm:$0xff]
        %v2567 = vld [vmem:[%s2562 + $0x20] sm:$0xff]
        %v2568 = vld [vmem:[%s2562 + $0x28] sm:$0xff]
        %v2569 = vld [vmem:[%s2562 + $0x30] sm:$0xff]
        %v2570 = vld [vmem:[%s2562 + $0x38] sm:$0xff]
        %v2571 = vld [vmem:[%s2562 + $0x40] sm:$0xff]
        %v2572 = vld [vmem:[%s2562 + $0x48] sm:$0xff]
        %v2573 = vld [vmem:[%s2562 + $0x50] sm:$0xff]
        %v2574 = vld [vmem:[%s2562 + $0x58] sm:$0xff]
        %v2575 = vld [vmem:[%s2562 + $0x60] sm:$0xff]
        %v2576 = vld [vmem:[%s2562 + $0x68] sm:$0xff]
        %v2577 = vld [vmem:[%s2562 + $0x70] sm:$0xff]
        %v2578 = vld [vmem:[%s2562 + $0x78] sm:$0xff]
        %v2582 = vrot.slane %v2559, 1
        %v2583 = vrot.slane %v2560, 1
        %v2584 = vsel %vm547, %v2582, %v2583
        %v2585 = vrot.slane %v2561, 1
        %v2586 = vsel %vm547, %v2583, %v2585
        %2589 = vmatprep.subr.mxu0 0.0
        %2590 = vmatpush1.msra.mxu0 %v2578
        %2591 = vmatprep.subr.mxu0 0.0
        %2592 = vmatpush1.msra.mxu0 %v2577
        %2593 = vmatprep.subr.mxu0 0.0
        %2594 = vmatpush1.msra.mxu0 %v2576
        %2595 = vmatprep.subr.mxu0 0.0
        %2596 = vmatpush1.msra.mxu0 %v2575
        %2597 = vmatprep.subr.mxu0 0.0
        %2598 = vmatpush1.msra.mxu0 %v2574
        %2599 = vmatprep.subr.mxu0 0.0
        %2600 = vmatpush1.msra.mxu0 %v2573
        %2601 = vmatprep.subr.mxu0 0.0
        %2602 = vmatpush1.msra.mxu0 %v2572
        %2603 = vmatprep.subr.mxu0 0.0
        %2604 = vmatpush1.msra.mxu0 %v2571
        %2605 = vmatprep.subr.mxu0 0.0
        %2606 = vmatpush1.msra.mxu0 %v2570
        %2607 = vmatprep.subr.mxu0 0.0
        %2608 = vmatpush1.msra.mxu0 %v2569
        %2609 = vmatprep.subr.mxu0 0.0
        %2610 = vmatpush1.msra.mxu0 %v2568
        %2611 = vmatprep.subr.mxu0 0.0
        %2612 = vmatpush1.msra.mxu0 %v2567
        %2613 = vmatprep.subr.mxu0 0.0
        %2614 = vmatpush1.msra.mxu0 %v2566
        %2615 = vmatprep.subr.mxu0 0.0
        %2616 = vmatpush1.msra.mxu0 %v2565
        %2617 = vmatprep.subr.mxu0 0.0
        %2618 = vmatpush1.msra.mxu0 %v2564
        %2619 = vmatprep.subr.mxu0 0.0
        %2620 = vmatpush1.msra.mxu0 %v2563
        %2621 = vmatprep.subr.mxu0 0.0
        %2622 = vmatpush2.msra.mxu0 0.0
        %2623 = vmatprep.subr.mxu0 0.0
        %2624 = vmatpush2.msra.mxu0 0.0
        %2625 = vmatprep.subr.mxu0 0.0
        %2626 = vmatpush2.msra.mxu0 0.0
        %2627 = vmatprep.subr.mxu0 0.0
        %2628 = vmatpush2.msra.mxu0 0.0
        %2629 = vmatprep.subr.mxu0 0.0
        %2630 = vmatpush2.msra.mxu0 0.0
        %2631 = vmatprep.subr.mxu0 0.0
        %2632 = vmatpush2.msra.mxu0 0.0
        %2633 = vmatprep.subr.mxu0 0.0
        %2634 = vmatpush2.msra.mxu0 0.0
        %2635 = vmatprep.subr.mxu0 0.0
        %2636 = vmatpush2.msra.mxu0 0.0
        %2637 = vmatprep.subr.mxu0 0.0
        %2638 = vmatpush2.msra.mxu0 0.0
        %2639 = vmatprep.subr.mxu0 0.0
        %2640 = vmatpush2.msra.mxu0 0.0
        %2641 = vmatprep.subr.mxu0 0.0
        %2642 = vmatpush2.msra.mxu0 0.0
        %2643 = vmatprep.subr.mxu0 0.0
        %2644 = vmatpush2.msra.mxu0 0.0
        %2645 = vmatprep.subr.mxu0 0.0
        %2646 = vmatpush2.msra.mxu0 0.0
        %2647 = vmatprep.subr.mxu0 0.0
        %2648 = vmatpush2.msra.mxu0 0.0
        %2649 = vmatprep.subr.mxu0 0.0
        %2650 = vmatpush2.msra.mxu0 0.0
        %2651 = vmatprep.subr.mxu0 0.0
        %2652 = vmatpush2.msra.mxu0 0.0
        %2653 = vmatprep.mubr.f32.mxu0 0.0
        %2654 = vmatmul.mubr.f32.gmra.mxu0 %v2584
        %v2655 = vpop.f32.mrf.mxu0
        %v2656 = vadd.f32 0.0, %v2655
        %v2657 = vpop.f32.mrf.mxu0
        %2658 = vmatprep.mubr.f32.mxu0 0.0
        %2659 = vmatmul.mubr.f32.gmra.mxu0 %v2586
        %v2660 = vpop.f32.mrf.mxu0
        %v2661 = vadd.f32 0.0, %v2660
        %v2662 = vpop.f32.mrf.mxu0
        %2663 = vdwg.mxu0
        %v2664 = vadd.f32 %v2557, %v2656
        %v2665 = vadd.f32 %v2558, %v2661
        %v2666 = vld [vmem:[#allocation3] sm:$0xfe]
        %v2667 = vld [vmem:[#allocation3 + $0x8] sm:$0xfe]
        %v2668 = vld [vmem:[#allocation3 + $0x10] sm:$0xff]
        %v2669 = vld [vmem:[#allocation3 + $0x18] sm:$0xff]
        %v2670 = vld [vmem:[#allocation3 + $0x20] sm:$0x1]
        %v2671 = vld [vmem:[#allocation3 + $0x28] sm:$0x1]
        %s2672 = scalar_lea.vmem [#allocation4], 2816
        %v2673 = vld [vmem:[%s2672] sm:$0xff]
        %v2674 = vld [vmem:[%s2672 + $0x8] sm:$0xff]
        %v2675 = vld [vmem:[%s2672 + $0x10] sm:$0xff]
        %v2676 = vld [vmem:[%s2672 + $0x18] sm:$0xff]
        %v2677 = vld [vmem:[%s2672 + $0x20] sm:$0xff]
        %v2678 = vld [vmem:[%s2672 + $0x28] sm:$0xff]
        %v2679 = vld [vmem:[%s2672 + $0x30] sm:$0xff]
        %v2680 = vld [vmem:[%s2672 + $0x38] sm:$0xff]
        %v2681 = vld [vmem:[%s2672 + $0x40] sm:$0xff]
        %v2682 = vld [vmem:[%s2672 + $0x48] sm:$0xff]
        %v2683 = vld [vmem:[%s2672 + $0x50] sm:$0xff]
        %v2684 = vld [vmem:[%s2672 + $0x58] sm:$0xff]
        %v2685 = vld [vmem:[%s2672 + $0x60] sm:$0xff]
        %v2686 = vld [vmem:[%s2672 + $0x68] sm:$0xff]
        %v2687 = vld [vmem:[%s2672 + $0x70] sm:$0xff]
        %v2688 = vld [vmem:[%s2672 + $0x78] sm:$0xff]
        %v2695 = vrot.slane %v2666, 1
        %v2696 = vrot.slane %v2668, 1
        %v2697 = vsel %vm547, %v2695, %v2696
        %v2698 = vrot.slane %v2667, 1
        %v2699 = vrot.slane %v2669, 1
        %v2700 = vsel %vm547, %v2698, %v2699
        %v2701 = vrot.slane %v2670, 1
        %v2702 = vsel %vm547, %v2696, %v2701
        %v2703 = vrot.slane %v2671, 1
        %v2704 = vsel %vm547, %v2699, %v2703
        %2705 = vrot.lane.b32.xlu0 %v2697, 120
        %v2706 = vpop.permute.xlu0 %2705
        %2707 = vrot.lane.b32.xlu0 %v2700, 120
        %v2708 = vpop.permute.xlu0 %2707
        %2709 = vrot.lane.b32.xlu0 %v2702, 120
        %v2710 = vpop.permute.xlu0 %2709
        %2711 = vrot.lane.b32.xlu0 %v2704, 120
        %v2712 = vpop.permute.xlu0 %2711
        %v2713 = vsel %vm262, %v2706, %v2708
        %v2714 = vsel %vm262, %v2710, %v2712
        %2717 = vmatprep.subr.mxu0 0.0
        %2718 = vmatpush1.msra.mxu0 %v2688
        %2719 = vmatprep.subr.mxu0 0.0
        %2720 = vmatpush1.msra.mxu0 %v2687
        %2721 = vmatprep.subr.mxu0 0.0
        %2722 = vmatpush1.msra.mxu0 %v2686
        %2723 = vmatprep.subr.mxu0 0.0
        %2724 = vmatpush1.msra.mxu0 %v2685
        %2725 = vmatprep.subr.mxu0 0.0
        %2726 = vmatpush1.msra.mxu0 %v2684
        %2727 = vmatprep.subr.mxu0 0.0
        %2728 = vmatpush1.msra.mxu0 %v2683
        %2729 = vmatprep.subr.mxu0 0.0
        %2730 = vmatpush1.msra.mxu0 %v2682
        %2731 = vmatprep.subr.mxu0 0.0
        %2732 = vmatpush1.msra.mxu0 %v2681
        %2733 = vmatprep.subr.mxu0 0.0
        %2734 = vmatpush1.msra.mxu0 %v2680
        %2735 = vmatprep.subr.mxu0 0.0
        %2736 = vmatpush1.msra.mxu0 %v2679
        %2737 = vmatprep.subr.mxu0 0.0
        %2738 = vmatpush1.msra.mxu0 %v2678
        %2739 = vmatprep.subr.mxu0 0.0
        %2740 = vmatpush1.msra.mxu0 %v2677
        %2741 = vmatprep.subr.mxu0 0.0
        %2742 = vmatpush1.msra.mxu0 %v2676
        %2743 = vmatprep.subr.mxu0 0.0
        %2744 = vmatpush1.msra.mxu0 %v2675
        %2745 = vmatprep.subr.mxu0 0.0
        %2746 = vmatpush1.msra.mxu0 %v2674
        %2747 = vmatprep.subr.mxu0 0.0
        %2748 = vmatpush1.msra.mxu0 %v2673
        %2749 = vmatprep.subr.mxu0 0.0
        %2750 = vmatpush2.msra.mxu0 0.0
        %2751 = vmatprep.subr.mxu0 0.0
        %2752 = vmatpush2.msra.mxu0 0.0
        %2753 = vmatprep.subr.mxu0 0.0
        %2754 = vmatpush2.msra.mxu0 0.0
        %2755 = vmatprep.subr.mxu0 0.0
        %2756 = vmatpush2.msra.mxu0 0.0
        %2757 = vmatprep.subr.mxu0 0.0
        %2758 = vmatpush2.msra.mxu0 0.0
        %2759 = vmatprep.subr.mxu0 0.0
        %2760 = vmatpush2.msra.mxu0 0.0
        %2761 = vmatprep.subr.mxu0 0.0
        %2762 = vmatpush2.msra.mxu0 0.0
        %2763 = vmatprep.subr.mxu0 0.0
        %2764 = vmatpush2.msra.mxu0 0.0
        %2765 = vmatprep.subr.mxu0 0.0
        %2766 = vmatpush2.msra.mxu0 0.0
        %2767 = vmatprep.subr.mxu0 0.0
        %2768 = vmatpush2.msra.mxu0 0.0
        %2769 = vmatprep.subr.mxu0 0.0
        %2770 = vmatpush2.msra.mxu0 0.0
        %2771 = vmatprep.subr.mxu0 0.0
        %2772 = vmatpush2.msra.mxu0 0.0
        %2773 = vmatprep.subr.mxu0 0.0
        %2774 = vmatpush2.msra.mxu0 0.0
        %2775 = vmatprep.subr.mxu0 0.0
        %2776 = vmatpush2.msra.mxu0 0.0
        %2777 = vmatprep.subr.mxu0 0.0
        %2778 = vmatpush2.msra.mxu0 0.0
        %2779 = vmatprep.subr.mxu0 0.0
        %2780 = vmatpush2.msra.mxu0 0.0
        %2781 = vmatprep.mubr.f32.mxu0 0.0
        %2782 = vmatmul.mubr.f32.gmra.mxu0 %v2713
        %v2783 = vpop.f32.mrf.mxu0
        %v2784 = vadd.f32 0.0, %v2783
        %v2785 = vpop.f32.mrf.mxu0
        %2786 = vmatprep.mubr.f32.mxu0 0.0
        %2787 = vmatmul.mubr.f32.gmra.mxu0 %v2714
        %v2788 = vpop.f32.mrf.mxu0
        %v2789 = vadd.f32 0.0, %v2788
        %v2790 = vpop.f32.mrf.mxu0
        %2791 = vdwg.mxu0
        %v2792 = vadd.f32 %v2664, %v2784
        %v2793 = vadd.f32 %v2665, %v2789
        %s2794 = scalar_lea.vmem [#allocation4], 2944
        %v2795 = vld [vmem:[%s2794] sm:$0xff]
        %v2796 = vld [vmem:[%s2794 + $0x8] sm:$0xff]
        %v2797 = vld [vmem:[%s2794 + $0x10] sm:$0xff]
        %v2798 = vld [vmem:[%s2794 + $0x18] sm:$0xff]
        %v2799 = vld [vmem:[%s2794 + $0x20] sm:$0xff]
        %v2800 = vld [vmem:[%s2794 + $0x28] sm:$0xff]
        %v2801 = vld [vmem:[%s2794 + $0x30] sm:$0xff]
        %v2802 = vld [vmem:[%s2794 + $0x38] sm:$0xff]
        %v2803 = vld [vmem:[%s2794 + $0x40] sm:$0xff]
        %v2804 = vld [vmem:[%s2794 + $0x48] sm:$0xff]
        %v2805 = vld [vmem:[%s2794 + $0x50] sm:$0xff]
        %v2806 = vld [vmem:[%s2794 + $0x58] sm:$0xff]
        %v2807 = vld [vmem:[%s2794 + $0x60] sm:$0xff]
        %v2808 = vld [vmem:[%s2794 + $0x68] sm:$0xff]
        %v2809 = vld [vmem:[%s2794 + $0x70] sm:$0xff]
        %v2810 = vld [vmem:[%s2794 + $0x78] sm:$0xff]
        %2811 = vrot.lane.b32.xlu0 %v2697, 112
        %v2812 = vpop.permute.xlu0 %2811
        %2813 = vrot.lane.b32.xlu0 %v2700, 112
        %v2814 = vpop.permute.xlu0 %2813
        %2815 = vrot.lane.b32.xlu0 %v2702, 112
        %v2816 = vpop.permute.xlu0 %2815
        %2817 = vrot.lane.b32.xlu0 %v2704, 112
        %v2818 = vpop.permute.xlu0 %2817
        %v2819 = vsel %vm442, %v2812, %v2814
        %v2820 = vsel %vm442, %v2816, %v2818
        %2823 = vmatprep.subr.mxu0 0.0
        %2824 = vmatpush1.msra.mxu0 %v2810
        %2825 = vmatprep.subr.mxu0 0.0
        %2826 = vmatpush1.msra.mxu0 %v2809
        %2827 = vmatprep.subr.mxu0 0.0
        %2828 = vmatpush1.msra.mxu0 %v2808
        %2829 = vmatprep.subr.mxu0 0.0
        %2830 = vmatpush1.msra.mxu0 %v2807
        %2831 = vmatprep.subr.mxu0 0.0
        %2832 = vmatpush1.msra.mxu0 %v2806
        %2833 = vmatprep.subr.mxu0 0.0
        %2834 = vmatpush1.msra.mxu0 %v2805
        %2835 = vmatprep.subr.mxu0 0.0
        %2836 = vmatpush1.msra.mxu0 %v2804
        %2837 = vmatprep.subr.mxu0 0.0
        %2838 = vmatpush1.msra.mxu0 %v2803
        %2839 = vmatprep.subr.mxu0 0.0
        %2840 = vmatpush1.msra.mxu0 %v2802
        %2841 = vmatprep.subr.mxu0 0.0
        %2842 = vmatpush1.msra.mxu0 %v2801
        %2843 = vmatprep.subr.mxu0 0.0
        %2844 = vmatpush1.msra.mxu0 %v2800
        %2845 = vmatprep.subr.mxu0 0.0
        %2846 = vmatpush1.msra.mxu0 %v2799
        %2847 = vmatprep.subr.mxu0 0.0
        %2848 = vmatpush1.msra.mxu0 %v2798
        %2849 = vmatprep.subr.mxu0 0.0
        %2850 = vmatpush1.msra.mxu0 %v2797
        %2851 = vmatprep.subr.mxu0 0.0
        %2852 = vmatpush1.msra.mxu0 %v2796
        %2853 = vmatprep.subr.mxu0 0.0
        %2854 = vmatpush1.msra.mxu0 %v2795
        %2855 = vmatprep.subr.mxu0 0.0
        %2856 = vmatpush2.msra.mxu0 0.0
        %2857 = vmatprep.subr.mxu0 0.0
        %2858 = vmatpush2.msra.mxu0 0.0
        %2859 = vmatprep.subr.mxu0 0.0
        %2860 = vmatpush2.msra.mxu0 0.0
        %2861 = vmatprep.subr.mxu0 0.0
        %2862 = vmatpush2.msra.mxu0 0.0
        %2863 = vmatprep.subr.mxu0 0.0
        %2864 = vmatpush2.msra.mxu0 0.0
        %2865 = vmatprep.subr.mxu0 0.0
        %2866 = vmatpush2.msra.mxu0 0.0
        %2867 = vmatprep.subr.mxu0 0.0
        %2868 = vmatpush2.msra.mxu0 0.0
        %2869 = vmatprep.subr.mxu0 0.0
        %2870 = vmatpush2.msra.mxu0 0.0
        %2871 = vmatprep.subr.mxu0 0.0
        %2872 = vmatpush2.msra.mxu0 0.0
        %2873 = vmatprep.subr.mxu0 0.0
        %2874 = vmatpush2.msra.mxu0 0.0
        %2875 = vmatprep.subr.mxu0 0.0
        %2876 = vmatpush2.msra.mxu0 0.0
        %2877 = vmatprep.subr.mxu0 0.0
        %2878 = vmatpush2.msra.mxu0 0.0
        %2879 = vmatprep.subr.mxu0 0.0
        %2880 = vmatpush2.msra.mxu0 0.0
        %2881 = vmatprep.subr.mxu0 0.0
        %2882 = vmatpush2.msra.mxu0 0.0
        %2883 = vmatprep.subr.mxu0 0.0
        %2884 = vmatpush2.msra.mxu0 0.0
        %2885 = vmatprep.subr.mxu0 0.0
        %2886 = vmatpush2.msra.mxu0 0.0
        %2887 = vmatprep.mubr.f32.mxu0 0.0
        %2888 = vmatmul.mubr.f32.gmra.mxu0 %v2819
        %v2889 = vpop.f32.mrf.mxu0
        %v2890 = vadd.f32 0.0, %v2889
        %v2891 = vpop.f32.mrf.mxu0
        %2892 = vmatprep.mubr.f32.mxu0 0.0
        %2893 = vmatmul.mubr.f32.gmra.mxu0 %v2820
        %v2894 = vpop.f32.mrf.mxu0
        %v2895 = vadd.f32 0.0, %v2894
        %v2896 = vpop.f32.mrf.mxu0
        %2897 = vdwg.mxu0
        %v2898 = vadd.f32 %v2792, %v2890
        %v2899 = vadd.f32 %v2793, %v2895
        %v2900 = vld [vmem:[#allocation3] sm:$0xfc]
        %v2901 = vld [vmem:[#allocation3 + $0x20] sm:$0x3]
        %s2902 = scalar_lea.vmem [#allocation4], 3072
        %v2903 = vld [vmem:[%s2902] sm:$0xff]
        %v2904 = vld [vmem:[%s2902 + $0x8] sm:$0xff]
        %v2905 = vld [vmem:[%s2902 + $0x10] sm:$0xff]
        %v2906 = vld [vmem:[%s2902 + $0x18] sm:$0xff]
        %v2907 = vld [vmem:[%s2902 + $0x20] sm:$0xff]
        %v2908 = vld [vmem:[%s2902 + $0x28] sm:$0xff]
        %v2909 = vld [vmem:[%s2902 + $0x30] sm:$0xff]
        %v2910 = vld [vmem:[%s2902 + $0x38] sm:$0xff]
        %v2911 = vld [vmem:[%s2902 + $0x40] sm:$0xff]
        %v2912 = vld [vmem:[%s2902 + $0x48] sm:$0xff]
        %v2913 = vld [vmem:[%s2902 + $0x50] sm:$0xff]
        %v2914 = vld [vmem:[%s2902 + $0x58] sm:$0xff]
        %v2915 = vld [vmem:[%s2902 + $0x60] sm:$0xff]
        %v2916 = vld [vmem:[%s2902 + $0x68] sm:$0xff]
        %v2917 = vld [vmem:[%s2902 + $0x70] sm:$0xff]
        %v2918 = vld [vmem:[%s2902 + $0x78] sm:$0xff]
        %v2921 = vrot.slane %v2900, 2
        %v2922 = vrot.slane %v2560, 2
        %v2923 = vsel %vm887, %v2921, %v2922
        %v2924 = vrot.slane %v2901, 2
        %v2925 = vsel %vm887, %v2922, %v2924
        %2928 = vmatprep.subr.mxu0 0.0
        %2929 = vmatpush1.msra.mxu0 %v2918
        %2930 = vmatprep.subr.mxu0 0.0
        %2931 = vmatpush1.msra.mxu0 %v2917
        %2932 = vmatprep.subr.mxu0 0.0
        %2933 = vmatpush1.msra.mxu0 %v2916
        %2934 = vmatprep.subr.mxu0 0.0
        %2935 = vmatpush1.msra.mxu0 %v2915
        %2936 = vmatprep.subr.mxu0 0.0
        %2937 = vmatpush1.msra.mxu0 %v2914
        %2938 = vmatprep.subr.mxu0 0.0
        %2939 = vmatpush1.msra.mxu0 %v2913
        %2940 = vmatprep.subr.mxu0 0.0
        %2941 = vmatpush1.msra.mxu0 %v2912
        %2942 = vmatprep.subr.mxu0 0.0
        %2943 = vmatpush1.msra.mxu0 %v2911
        %2944 = vmatprep.subr.mxu0 0.0
        %2945 = vmatpush1.msra.mxu0 %v2910
        %2946 = vmatprep.subr.mxu0 0.0
        %2947 = vmatpush1.msra.mxu0 %v2909
        %2948 = vmatprep.subr.mxu0 0.0
        %2949 = vmatpush1.msra.mxu0 %v2908
        %2950 = vmatprep.subr.mxu0 0.0
        %2951 = vmatpush1.msra.mxu0 %v2907
        %2952 = vmatprep.subr.mxu0 0.0
        %2953 = vmatpush1.msra.mxu0 %v2906
        %2954 = vmatprep.subr.mxu0 0.0
        %2955 = vmatpush1.msra.mxu0 %v2905
        %2956 = vmatprep.subr.mxu0 0.0
        %2957 = vmatpush1.msra.mxu0 %v2904
        %2958 = vmatprep.subr.mxu0 0.0
        %2959 = vmatpush1.msra.mxu0 %v2903
        %2960 = vmatprep.subr.mxu0 0.0
        %2961 = vmatpush2.msra.mxu0 0.0
        %2962 = vmatprep.subr.mxu0 0.0
        %2963 = vmatpush2.msra.mxu0 0.0
        %2964 = vmatprep.subr.mxu0 0.0
        %2965 = vmatpush2.msra.mxu0 0.0
        %2966 = vmatprep.subr.mxu0 0.0
        %2967 = vmatpush2.msra.mxu0 0.0
        %2968 = vmatprep.subr.mxu0 0.0
        %2969 = vmatpush2.msra.mxu0 0.0
        %2970 = vmatprep.subr.mxu0 0.0
        %2971 = vmatpush2.msra.mxu0 0.0
        %2972 = vmatprep.subr.mxu0 0.0
        %2973 = vmatpush2.msra.mxu0 0.0
        %2974 = vmatprep.subr.mxu0 0.0
        %2975 = vmatpush2.msra.mxu0 0.0
        %2976 = vmatprep.subr.mxu0 0.0
        %2977 = vmatpush2.msra.mxu0 0.0
        %2978 = vmatprep.subr.mxu0 0.0
        %2979 = vmatpush2.msra.mxu0 0.0
        %2980 = vmatprep.subr.mxu0 0.0
        %2981 = vmatpush2.msra.mxu0 0.0
        %2982 = vmatprep.subr.mxu0 0.0
        %2983 = vmatpush2.msra.mxu0 0.0
        %2984 = vmatprep.subr.mxu0 0.0
        %2985 = vmatpush2.msra.mxu0 0.0
        %2986 = vmatprep.subr.mxu0 0.0
        %2987 = vmatpush2.msra.mxu0 0.0
        %2988 = vmatprep.subr.mxu0 0.0
        %2989 = vmatpush2.msra.mxu0 0.0
        %2990 = vmatprep.subr.mxu0 0.0
        %2991 = vmatpush2.msra.mxu0 0.0
        %2992 = vmatprep.mubr.f32.mxu0 0.0
        %2993 = vmatmul.mubr.f32.gmra.mxu0 %v2923
        %v2994 = vpop.f32.mrf.mxu0
        %v2995 = vadd.f32 0.0, %v2994
        %v2996 = vpop.f32.mrf.mxu0
        %2997 = vmatprep.mubr.f32.mxu0 0.0
        %2998 = vmatmul.mubr.f32.gmra.mxu0 %v2925
        %v2999 = vpop.f32.mrf.mxu0
        %v3000 = vadd.f32 0.0, %v2999
        %v3001 = vpop.f32.mrf.mxu0
        %3002 = vdwg.mxu0
        %v3003 = vadd.f32 %v2898, %v2995
        %v3004 = vadd.f32 %v2899, %v3000
        %v3005 = vld [vmem:[#allocation3] sm:$0xfc]
        %v3006 = vld [vmem:[#allocation3 + $0x8] sm:$0xfc]
        %v3007 = vld [vmem:[#allocation3 + $0x20] sm:$0x3]
        %v3008 = vld [vmem:[#allocation3 + $0x28] sm:$0x3]
        %s3009 = scalar_lea.vmem [#allocation4], 3200
        %v3010 = vld [vmem:[%s3009] sm:$0xff]
        %v3011 = vld [vmem:[%s3009 + $0x8] sm:$0xff]
        %v3012 = vld [vmem:[%s3009 + $0x10] sm:$0xff]
        %v3013 = vld [vmem:[%s3009 + $0x18] sm:$0xff]
        %v3014 = vld [vmem:[%s3009 + $0x20] sm:$0xff]
        %v3015 = vld [vmem:[%s3009 + $0x28] sm:$0xff]
        %v3016 = vld [vmem:[%s3009 + $0x30] sm:$0xff]
        %v3017 = vld [vmem:[%s3009 + $0x38] sm:$0xff]
        %v3018 = vld [vmem:[%s3009 + $0x40] sm:$0xff]
        %v3019 = vld [vmem:[%s3009 + $0x48] sm:$0xff]
        %v3020 = vld [vmem:[%s3009 + $0x50] sm:$0xff]
        %v3021 = vld [vmem:[%s3009 + $0x58] sm:$0xff]
        %v3022 = vld [vmem:[%s3009 + $0x60] sm:$0xff]
        %v3023 = vld [vmem:[%s3009 + $0x68] sm:$0xff]
        %v3024 = vld [vmem:[%s3009 + $0x70] sm:$0xff]
        %v3025 = vld [vmem:[%s3009 + $0x78] sm:$0xff]
        %v3030 = vrot.slane %v3005, 2
        %v3031 = vrot.slane %v2668, 2
        %v3032 = vsel %vm887, %v3030, %v3031
        %v3033 = vrot.slane %v3006, 2
        %v3034 = vrot.slane %v2669, 2
        %v3035 = vsel %vm887, %v3033, %v3034
        %v3036 = vrot.slane %v3007, 2
        %v3037 = vsel %vm887, %v3031, %v3036
        %v3038 = vrot.slane %v3008, 2
        %v3039 = vsel %vm887, %v3034, %v3038
        %3040 = vrot.lane.b32.xlu0 %v3032, 120
        %v3041 = vpop.permute.xlu0 %3040
        %3042 = vrot.lane.b32.xlu0 %v3035, 120
        %v3043 = vpop.permute.xlu0 %3042
        %3044 = vrot.lane.b32.xlu0 %v3037, 120
        %v3045 = vpop.permute.xlu0 %3044
        %3046 = vrot.lane.b32.xlu0 %v3039, 120
        %v3047 = vpop.permute.xlu0 %3046
        %v3048 = vsel %vm262, %v3041, %v3043
        %v3049 = vsel %vm262, %v3045, %v3047
        %3052 = vmatprep.subr.mxu0 0.0
        %3053 = vmatpush1.msra.mxu0 %v3025
        %3054 = vmatprep.subr.mxu0 0.0
        %3055 = vmatpush1.msra.mxu0 %v3024
        %3056 = vmatprep.subr.mxu0 0.0
        %3057 = vmatpush1.msra.mxu0 %v3023
        %3058 = vmatprep.subr.mxu0 0.0
        %3059 = vmatpush1.msra.mxu0 %v3022
        %3060 = vmatprep.subr.mxu0 0.0
        %3061 = vmatpush1.msra.mxu0 %v3021
        %3062 = vmatprep.subr.mxu0 0.0
        %3063 = vmatpush1.msra.mxu0 %v3020
        %3064 = vmatprep.subr.mxu0 0.0
        %3065 = vmatpush1.msra.mxu0 %v3019
        %3066 = vmatprep.subr.mxu0 0.0
        %3067 = vmatpush1.msra.mxu0 %v3018
        %3068 = vmatprep.subr.mxu0 0.0
        %3069 = vmatpush1.msra.mxu0 %v3017
        %3070 = vmatprep.subr.mxu0 0.0
        %3071 = vmatpush1.msra.mxu0 %v3016
        %3072 = vmatprep.subr.mxu0 0.0
        %3073 = vmatpush1.msra.mxu0 %v3015
        %3074 = vmatprep.subr.mxu0 0.0
        %3075 = vmatpush1.msra.mxu0 %v3014
        %3076 = vmatprep.subr.mxu0 0.0
        %3077 = vmatpush1.msra.mxu0 %v3013
        %3078 = vmatprep.subr.mxu0 0.0
        %3079 = vmatpush1.msra.mxu0 %v3012
        %3080 = vmatprep.subr.mxu0 0.0
        %3081 = vmatpush1.msra.mxu0 %v3011
        %3082 = vmatprep.subr.mxu0 0.0
        %3083 = vmatpush1.msra.mxu0 %v3010
        %3084 = vmatprep.subr.mxu0 0.0
        %3085 = vmatpush2.msra.mxu0 0.0
        %3086 = vmatprep.subr.mxu0 0.0
        %3087 = vmatpush2.msra.mxu0 0.0
        %3088 = vmatprep.subr.mxu0 0.0
        %3089 = vmatpush2.msra.mxu0 0.0
        %3090 = vmatprep.subr.mxu0 0.0
        %3091 = vmatpush2.msra.mxu0 0.0
        %3092 = vmatprep.subr.mxu0 0.0
        %3093 = vmatpush2.msra.mxu0 0.0
        %3094 = vmatprep.subr.mxu0 0.0
        %3095 = vmatpush2.msra.mxu0 0.0
        %3096 = vmatprep.subr.mxu0 0.0
        %3097 = vmatpush2.msra.mxu0 0.0
        %3098 = vmatprep.subr.mxu0 0.0
        %3099 = vmatpush2.msra.mxu0 0.0
        %3100 = vmatprep.subr.mxu0 0.0
        %3101 = vmatpush2.msra.mxu0 0.0
        %3102 = vmatprep.subr.mxu0 0.0
        %3103 = vmatpush2.msra.mxu0 0.0
        %3104 = vmatprep.subr.mxu0 0.0
        %3105 = vmatpush2.msra.mxu0 0.0
        %3106 = vmatprep.subr.mxu0 0.0
        %3107 = vmatpush2.msra.mxu0 0.0
        %3108 = vmatprep.subr.mxu0 0.0
        %3109 = vmatpush2.msra.mxu0 0.0
        %3110 = vmatprep.subr.mxu0 0.0
        %3111 = vmatpush2.msra.mxu0 0.0
        %3112 = vmatprep.subr.mxu0 0.0
        %3113 = vmatpush2.msra.mxu0 0.0
        %3114 = vmatprep.subr.mxu0 0.0
        %3115 = vmatpush2.msra.mxu0 0.0
        %3116 = vmatprep.mubr.f32.mxu0 0.0
        %3117 = vmatmul.mubr.f32.gmra.mxu0 %v3048
        %v3118 = vpop.f32.mrf.mxu0
        %v3119 = vadd.f32 0.0, %v3118
        %v3120 = vpop.f32.mrf.mxu0
        %3121 = vmatprep.mubr.f32.mxu0 0.0
        %3122 = vmatmul.mubr.f32.gmra.mxu0 %v3049
        %v3123 = vpop.f32.mrf.mxu0
        %v3124 = vadd.f32 0.0, %v3123
        %v3125 = vpop.f32.mrf.mxu0
        %3126 = vdwg.mxu0
        %v3127 = vadd.f32 %v3003, %v3119
        %v3128 = vadd.f32 %v3004, %v3124
        %s3129 = scalar_lea.vmem [#allocation4], 3328
        %v3130 = vld [vmem:[%s3129] sm:$0xff]
        %v3131 = vld [vmem:[%s3129 + $0x8] sm:$0xff]
        %v3132 = vld [vmem:[%s3129 + $0x10] sm:$0xff]
        %v3133 = vld [vmem:[%s3129 + $0x18] sm:$0xff]
        %v3134 = vld [vmem:[%s3129 + $0x20] sm:$0xff]
        %v3135 = vld [vmem:[%s3129 + $0x28] sm:$0xff]
        %v3136 = vld [vmem:[%s3129 + $0x30] sm:$0xff]
        %v3137 = vld [vmem:[%s3129 + $0x38] sm:$0xff]
        %v3138 = vld [vmem:[%s3129 + $0x40] sm:$0xff]
        %v3139 = vld [vmem:[%s3129 + $0x48] sm:$0xff]
        %v3140 = vld [vmem:[%s3129 + $0x50] sm:$0xff]
        %v3141 = vld [vmem:[%s3129 + $0x58] sm:$0xff]
        %v3142 = vld [vmem:[%s3129 + $0x60] sm:$0xff]
        %v3143 = vld [vmem:[%s3129 + $0x68] sm:$0xff]
        %v3144 = vld [vmem:[%s3129 + $0x70] sm:$0xff]
        %v3145 = vld [vmem:[%s3129 + $0x78] sm:$0xff]
        %3146 = vrot.lane.b32.xlu0 %v3032, 112
        %v3147 = vpop.permute.xlu0 %3146
        %3148 = vrot.lane.b32.xlu0 %v3035, 112
        %v3149 = vpop.permute.xlu0 %3148
        %3150 = vrot.lane.b32.xlu0 %v3037, 112
        %v3151 = vpop.permute.xlu0 %3150
        %3152 = vrot.lane.b32.xlu0 %v3039, 112
        %v3153 = vpop.permute.xlu0 %3152
        %v3154 = vsel %vm442, %v3147, %v3149
        %v3155 = vsel %vm442, %v3151, %v3153
        %3158 = vmatprep.subr.mxu0 0.0
        %3159 = vmatpush1.msra.mxu0 %v3145
        %3160 = vmatprep.subr.mxu0 0.0
        %3161 = vmatpush1.msra.mxu0 %v3144
        %3162 = vmatprep.subr.mxu0 0.0
        %3163 = vmatpush1.msra.mxu0 %v3143
        %3164 = vmatprep.subr.mxu0 0.0
        %3165 = vmatpush1.msra.mxu0 %v3142
        %3166 = vmatprep.subr.mxu0 0.0
        %3167 = vmatpush1.msra.mxu0 %v3141
        %3168 = vmatprep.subr.mxu0 0.0
        %3169 = vmatpush1.msra.mxu0 %v3140
        %3170 = vmatprep.subr.mxu0 0.0
        %3171 = vmatpush1.msra.mxu0 %v3139
        %3172 = vmatprep.subr.mxu0 0.0
        %3173 = vmatpush1.msra.mxu0 %v3138
        %3174 = vmatprep.subr.mxu0 0.0
        %3175 = vmatpush1.msra.mxu0 %v3137
        %3176 = vmatprep.subr.mxu0 0.0
        %3177 = vmatpush1.msra.mxu0 %v3136
        %3178 = vmatprep.subr.mxu0 0.0
        %3179 = vmatpush1.msra.mxu0 %v3135
        %3180 = vmatprep.subr.mxu0 0.0
        %3181 = vmatpush1.msra.mxu0 %v3134
        %3182 = vmatprep.subr.mxu0 0.0
        %3183 = vmatpush1.msra.mxu0 %v3133
        %3184 = vmatprep.subr.mxu0 0.0
        %3185 = vmatpush1.msra.mxu0 %v3132
        %3186 = vmatprep.subr.mxu0 0.0
        %3187 = vmatpush1.msra.mxu0 %v3131
        %3188 = vmatprep.subr.mxu0 0.0
        %3189 = vmatpush1.msra.mxu0 %v3130
        %3190 = vmatprep.subr.mxu0 0.0
        %3191 = vmatpush2.msra.mxu0 0.0
        %3192 = vmatprep.subr.mxu0 0.0
        %3193 = vmatpush2.msra.mxu0 0.0
        %3194 = vmatprep.subr.mxu0 0.0
        %3195 = vmatpush2.msra.mxu0 0.0
        %3196 = vmatprep.subr.mxu0 0.0
        %3197 = vmatpush2.msra.mxu0 0.0
        %3198 = vmatprep.subr.mxu0 0.0
        %3199 = vmatpush2.msra.mxu0 0.0
        %3200 = vmatprep.subr.mxu0 0.0
        %3201 = vmatpush2.msra.mxu0 0.0
        %3202 = vmatprep.subr.mxu0 0.0
        %3203 = vmatpush2.msra.mxu0 0.0
        %3204 = vmatprep.subr.mxu0 0.0
        %3205 = vmatpush2.msra.mxu0 0.0
        %3206 = vmatprep.subr.mxu0 0.0
        %3207 = vmatpush2.msra.mxu0 0.0
        %3208 = vmatprep.subr.mxu0 0.0
        %3209 = vmatpush2.msra.mxu0 0.0
        %3210 = vmatprep.subr.mxu0 0.0
        %3211 = vmatpush2.msra.mxu0 0.0
        %3212 = vmatprep.subr.mxu0 0.0
        %3213 = vmatpush2.msra.mxu0 0.0
        %3214 = vmatprep.subr.mxu0 0.0
        %3215 = vmatpush2.msra.mxu0 0.0
        %3216 = vmatprep.subr.mxu0 0.0
        %3217 = vmatpush2.msra.mxu0 0.0
        %3218 = vmatprep.subr.mxu0 0.0
        %3219 = vmatpush2.msra.mxu0 0.0
        %3220 = vmatprep.subr.mxu0 0.0
        %3221 = vmatpush2.msra.mxu0 0.0
        %3222 = vmatprep.mubr.f32.mxu0 0.0
        %3223 = vmatmul.mubr.f32.gmra.mxu0 %v3154
        %v3224 = vpop.f32.mrf.mxu0
        %v3225 = vadd.f32 0.0, %v3224
        %v3226 = vpop.f32.mrf.mxu0
        %3227 = vmatprep.mubr.f32.mxu0 0.0
        %3228 = vmatmul.mubr.f32.gmra.mxu0 %v3155
        %v3229 = vpop.f32.mrf.mxu0
        %v3230 = vadd.f32 0.0, %v3229
        %v3231 = vpop.f32.mrf.mxu0
        %3232 = vdwg.mxu0
        %v3233 = vadd.f32 %v3127, %v3225
        %v3234 = vadd.f32 %v3128, %v3230
        %v3235 = vld [vmem:[#allocation6 + $0x2] sm:$0x1]
        %v3236 = vlaneseq
        %v3237 = vshrl.u32 %v3236, 7
        %v3238 = vsub.s32 0, %v3237
        %v3239 = vrot.slane %v3235, %v3238
        %v3240 = vadd.f32 %v3233, %v3239
        %v3241 = vadd.f32 %v3234, %v3239
        %v3244 = vrot.slane %v3240, 7
        %v3245 = vrot.slane %v3241, 7
        %v3246 = vsel %vm1211, %v3244, %v3245
        %3247 = vrot.lane.b32.xlu0 %v3244, 8
        %v3248 = vpop.permute.xlu0 %3247
        %3249 = vrot.lane.b32.xlu0 %v3246, 8
        %v3250 = vpop.permute.xlu0 %3249
        %3251 = vrot.lane.b32.xlu0 %v3245, 8
        %v3252 = vpop.permute.xlu0 %3251
        %3256 = vst.msk [vmem:[#allocation2] sm:$0xfe] %vm1224, %v3248
        %3257 = vst.msk [vmem:[#allocation2 + $0x8] sm:$0xfe] %vm1226, %v3248
        %3258 = vst.msk [vmem:[#allocation2 + $0x10] sm:$0xff] %vm1228, %v3250
        %3259 = vst.msk [vmem:[#allocation2 + $0x18] sm:$0xff] %vm1230, %v3250
        %3260 = vst.msk [vmem:[#allocation2 + $0x20] sm:$0x1] %vm1232, %v3252
        %3261 = vst.msk [vmem:[#allocation2 + $0x28] sm:$0x1] %vm1234, %v3252
        %v3262 = vld [vmem:[#allocation3] sm:$0xfe]
        %v3263 = vld [vmem:[#allocation3 + $0x8] sm:$0xfe]
        %v3264 = vld [vmem:[#allocation3 + $0x10] sm:$0xff]
        %v3265 = vld [vmem:[#allocation3 + $0x18] sm:$0xff]
        %v3266 = vld [vmem:[#allocation3 + $0x20] sm:$0x1]
        %v3267 = vld [vmem:[#allocation3 + $0x28] sm:$0x1]
        %v3268 = vld [vmem:[#allocation2] sm:$0xff]
        %v3269 = vld [vmem:[#allocation2 + $0x10] sm:$0xff]
        %s3270 = scalar_lea.vmem [#allocation4], 3456
        %v3271 = vld [vmem:[%s3270] sm:$0xff]
        %v3272 = vld [vmem:[%s3270 + $0x8] sm:$0xff]
        %v3273 = vld [vmem:[%s3270 + $0x10] sm:$0xff]
        %v3274 = vld [vmem:[%s3270 + $0x18] sm:$0xff]
        %v3275 = vld [vmem:[%s3270 + $0x20] sm:$0xff]
        %v3276 = vld [vmem:[%s3270 + $0x28] sm:$0xff]
        %v3277 = vld [vmem:[%s3270 + $0x30] sm:$0xff]
        %v3278 = vld [vmem:[%s3270 + $0x38] sm:$0xff]
        %v3279 = vld [vmem:[%s3270 + $0x40] sm:$0xff]
        %v3280 = vld [vmem:[%s3270 + $0x48] sm:$0xff]
        %v3281 = vld [vmem:[%s3270 + $0x50] sm:$0xff]
        %v3282 = vld [vmem:[%s3270 + $0x58] sm:$0xff]
        %v3283 = vld [vmem:[%s3270 + $0x60] sm:$0xff]
        %v3284 = vld [vmem:[%s3270 + $0x68] sm:$0xff]
        %v3285 = vld [vmem:[%s3270 + $0x70] sm:$0xff]
        %v3286 = vld [vmem:[%s3270 + $0x78] sm:$0xff]
        %v3287 = vld [vmem:[#allocation2 + $0x8] sm:$0xff]
        %v3288 = vld [vmem:[#allocation2 + $0x18] sm:$0xff]
        %s3289 = scalar_lea.vmem [#allocation4], 3584
        %v3290 = vld [vmem:[%s3289] sm:$0xff]
        %v3291 = vld [vmem:[%s3289 + $0x8] sm:$0xff]
        %v3292 = vld [vmem:[%s3289 + $0x10] sm:$0xff]
        %v3293 = vld [vmem:[%s3289 + $0x18] sm:$0xff]
        %v3294 = vld [vmem:[%s3289 + $0x20] sm:$0xff]
        %v3295 = vld [vmem:[%s3289 + $0x28] sm:$0xff]
        %v3296 = vld [vmem:[%s3289 + $0x30] sm:$0xff]
        %v3297 = vld [vmem:[%s3289 + $0x38] sm:$0xff]
        %v3298 = vld [vmem:[%s3289 + $0x40] sm:$0xff]
        %v3299 = vld [vmem:[%s3289 + $0x48] sm:$0xff]
        %v3300 = vld [vmem:[%s3289 + $0x50] sm:$0xff]
        %v3301 = vld [vmem:[%s3289 + $0x58] sm:$0xff]
        %v3302 = vld [vmem:[%s3289 + $0x60] sm:$0xff]
        %v3303 = vld [vmem:[%s3289 + $0x68] sm:$0xff]
        %v3304 = vld [vmem:[%s3289 + $0x70] sm:$0xff]
        %v3305 = vld [vmem:[%s3289 + $0x78] sm:$0xff]
        %3310 = vrot.lane.b32.xlu0 %v3268, 120
        %v3311 = vpop.permute.xlu0 %3310
        %3312 = vrot.lane.b32.xlu0 %v3287, 120
        %v3313 = vpop.permute.xlu0 %3312
        %3314 = vrot.lane.b32.xlu0 %v3269, 120
        %v3315 = vpop.permute.xlu0 %3314
        %3316 = vrot.lane.b32.xlu0 %v3288, 120
        %v3317 = vpop.permute.xlu0 %3316
        %v3318 = vsel %vm262, %v3311, %v3313
        %v3319 = vsel %vm262, %v3315, %v3317
        %3322 = vmatprep.subr.mxu0 0.0
        %3323 = vmatpush1.msra.mxu0 %v3305
        %3324 = vmatprep.subr.mxu0 0.0
        %3325 = vmatpush1.msra.mxu0 %v3304
        %3326 = vmatprep.subr.mxu0 0.0
        %3327 = vmatpush1.msra.mxu0 %v3303
        %3328 = vmatprep.subr.mxu0 0.0
        %3329 = vmatpush1.msra.mxu0 %v3302
        %3330 = vmatprep.subr.mxu0 0.0
        %3331 = vmatpush1.msra.mxu0 %v3301
        %3332 = vmatprep.subr.mxu0 0.0
        %3333 = vmatpush1.msra.mxu0 %v3300
        %3334 = vmatprep.subr.mxu0 0.0
        %3335 = vmatpush1.msra.mxu0 %v3299
        %3336 = vmatprep.subr.mxu0 0.0
        %3337 = vmatpush1.msra.mxu0 %v3298
        %3338 = vmatprep.subr.mxu0 0.0
        %3339 = vmatpush1.msra.mxu0 %v3297
        %3340 = vmatprep.subr.mxu0 0.0
        %3341 = vmatpush1.msra.mxu0 %v3296
        %3342 = vmatprep.subr.mxu0 0.0
        %3343 = vmatpush1.msra.mxu0 %v3295
        %3344 = vmatprep.subr.mxu0 0.0
        %3345 = vmatpush1.msra.mxu0 %v3294
        %3346 = vmatprep.subr.mxu0 0.0
        %3347 = vmatpush1.msra.mxu0 %v3293
        %3348 = vmatprep.subr.mxu0 0.0
        %3349 = vmatpush1.msra.mxu0 %v3292
        %3350 = vmatprep.subr.mxu0 0.0
        %3351 = vmatpush1.msra.mxu0 %v3291
        %3352 = vmatprep.subr.mxu0 0.0
        %3353 = vmatpush1.msra.mxu0 %v3290
        %3354 = vmatprep.subr.mxu0 0.0
        %3355 = vmatpush2.msra.mxu0 0.0
        %3356 = vmatprep.subr.mxu0 0.0
        %3357 = vmatpush2.msra.mxu0 0.0
        %3358 = vmatprep.subr.mxu0 0.0
        %3359 = vmatpush2.msra.mxu0 0.0
        %3360 = vmatprep.subr.mxu0 0.0
        %3361 = vmatpush2.msra.mxu0 0.0
        %3362 = vmatprep.subr.mxu0 0.0
        %3363 = vmatpush2.msra.mxu0 0.0
        %3364 = vmatprep.subr.mxu0 0.0
        %3365 = vmatpush2.msra.mxu0 0.0
        %3366 = vmatprep.subr.mxu0 0.0
        %3367 = vmatpush2.msra.mxu0 0.0
        %3368 = vmatprep.subr.mxu0 0.0
        %3369 = vmatpush2.msra.mxu0 0.0
        %3370 = vmatprep.subr.mxu0 0.0
        %3371 = vmatpush2.msra.mxu0 0.0
        %3372 = vmatprep.subr.mxu0 0.0
        %3373 = vmatpush2.msra.mxu0 0.0
        %3374 = vmatprep.subr.mxu0 0.0
        %3375 = vmatpush2.msra.mxu0 0.0
        %3376 = vmatprep.subr.mxu0 0.0
        %3377 = vmatpush2.msra.mxu0 0.0
        %3378 = vmatprep.subr.mxu0 0.0
        %3379 = vmatpush2.msra.mxu0 0.0
        %3380 = vmatprep.subr.mxu0 0.0
        %3381 = vmatpush2.msra.mxu0 0.0
        %3382 = vmatprep.subr.mxu0 0.0
        %3383 = vmatpush2.msra.mxu0 0.0
        %3384 = vmatprep.subr.mxu0 0.0
        %3385 = vmatpush2.msra.mxu0 0.0
        %3386 = vmatprep.mubr.f32.mxu0 0.0
        %3387 = vmatmul.mubr.f32.gmra.mxu0 %v3318
        %v3388 = vpop.f32.mrf.mxu0
        %v3389 = vadd.f32 0.0, %v3388
        %v3390 = vpop.f32.mrf.mxu0
        %3391 = vmatprep.mubr.f32.mxu0 0.0
        %3392 = vmatmul.mubr.f32.gmra.mxu0 %v3319
        %v3393 = vpop.f32.mrf.mxu0
        %v3394 = vadd.f32 0.0, %v3393
        %v3395 = vpop.f32.mrf.mxu0
        %3396 = vdwg.mxu0
        %3397 = vmatprep.subr.mxu0 0.0
        %3398 = vmatpush1.msra.mxu0 %v3286
        %3399 = vmatprep.subr.mxu0 0.0
        %3400 = vmatpush1.msra.mxu0 %v3285
        %3401 = vmatprep.subr.mxu0 0.0
        %3402 = vmatpush1.msra.mxu0 %v3284
        %3403 = vmatprep.subr.mxu0 0.0
        %3404 = vmatpush1.msra.mxu0 %v3283
        %3405 = vmatprep.subr.mxu0 0.0
        %3406 = vmatpush1.msra.mxu0 %v3282
        %3407 = vmatprep.subr.mxu0 0.0
        %3408 = vmatpush1.msra.mxu0 %v3281
        %3409 = vmatprep.subr.mxu0 0.0
        %3410 = vmatpush1.msra.mxu0 %v3280
        %3411 = vmatprep.subr.mxu0 0.0
        %3412 = vmatpush1.msra.mxu0 %v3279
        %3413 = vmatprep.subr.mxu0 0.0
        %3414 = vmatpush1.msra.mxu0 %v3278
        %3415 = vmatprep.subr.mxu0 0.0
        %3416 = vmatpush1.msra.mxu0 %v3277
        %3417 = vmatprep.subr.mxu0 0.0
        %3418 = vmatpush1.msra.mxu0 %v3276
        %3419 = vmatprep.subr.mxu0 0.0
        %3420 = vmatpush1.msra.mxu0 %v3275
        %3421 = vmatprep.subr.mxu0 0.0
        %3422 = vmatpush1.msra.mxu0 %v3274
        %3423 = vmatprep.subr.mxu0 0.0
        %3424 = vmatpush1.msra.mxu0 %v3273
        %3425 = vmatprep.subr.mxu0 0.0
        %3426 = vmatpush1.msra.mxu0 %v3272
        %3427 = vmatprep.subr.mxu0 0.0
        %3428 = vmatpush1.msra.mxu0 %v3271
        %3429 = vmatprep.subr.mxu0 0.0
        %3430 = vmatpush2.msra.mxu0 0.0
        %3431 = vmatprep.subr.mxu0 0.0
        %3432 = vmatpush2.msra.mxu0 0.0
        %3433 = vmatprep.subr.mxu0 0.0
        %3434 = vmatpush2.msra.mxu0 0.0
        %3435 = vmatprep.subr.mxu0 0.0
        %3436 = vmatpush2.msra.mxu0 0.0
        %3437 = vmatprep.subr.mxu0 0.0
        %3438 = vmatpush2.msra.mxu0 0.0
        %3439 = vmatprep.subr.mxu0 0.0
        %3440 = vmatpush2.msra.mxu0 0.0
        %3441 = vmatprep.subr.mxu0 0.0
        %3442 = vmatpush2.msra.mxu0 0.0
        %3443 = vmatprep.subr.mxu0 0.0
        %3444 = vmatpush2.msra.mxu0 0.0
        %3445 = vmatprep.subr.mxu0 0.0
        %3446 = vmatpush2.msra.mxu0 0.0
        %3447 = vmatprep.subr.mxu0 0.0
        %3448 = vmatpush2.msra.mxu0 0.0
        %3449 = vmatprep.subr.mxu0 0.0
        %3450 = vmatpush2.msra.mxu0 0.0
        %3451 = vmatprep.subr.mxu0 0.0
        %3452 = vmatpush2.msra.mxu0 0.0
        %3453 = vmatprep.subr.mxu0 0.0
        %3454 = vmatpush2.msra.mxu0 0.0
        %3455 = vmatprep.subr.mxu0 0.0
        %3456 = vmatpush2.msra.mxu0 0.0
        %3457 = vmatprep.subr.mxu0 0.0
        %3458 = vmatpush2.msra.mxu0 0.0
        %3459 = vmatprep.subr.mxu0 0.0
        %3460 = vmatpush2.msra.mxu0 0.0
        %3461 = vmatprep.mubr.f32.mxu0 0.0
        %3462 = vmatmul.mubr.f32.gmra.mxu0 %v3268
        %v3463 = vpop.f32.mrf.mxu0
        %v3464 = vadd.f32 %v3389, %v3463
        %v3465 = vpop.f32.mrf.mxu0
        %3466 = vmatprep.mubr.f32.mxu0 0.0
        %3467 = vmatmul.mubr.f32.gmra.mxu0 %v3269
        %v3468 = vpop.f32.mrf.mxu0
        %v3469 = vadd.f32 %v3394, %v3468
        %v3470 = vpop.f32.mrf.mxu0
        %3471 = vdwg.mxu0
        %s3472 = scalar_lea.vmem [#allocation4], 3712
        %v3473 = vld [vmem:[%s3472] sm:$0xff]
        %v3474 = vld [vmem:[%s3472 + $0x8] sm:$0xff]
        %v3475 = vld [vmem:[%s3472 + $0x10] sm:$0xff]
        %v3476 = vld [vmem:[%s3472 + $0x18] sm:$0xff]
        %v3477 = vld [vmem:[%s3472 + $0x20] sm:$0xff]
        %v3478 = vld [vmem:[%s3472 + $0x28] sm:$0xff]
        %v3479 = vld [vmem:[%s3472 + $0x30] sm:$0xff]
        %v3480 = vld [vmem:[%s3472 + $0x38] sm:$0xff]
        %v3481 = vld [vmem:[%s3472 + $0x40] sm:$0xff]
        %v3482 = vld [vmem:[%s3472 + $0x48] sm:$0xff]
        %v3483 = vld [vmem:[%s3472 + $0x50] sm:$0xff]
        %v3484 = vld [vmem:[%s3472 + $0x58] sm:$0xff]
        %v3485 = vld [vmem:[%s3472 + $0x60] sm:$0xff]
        %v3486 = vld [vmem:[%s3472 + $0x68] sm:$0xff]
        %v3487 = vld [vmem:[%s3472 + $0x70] sm:$0xff]
        %v3488 = vld [vmem:[%s3472 + $0x78] sm:$0xff]
        %3489 = vrot.lane.b32.xlu0 %v3268, 112
        %v3490 = vpop.permute.xlu0 %3489
        %3491 = vrot.lane.b32.xlu0 %v3287, 112
        %v3492 = vpop.permute.xlu0 %3491
        %3493 = vrot.lane.b32.xlu0 %v3269, 112
        %v3494 = vpop.permute.xlu0 %3493
        %3495 = vrot.lane.b32.xlu0 %v3288, 112
        %v3496 = vpop.permute.xlu0 %3495
        %v3497 = vsel %vm442, %v3490, %v3492
        %v3498 = vsel %vm442, %v3494, %v3496
        %3501 = vmatprep.subr.mxu0 0.0
        %3502 = vmatpush1.msra.mxu0 %v3488
        %3503 = vmatprep.subr.mxu0 0.0
        %3504 = vmatpush1.msra.mxu0 %v3487
        %3505 = vmatprep.subr.mxu0 0.0
        %3506 = vmatpush1.msra.mxu0 %v3486
        %3507 = vmatprep.subr.mxu0 0.0
        %3508 = vmatpush1.msra.mxu0 %v3485
        %3509 = vmatprep.subr.mxu0 0.0
        %3510 = vmatpush1.msra.mxu0 %v3484
        %3511 = vmatprep.subr.mxu0 0.0
        %3512 = vmatpush1.msra.mxu0 %v3483
        %3513 = vmatprep.subr.mxu0 0.0
        %3514 = vmatpush1.msra.mxu0 %v3482
        %3515 = vmatprep.subr.mxu0 0.0
        %3516 = vmatpush1.msra.mxu0 %v3481
        %3517 = vmatprep.subr.mxu0 0.0
        %3518 = vmatpush1.msra.mxu0 %v3480
        %3519 = vmatprep.subr.mxu0 0.0
        %3520 = vmatpush1.msra.mxu0 %v3479
        %3521 = vmatprep.subr.mxu0 0.0
        %3522 = vmatpush1.msra.mxu0 %v3478
        %3523 = vmatprep.subr.mxu0 0.0
        %3524 = vmatpush1.msra.mxu0 %v3477
        %3525 = vmatprep.subr.mxu0 0.0
        %3526 = vmatpush1.msra.mxu0 %v3476
        %3527 = vmatprep.subr.mxu0 0.0
        %3528 = vmatpush1.msra.mxu0 %v3475
        %3529 = vmatprep.subr.mxu0 0.0
        %3530 = vmatpush1.msra.mxu0 %v3474
        %3531 = vmatprep.subr.mxu0 0.0
        %3532 = vmatpush1.msra.mxu0 %v3473
        %3533 = vmatprep.subr.mxu0 0.0
        %3534 = vmatpush2.msra.mxu0 0.0
        %3535 = vmatprep.subr.mxu0 0.0
        %3536 = vmatpush2.msra.mxu0 0.0
        %3537 = vmatprep.subr.mxu0 0.0
        %3538 = vmatpush2.msra.mxu0 0.0
        %3539 = vmatprep.subr.mxu0 0.0
        %3540 = vmatpush2.msra.mxu0 0.0
        %3541 = vmatprep.subr.mxu0 0.0
        %3542 = vmatpush2.msra.mxu0 0.0
        %3543 = vmatprep.subr.mxu0 0.0
        %3544 = vmatpush2.msra.mxu0 0.0
        %3545 = vmatprep.subr.mxu0 0.0
        %3546 = vmatpush2.msra.mxu0 0.0
        %3547 = vmatprep.subr.mxu0 0.0
        %3548 = vmatpush2.msra.mxu0 0.0
        %3549 = vmatprep.subr.mxu0 0.0
        %3550 = vmatpush2.msra.mxu0 0.0
        %3551 = vmatprep.subr.mxu0 0.0
        %3552 = vmatpush2.msra.mxu0 0.0
        %3553 = vmatprep.subr.mxu0 0.0
        %3554 = vmatpush2.msra.mxu0 0.0
        %3555 = vmatprep.subr.mxu0 0.0
        %3556 = vmatpush2.msra.mxu0 0.0
        %3557 = vmatprep.subr.mxu0 0.0
        %3558 = vmatpush2.msra.mxu0 0.0
        %3559 = vmatprep.subr.mxu0 0.0
        %3560 = vmatpush2.msra.mxu0 0.0
        %3561 = vmatprep.subr.mxu0 0.0
        %3562 = vmatpush2.msra.mxu0 0.0
        %3563 = vmatprep.subr.mxu0 0.0
        %3564 = vmatpush2.msra.mxu0 0.0
        %3565 = vmatprep.mubr.f32.mxu0 0.0
        %3566 = vmatmul.mubr.f32.gmra.mxu0 %v3497
        %v3567 = vpop.f32.mrf.mxu0
        %v3568 = vadd.f32 0.0, %v3567
        %v3569 = vpop.f32.mrf.mxu0
        %3570 = vmatprep.mubr.f32.mxu0 0.0
        %3571 = vmatmul.mubr.f32.gmra.mxu0 %v3498
        %v3572 = vpop.f32.mrf.mxu0
        %v3573 = vadd.f32 0.0, %v3572
        %v3574 = vpop.f32.mrf.mxu0
        %3575 = vdwg.mxu0
        %v3576 = vadd.f32 %v3464, %v3568
        %v3577 = vadd.f32 %v3469, %v3573
        %v3578 = vld [vmem:[#allocation2] sm:$0xfe]
        %v3579 = vld [vmem:[#allocation2 + $0x10] sm:$0xff]
        %v3580 = vld [vmem:[#allocation2 + $0x20] sm:$0x1]
        %s3581 = scalar_lea.vmem [#allocation4], 3840
        %v3582 = vld [vmem:[%s3581] sm:$0xff]
        %v3583 = vld [vmem:[%s3581 + $0x8] sm:$0xff]
        %v3584 = vld [vmem:[%s3581 + $0x10] sm:$0xff]
        %v3585 = vld [vmem:[%s3581 + $0x18] sm:$0xff]
        %v3586 = vld [vmem:[%s3581 + $0x20] sm:$0xff]
        %v3587 = vld [vmem:[%s3581 + $0x28] sm:$0xff]
        %v3588 = vld [vmem:[%s3581 + $0x30] sm:$0xff]
        %v3589 = vld [vmem:[%s3581 + $0x38] sm:$0xff]
        %v3590 = vld [vmem:[%s3581 + $0x40] sm:$0xff]
        %v3591 = vld [vmem:[%s3581 + $0x48] sm:$0xff]
        %v3592 = vld [vmem:[%s3581 + $0x50] sm:$0xff]
        %v3593 = vld [vmem:[%s3581 + $0x58] sm:$0xff]
        %v3594 = vld [vmem:[%s3581 + $0x60] sm:$0xff]
        %v3595 = vld [vmem:[%s3581 + $0x68] sm:$0xff]
        %v3596 = vld [vmem:[%s3581 + $0x70] sm:$0xff]
        %v3597 = vld [vmem:[%s3581 + $0x78] sm:$0xff]
        %v3601 = vrot.slane %v3578, 1
        %v3602 = vrot.slane %v3579, 1
        %v3603 = vsel %vm547, %v3601, %v3602
        %v3604 = vrot.slane %v3580, 1
        %v3605 = vsel %vm547, %v3602, %v3604
        %3608 = vmatprep.subr.mxu0 0.0
        %3609 = vmatpush1.msra.mxu0 %v3597
        %3610 = vmatprep.subr.mxu0 0.0
        %3611 = vmatpush1.msra.mxu0 %v3596
        %3612 = vmatprep.subr.mxu0 0.0
        %3613 = vmatpush1.msra.mxu0 %v3595
        %3614 = vmatprep.subr.mxu0 0.0
        %3615 = vmatpush1.msra.mxu0 %v3594
        %3616 = vmatprep.subr.mxu0 0.0
        %3617 = vmatpush1.msra.mxu0 %v3593
        %3618 = vmatprep.subr.mxu0 0.0
        %3619 = vmatpush1.msra.mxu0 %v3592
        %3620 = vmatprep.subr.mxu0 0.0
        %3621 = vmatpush1.msra.mxu0 %v3591
        %3622 = vmatprep.subr.mxu0 0.0
        %3623 = vmatpush1.msra.mxu0 %v3590
        %3624 = vmatprep.subr.mxu0 0.0
        %3625 = vmatpush1.msra.mxu0 %v3589
        %3626 = vmatprep.subr.mxu0 0.0
        %3627 = vmatpush1.msra.mxu0 %v3588
        %3628 = vmatprep.subr.mxu0 0.0
        %3629 = vmatpush1.msra.mxu0 %v3587
        %3630 = vmatprep.subr.mxu0 0.0
        %3631 = vmatpush1.msra.mxu0 %v3586
        %3632 = vmatprep.subr.mxu0 0.0
        %3633 = vmatpush1.msra.mxu0 %v3585
        %3634 = vmatprep.subr.mxu0 0.0
        %3635 = vmatpush1.msra.mxu0 %v3584
        %3636 = vmatprep.subr.mxu0 0.0
        %3637 = vmatpush1.msra.mxu0 %v3583
        %3638 = vmatprep.subr.mxu0 0.0
        %3639 = vmatpush1.msra.mxu0 %v3582
        %3640 = vmatprep.subr.mxu0 0.0
        %3641 = vmatpush2.msra.mxu0 0.0
        %3642 = vmatprep.subr.mxu0 0.0
        %3643 = vmatpush2.msra.mxu0 0.0
        %3644 = vmatprep.subr.mxu0 0.0
        %3645 = vmatpush2.msra.mxu0 0.0
        %3646 = vmatprep.subr.mxu0 0.0
        %3647 = vmatpush2.msra.mxu0 0.0
        %3648 = vmatprep.subr.mxu0 0.0
        %3649 = vmatpush2.msra.mxu0 0.0
        %3650 = vmatprep.subr.mxu0 0.0
        %3651 = vmatpush2.msra.mxu0 0.0
        %3652 = vmatprep.subr.mxu0 0.0
        %3653 = vmatpush2.msra.mxu0 0.0
        %3654 = vmatprep.subr.mxu0 0.0
        %3655 = vmatpush2.msra.mxu0 0.0
        %3656 = vmatprep.subr.mxu0 0.0
        %3657 = vmatpush2.msra.mxu0 0.0
        %3658 = vmatprep.subr.mxu0 0.0
        %3659 = vmatpush2.msra.mxu0 0.0
        %3660 = vmatprep.subr.mxu0 0.0
        %3661 = vmatpush2.msra.mxu0 0.0
        %3662 = vmatprep.subr.mxu0 0.0
        %3663 = vmatpush2.msra.mxu0 0.0
        %3664 = vmatprep.subr.mxu0 0.0
        %3665 = vmatpush2.msra.mxu0 0.0
        %3666 = vmatprep.subr.mxu0 0.0
        %3667 = vmatpush2.msra.mxu0 0.0
        %3668 = vmatprep.subr.mxu0 0.0
        %3669 = vmatpush2.msra.mxu0 0.0
        %3670 = vmatprep.subr.mxu0 0.0
        %3671 = vmatpush2.msra.mxu0 0.0
        %3672 = vmatprep.mubr.f32.mxu0 0.0
        %3673 = vmatmul.mubr.f32.gmra.mxu0 %v3603
        %v3674 = vpop.f32.mrf.mxu0
        %v3675 = vadd.f32 0.0, %v3674
        %v3676 = vpop.f32.mrf.mxu0
        %3677 = vmatprep.mubr.f32.mxu0 0.0
        %3678 = vmatmul.mubr.f32.gmra.mxu0 %v3605
        %v3679 = vpop.f32.mrf.mxu0
        %v3680 = vadd.f32 0.0, %v3679
        %v3681 = vpop.f32.mrf.mxu0
        %3682 = vdwg.mxu0
        %v3683 = vadd.f32 %v3576, %v3675
        %v3684 = vadd.f32 %v3577, %v3680
        %v3685 = vld [vmem:[#allocation2] sm:$0xfe]
        %v3686 = vld [vmem:[#allocation2 + $0x8] sm:$0xfe]
        %v3687 = vld [vmem:[#allocation2 + $0x10] sm:$0xff]
        %v3688 = vld [vmem:[#allocation2 + $0x18] sm:$0xff]
        %v3689 = vld [vmem:[#allocation2 + $0x20] sm:$0x1]
        %v3690 = vld [vmem:[#allocation2 + $0x28] sm:$0x1]
        %s3691 = scalar_lea.vmem [#allocation4], 3968
        %v3692 = vld [vmem:[%s3691] sm:$0xff]
        %v3693 = vld [vmem:[%s3691 + $0x8] sm:$0xff]
        %v3694 = vld [vmem:[%s3691 + $0x10] sm:$0xff]
        %v3695 = vld [vmem:[%s3691 + $0x18] sm:$0xff]
        %v3696 = vld [vmem:[%s3691 + $0x20] sm:$0xff]
        %v3697 = vld [vmem:[%s3691 + $0x28] sm:$0xff]
        %v3698 = vld [vmem:[%s3691 + $0x30] sm:$0xff]
        %v3699 = vld [vmem:[%s3691 + $0x38] sm:$0xff]
        %v3700 = vld [vmem:[%s3691 + $0x40] sm:$0xff]
        %v3701 = vld [vmem:[%s3691 + $0x48] sm:$0xff]
        %v3702 = vld [vmem:[%s3691 + $0x50] sm:$0xff]
        %v3703 = vld [vmem:[%s3691 + $0x58] sm:$0xff]
        %v3704 = vld [vmem:[%s3691 + $0x60] sm:$0xff]
        %v3705 = vld [vmem:[%s3691 + $0x68] sm:$0xff]
        %v3706 = vld [vmem:[%s3691 + $0x70] sm:$0xff]
        %v3707 = vld [vmem:[%s3691 + $0x78] sm:$0xff]
        %v3714 = vrot.slane %v3685, 1
        %v3715 = vrot.slane %v3687, 1
        %v3716 = vsel %vm547, %v3714, %v3715
        %v3717 = vrot.slane %v3686, 1
        %v3718 = vrot.slane %v3688, 1
        %v3719 = vsel %vm547, %v3717, %v3718
        %v3720 = vrot.slane %v3689, 1
        %v3721 = vsel %vm547, %v3715, %v3720
        %v3722 = vrot.slane %v3690, 1
        %v3723 = vsel %vm547, %v3718, %v3722
        %3724 = vrot.lane.b32.xlu0 %v3716, 120
        %v3725 = vpop.permute.xlu0 %3724
        %3726 = vrot.lane.b32.xlu0 %v3719, 120
        %v3727 = vpop.permute.xlu0 %3726
        %3728 = vrot.lane.b32.xlu0 %v3721, 120
        %v3729 = vpop.permute.xlu0 %3728
        %3730 = vrot.lane.b32.xlu0 %v3723, 120
        %v3731 = vpop.permute.xlu0 %3730
        %v3732 = vsel %vm262, %v3725, %v3727
        %v3733 = vsel %vm262, %v3729, %v3731
        %3736 = vmatprep.subr.mxu0 0.0
        %3737 = vmatpush1.msra.mxu0 %v3707
        %3738 = vmatprep.subr.mxu0 0.0
        %3739 = vmatpush1.msra.mxu0 %v3706
        %3740 = vmatprep.subr.mxu0 0.0
        %3741 = vmatpush1.msra.mxu0 %v3705
        %3742 = vmatprep.subr.mxu0 0.0
        %3743 = vmatpush1.msra.mxu0 %v3704
        %3744 = vmatprep.subr.mxu0 0.0
        %3745 = vmatpush1.msra.mxu0 %v3703
        %3746 = vmatprep.subr.mxu0 0.0
        %3747 = vmatpush1.msra.mxu0 %v3702
        %3748 = vmatprep.subr.mxu0 0.0
        %3749 = vmatpush1.msra.mxu0 %v3701
        %3750 = vmatprep.subr.mxu0 0.0
        %3751 = vmatpush1.msra.mxu0 %v3700
        %3752 = vmatprep.subr.mxu0 0.0
        %3753 = vmatpush1.msra.mxu0 %v3699
        %3754 = vmatprep.subr.mxu0 0.0
        %3755 = vmatpush1.msra.mxu0 %v3698
        %3756 = vmatprep.subr.mxu0 0.0
        %3757 = vmatpush1.msra.mxu0 %v3697
        %3758 = vmatprep.subr.mxu0 0.0
        %3759 = vmatpush1.msra.mxu0 %v3696
        %3760 = vmatprep.subr.mxu0 0.0
        %3761 = vmatpush1.msra.mxu0 %v3695
        %3762 = vmatprep.subr.mxu0 0.0
        %3763 = vmatpush1.msra.mxu0 %v3694
        %3764 = vmatprep.subr.mxu0 0.0
        %3765 = vmatpush1.msra.mxu0 %v3693
        %3766 = vmatprep.subr.mxu0 0.0
        %3767 = vmatpush1.msra.mxu0 %v3692
        %3768 = vmatprep.subr.mxu0 0.0
        %3769 = vmatpush2.msra.mxu0 0.0
        %3770 = vmatprep.subr.mxu0 0.0
        %3771 = vmatpush2.msra.mxu0 0.0
        %3772 = vmatprep.subr.mxu0 0.0
        %3773 = vmatpush2.msra.mxu0 0.0
        %3774 = vmatprep.subr.mxu0 0.0
        %3775 = vmatpush2.msra.mxu0 0.0
        %3776 = vmatprep.subr.mxu0 0.0
        %3777 = vmatpush2.msra.mxu0 0.0
        %3778 = vmatprep.subr.mxu0 0.0
        %3779 = vmatpush2.msra.mxu0 0.0
        %3780 = vmatprep.subr.mxu0 0.0
        %3781 = vmatpush2.msra.mxu0 0.0
        %3782 = vmatprep.subr.mxu0 0.0
        %3783 = vmatpush2.msra.mxu0 0.0
        %3784 = vmatprep.subr.mxu0 0.0
        %3785 = vmatpush2.msra.mxu0 0.0
        %3786 = vmatprep.subr.mxu0 0.0
        %3787 = vmatpush2.msra.mxu0 0.0
        %3788 = vmatprep.subr.mxu0 0.0
        %3789 = vmatpush2.msra.mxu0 0.0
        %3790 = vmatprep.subr.mxu0 0.0
        %3791 = vmatpush2.msra.mxu0 0.0
        %3792 = vmatprep.subr.mxu0 0.0
        %3793 = vmatpush2.msra.mxu0 0.0
        %3794 = vmatprep.subr.mxu0 0.0
        %3795 = vmatpush2.msra.mxu0 0.0
        %3796 = vmatprep.subr.mxu0 0.0
        %3797 = vmatpush2.msra.mxu0 0.0
        %3798 = vmatprep.subr.mxu0 0.0
        %3799 = vmatpush2.msra.mxu0 0.0
        %3800 = vmatprep.mubr.f32.mxu0 0.0
        %3801 = vmatmul.mubr.f32.gmra.mxu0 %v3732
        %v3802 = vpop.f32.mrf.mxu0
        %v3803 = vadd.f32 0.0, %v3802
        %v3804 = vpop.f32.mrf.mxu0
        %3805 = vmatprep.mubr.f32.mxu0 0.0
        %3806 = vmatmul.mubr.f32.gmra.mxu0 %v3733
        %v3807 = vpop.f32.mrf.mxu0
        %v3808 = vadd.f32 0.0, %v3807
        %v3809 = vpop.f32.mrf.mxu0
        %3810 = vdwg.mxu0
        %v3811 = vadd.f32 %v3683, %v3803
        %v3812 = vadd.f32 %v3684, %v3808
        %s3813 = scalar_lea.vmem [#allocation4], 4096
        %v3814 = vld [vmem:[%s3813] sm:$0xff]
        %v3815 = vld [vmem:[%s3813 + $0x8] sm:$0xff]
        %v3816 = vld [vmem:[%s3813 + $0x10] sm:$0xff]
        %v3817 = vld [vmem:[%s3813 + $0x18] sm:$0xff]
        %v3818 = vld [vmem:[%s3813 + $0x20] sm:$0xff]
        %v3819 = vld [vmem:[%s3813 + $0x28] sm:$0xff]
        %v3820 = vld [vmem:[%s3813 + $0x30] sm:$0xff]
        %v3821 = vld [vmem:[%s3813 + $0x38] sm:$0xff]
        %v3822 = vld [vmem:[%s3813 + $0x40] sm:$0xff]
        %v3823 = vld [vmem:[%s3813 + $0x48] sm:$0xff]
        %v3824 = vld [vmem:[%s3813 + $0x50] sm:$0xff]
        %v3825 = vld [vmem:[%s3813 + $0x58] sm:$0xff]
        %v3826 = vld [vmem:[%s3813 + $0x60] sm:$0xff]
        %v3827 = vld [vmem:[%s3813 + $0x68] sm:$0xff]
        %v3828 = vld [vmem:[%s3813 + $0x70] sm:$0xff]
        %v3829 = vld [vmem:[%s3813 + $0x78] sm:$0xff]
        %3830 = vrot.lane.b32.xlu0 %v3716, 112
        %v3831 = vpop.permute.xlu0 %3830
        %3832 = vrot.lane.b32.xlu0 %v3719, 112
        %v3833 = vpop.permute.xlu0 %3832
        %3834 = vrot.lane.b32.xlu0 %v3721, 112
        %v3835 = vpop.permute.xlu0 %3834
        %3836 = vrot.lane.b32.xlu0 %v3723, 112
        %v3837 = vpop.permute.xlu0 %3836
        %v3838 = vsel %vm442, %v3831, %v3833
        %v3839 = vsel %vm442, %v3835, %v3837
        %3842 = vmatprep.subr.mxu0 0.0
        %3843 = vmatpush1.msra.mxu0 %v3829
        %3844 = vmatprep.subr.mxu0 0.0
        %3845 = vmatpush1.msra.mxu0 %v3828
        %3846 = vmatprep.subr.mxu0 0.0
        %3847 = vmatpush1.msra.mxu0 %v3827
        %3848 = vmatprep.subr.mxu0 0.0
        %3849 = vmatpush1.msra.mxu0 %v3826
        %3850 = vmatprep.subr.mxu0 0.0
        %3851 = vmatpush1.msra.mxu0 %v3825
        %3852 = vmatprep.subr.mxu0 0.0
        %3853 = vmatpush1.msra.mxu0 %v3824
        %3854 = vmatprep.subr.mxu0 0.0
        %3855 = vmatpush1.msra.mxu0 %v3823
        %3856 = vmatprep.subr.mxu0 0.0
        %3857 = vmatpush1.msra.mxu0 %v3822
        %3858 = vmatprep.subr.mxu0 0.0
        %3859 = vmatpush1.msra.mxu0 %v3821
        %3860 = vmatprep.subr.mxu0 0.0
        %3861 = vmatpush1.msra.mxu0 %v3820
        %3862 = vmatprep.subr.mxu0 0.0
        %3863 = vmatpush1.msra.mxu0 %v3819
        %3864 = vmatprep.subr.mxu0 0.0
        %3865 = vmatpush1.msra.mxu0 %v3818
        %3866 = vmatprep.subr.mxu0 0.0
        %3867 = vmatpush1.msra.mxu0 %v3817
        %3868 = vmatprep.subr.mxu0 0.0
        %3869 = vmatpush1.msra.mxu0 %v3816
        %3870 = vmatprep.subr.mxu0 0.0
        %3871 = vmatpush1.msra.mxu0 %v3815
        %3872 = vmatprep.subr.mxu0 0.0
        %3873 = vmatpush1.msra.mxu0 %v3814
        %3874 = vmatprep.subr.mxu0 0.0
        %3875 = vmatpush2.msra.mxu0 0.0
        %3876 = vmatprep.subr.mxu0 0.0
        %3877 = vmatpush2.msra.mxu0 0.0
        %3878 = vmatprep.subr.mxu0 0.0
        %3879 = vmatpush2.msra.mxu0 0.0
        %3880 = vmatprep.subr.mxu0 0.0
        %3881 = vmatpush2.msra.mxu0 0.0
        %3882 = vmatprep.subr.mxu0 0.0
        %3883 = vmatpush2.msra.mxu0 0.0
        %3884 = vmatprep.subr.mxu0 0.0
        %3885 = vmatpush2.msra.mxu0 0.0
        %3886 = vmatprep.subr.mxu0 0.0
        %3887 = vmatpush2.msra.mxu0 0.0
        %3888 = vmatprep.subr.mxu0 0.0
        %3889 = vmatpush2.msra.mxu0 0.0
        %3890 = vmatprep.subr.mxu0 0.0
        %3891 = vmatpush2.msra.mxu0 0.0
        %3892 = vmatprep.subr.mxu0 0.0
        %3893 = vmatpush2.msra.mxu0 0.0
        %3894 = vmatprep.subr.mxu0 0.0
        %3895 = vmatpush2.msra.mxu0 0.0
        %3896 = vmatprep.subr.mxu0 0.0
        %3897 = vmatpush2.msra.mxu0 0.0
        %3898 = vmatprep.subr.mxu0 0.0
        %3899 = vmatpush2.msra.mxu0 0.0
        %3900 = vmatprep.subr.mxu0 0.0
        %3901 = vmatpush2.msra.mxu0 0.0
        %3902 = vmatprep.subr.mxu0 0.0
        %3903 = vmatpush2.msra.mxu0 0.0
        %3904 = vmatprep.subr.mxu0 0.0
        %3905 = vmatpush2.msra.mxu0 0.0
        %3906 = vmatprep.mubr.f32.mxu0 0.0
        %3907 = vmatmul.mubr.f32.gmra.mxu0 %v3838
        %v3908 = vpop.f32.mrf.mxu0
        %v3909 = vadd.f32 0.0, %v3908
        %v3910 = vpop.f32.mrf.mxu0
        %3911 = vmatprep.mubr.f32.mxu0 0.0
        %3912 = vmatmul.mubr.f32.gmra.mxu0 %v3839
        %v3913 = vpop.f32.mrf.mxu0
        %v3914 = vadd.f32 0.0, %v3913
        %v3915 = vpop.f32.mrf.mxu0
        %3916 = vdwg.mxu0
        %v3917 = vadd.f32 %v3811, %v3909
        %v3918 = vadd.f32 %v3812, %v3914
        %v3919 = vld [vmem:[#allocation2] sm:$0xfc]
        %v3920 = vld [vmem:[#allocation2 + $0x20] sm:$0x3]
        %s3921 = scalar_lea.vmem [#allocation4], 4224
        %v3922 = vld [vmem:[%s3921] sm:$0xff]
        %v3923 = vld [vmem:[%s3921 + $0x8] sm:$0xff]
        %v3924 = vld [vmem:[%s3921 + $0x10] sm:$0xff]
        %v3925 = vld [vmem:[%s3921 + $0x18] sm:$0xff]
        %v3926 = vld [vmem:[%s3921 + $0x20] sm:$0xff]
        %v3927 = vld [vmem:[%s3921 + $0x28] sm:$0xff]
        %v3928 = vld [vmem:[%s3921 + $0x30] sm:$0xff]
        %v3929 = vld [vmem:[%s3921 + $0x38] sm:$0xff]
        %v3930 = vld [vmem:[%s3921 + $0x40] sm:$0xff]
        %v3931 = vld [vmem:[%s3921 + $0x48] sm:$0xff]
        %v3932 = vld [vmem:[%s3921 + $0x50] sm:$0xff]
        %v3933 = vld [vmem:[%s3921 + $0x58] sm:$0xff]
        %v3934 = vld [vmem:[%s3921 + $0x60] sm:$0xff]
        %v3935 = vld [vmem:[%s3921 + $0x68] sm:$0xff]
        %v3936 = vld [vmem:[%s3921 + $0x70] sm:$0xff]
        %v3937 = vld [vmem:[%s3921 + $0x78] sm:$0xff]
        %v3940 = vrot.slane %v3919, 2
        %v3941 = vrot.slane %v3579, 2
        %v3942 = vsel %vm887, %v3940, %v3941
        %v3943 = vrot.slane %v3920, 2
        %v3944 = vsel %vm887, %v3941, %v3943
        %3947 = vmatprep.subr.mxu0 0.0
        %3948 = vmatpush1.msra.mxu0 %v3937
        %3949 = vmatprep.subr.mxu0 0.0
        %3950 = vmatpush1.msra.mxu0 %v3936
        %3951 = vmatprep.subr.mxu0 0.0
        %3952 = vmatpush1.msra.mxu0 %v3935
        %3953 = vmatprep.subr.mxu0 0.0
        %3954 = vmatpush1.msra.mxu0 %v3934
        %3955 = vmatprep.subr.mxu0 0.0
        %3956 = vmatpush1.msra.mxu0 %v3933
        %3957 = vmatprep.subr.mxu0 0.0
        %3958 = vmatpush1.msra.mxu0 %v3932
        %3959 = vmatprep.subr.mxu0 0.0
        %3960 = vmatpush1.msra.mxu0 %v3931
        %3961 = vmatprep.subr.mxu0 0.0
        %3962 = vmatpush1.msra.mxu0 %v3930
        %3963 = vmatprep.subr.mxu0 0.0
        %3964 = vmatpush1.msra.mxu0 %v3929
        %3965 = vmatprep.subr.mxu0 0.0
        %3966 = vmatpush1.msra.mxu0 %v3928
        %3967 = vmatprep.subr.mxu0 0.0
        %3968 = vmatpush1.msra.mxu0 %v3927
        %3969 = vmatprep.subr.mxu0 0.0
        %3970 = vmatpush1.msra.mxu0 %v3926
        %3971 = vmatprep.subr.mxu0 0.0
        %3972 = vmatpush1.msra.mxu0 %v3925
        %3973 = vmatprep.subr.mxu0 0.0
        %3974 = vmatpush1.msra.mxu0 %v3924
        %3975 = vmatprep.subr.mxu0 0.0
        %3976 = vmatpush1.msra.mxu0 %v3923
        %3977 = vmatprep.subr.mxu0 0.0
        %3978 = vmatpush1.msra.mxu0 %v3922
        %3979 = vmatprep.subr.mxu0 0.0
        %3980 = vmatpush2.msra.mxu0 0.0
        %3981 = vmatprep.subr.mxu0 0.0
        %3982 = vmatpush2.msra.mxu0 0.0
        %3983 = vmatprep.subr.mxu0 0.0
        %3984 = vmatpush2.msra.mxu0 0.0
        %3985 = vmatprep.subr.mxu0 0.0
        %3986 = vmatpush2.msra.mxu0 0.0
        %3987 = vmatprep.subr.mxu0 0.0
        %3988 = vmatpush2.msra.mxu0 0.0
        %3989 = vmatprep.subr.mxu0 0.0
        %3990 = vmatpush2.msra.mxu0 0.0
        %3991 = vmatprep.subr.mxu0 0.0
        %3992 = vmatpush2.msra.mxu0 0.0
        %3993 = vmatprep.subr.mxu0 0.0
        %3994 = vmatpush2.msra.mxu0 0.0
        %3995 = vmatprep.subr.mxu0 0.0
        %3996 = vmatpush2.msra.mxu0 0.0
        %3997 = vmatprep.subr.mxu0 0.0
        %3998 = vmatpush2.msra.mxu0 0.0
        %3999 = vmatprep.subr.mxu0 0.0
        %4000 = vmatpush2.msra.mxu0 0.0
        %4001 = vmatprep.subr.mxu0 0.0
        %4002 = vmatpush2.msra.mxu0 0.0
        %4003 = vmatprep.subr.mxu0 0.0
        %4004 = vmatpush2.msra.mxu0 0.0
        %4005 = vmatprep.subr.mxu0 0.0
        %4006 = vmatpush2.msra.mxu0 0.0
        %4007 = vmatprep.subr.mxu0 0.0
        %4008 = vmatpush2.msra.mxu0 0.0
        %4009 = vmatprep.subr.mxu0 0.0
        %4010 = vmatpush2.msra.mxu0 0.0
        %4011 = vmatprep.mubr.f32.mxu0 0.0
        %4012 = vmatmul.mubr.f32.gmra.mxu0 %v3942
        %v4013 = vpop.f32.mrf.mxu0
        %v4014 = vadd.f32 0.0, %v4013
        %v4015 = vpop.f32.mrf.mxu0
        %4016 = vmatprep.mubr.f32.mxu0 0.0
        %4017 = vmatmul.mubr.f32.gmra.mxu0 %v3944
        %v4018 = vpop.f32.mrf.mxu0
        %v4019 = vadd.f32 0.0, %v4018
        %v4020 = vpop.f32.mrf.mxu0
        %4021 = vdwg.mxu0
        %v4022 = vadd.f32 %v3917, %v4014
        %v4023 = vadd.f32 %v3918, %v4019
        %v4024 = vld [vmem:[#allocation2] sm:$0xfc]
        %v4025 = vld [vmem:[#allocation2 + $0x8] sm:$0xfc]
        %v4026 = vld [vmem:[#allocation2 + $0x20] sm:$0x3]
        %v4027 = vld [vmem:[#allocation2 + $0x28] sm:$0x3]
        %s4028 = scalar_lea.vmem [#allocation4], 4352
        %v4029 = vld [vmem:[%s4028] sm:$0xff]
        %v4030 = vld [vmem:[%s4028 + $0x8] sm:$0xff]
        %v4031 = vld [vmem:[%s4028 + $0x10] sm:$0xff]
        %v4032 = vld [vmem:[%s4028 + $0x18] sm:$0xff]
        %v4033 = vld [vmem:[%s4028 + $0x20] sm:$0xff]
        %v4034 = vld [vmem:[%s4028 + $0x28] sm:$0xff]
        %v4035 = vld [vmem:[%s4028 + $0x30] sm:$0xff]
        %v4036 = vld [vmem:[%s4028 + $0x38] sm:$0xff]
        %v4037 = vld [vmem:[%s4028 + $0x40] sm:$0xff]
        %v4038 = vld [vmem:[%s4028 + $0x48] sm:$0xff]
        %v4039 = vld [vmem:[%s4028 + $0x50] sm:$0xff]
        %v4040 = vld [vmem:[%s4028 + $0x58] sm:$0xff]
        %v4041 = vld [vmem:[%s4028 + $0x60] sm:$0xff]
        %v4042 = vld [vmem:[%s4028 + $0x68] sm:$0xff]
        %v4043 = vld [vmem:[%s4028 + $0x70] sm:$0xff]
        %v4044 = vld [vmem:[%s4028 + $0x78] sm:$0xff]
        %v4049 = vrot.slane %v4024, 2
        %v4050 = vrot.slane %v3687, 2
        %v4051 = vsel %vm887, %v4049, %v4050
        %v4052 = vrot.slane %v4025, 2
        %v4053 = vrot.slane %v3688, 2
        %v4054 = vsel %vm887, %v4052, %v4053
        %v4055 = vrot.slane %v4026, 2
        %v4056 = vsel %vm887, %v4050, %v4055
        %v4057 = vrot.slane %v4027, 2
        %v4058 = vsel %vm887, %v4053, %v4057
        %4059 = vrot.lane.b32.xlu0 %v4051, 120
        %v4060 = vpop.permute.xlu0 %4059
        %4061 = vrot.lane.b32.xlu0 %v4054, 120
        %v4062 = vpop.permute.xlu0 %4061
        %4063 = vrot.lane.b32.xlu0 %v4056, 120
        %v4064 = vpop.permute.xlu0 %4063
        %4065 = vrot.lane.b32.xlu0 %v4058, 120
        %v4066 = vpop.permute.xlu0 %4065
        %v4067 = vsel %vm262, %v4060, %v4062
        %v4068 = vsel %vm262, %v4064, %v4066
        %4071 = vmatprep.subr.mxu0 0.0
        %4072 = vmatpush1.msra.mxu0 %v4044
        %4073 = vmatprep.subr.mxu0 0.0
        %4074 = vmatpush1.msra.mxu0 %v4043
        %4075 = vmatprep.subr.mxu0 0.0
        %4076 = vmatpush1.msra.mxu0 %v4042
        %4077 = vmatprep.subr.mxu0 0.0
        %4078 = vmatpush1.msra.mxu0 %v4041
        %4079 = vmatprep.subr.mxu0 0.0
        %4080 = vmatpush1.msra.mxu0 %v4040
        %4081 = vmatprep.subr.mxu0 0.0
        %4082 = vmatpush1.msra.mxu0 %v4039
        %4083 = vmatprep.subr.mxu0 0.0
        %4084 = vmatpush1.msra.mxu0 %v4038
        %4085 = vmatprep.subr.mxu0 0.0
        %4086 = vmatpush1.msra.mxu0 %v4037
        %4087 = vmatprep.subr.mxu0 0.0
        %4088 = vmatpush1.msra.mxu0 %v4036
        %4089 = vmatprep.subr.mxu0 0.0
        %4090 = vmatpush1.msra.mxu0 %v4035
        %4091 = vmatprep.subr.mxu0 0.0
        %4092 = vmatpush1.msra.mxu0 %v4034
        %4093 = vmatprep.subr.mxu0 0.0
        %4094 = vmatpush1.msra.mxu0 %v4033
        %4095 = vmatprep.subr.mxu0 0.0
        %4096 = vmatpush1.msra.mxu0 %v4032
        %4097 = vmatprep.subr.mxu0 0.0
        %4098 = vmatpush1.msra.mxu0 %v4031
        %4099 = vmatprep.subr.mxu0 0.0
        %4100 = vmatpush1.msra.mxu0 %v4030
        %4101 = vmatprep.subr.mxu0 0.0
        %4102 = vmatpush1.msra.mxu0 %v4029
        %4103 = vmatprep.subr.mxu0 0.0
        %4104 = vmatpush2.msra.mxu0 0.0
        %4105 = vmatprep.subr.mxu0 0.0
        %4106 = vmatpush2.msra.mxu0 0.0
        %4107 = vmatprep.subr.mxu0 0.0
        %4108 = vmatpush2.msra.mxu0 0.0
        %4109 = vmatprep.subr.mxu0 0.0
        %4110 = vmatpush2.msra.mxu0 0.0
        %4111 = vmatprep.subr.mxu0 0.0
        %4112 = vmatpush2.msra.mxu0 0.0
        %4113 = vmatprep.subr.mxu0 0.0
        %4114 = vmatpush2.msra.mxu0 0.0
        %4115 = vmatprep.subr.mxu0 0.0
        %4116 = vmatpush2.msra.mxu0 0.0
        %4117 = vmatprep.subr.mxu0 0.0
        %4118 = vmatpush2.msra.mxu0 0.0
        %4119 = vmatprep.subr.mxu0 0.0
        %4120 = vmatpush2.msra.mxu0 0.0
        %4121 = vmatprep.subr.mxu0 0.0
        %4122 = vmatpush2.msra.mxu0 0.0
        %4123 = vmatprep.subr.mxu0 0.0
        %4124 = vmatpush2.msra.mxu0 0.0
        %4125 = vmatprep.subr.mxu0 0.0
        %4126 = vmatpush2.msra.mxu0 0.0
        %4127 = vmatprep.subr.mxu0 0.0
        %4128 = vmatpush2.msra.mxu0 0.0
        %4129 = vmatprep.subr.mxu0 0.0
        %4130 = vmatpush2.msra.mxu0 0.0
        %4131 = vmatprep.subr.mxu0 0.0
        %4132 = vmatpush2.msra.mxu0 0.0
        %4133 = vmatprep.subr.mxu0 0.0
        %4134 = vmatpush2.msra.mxu0 0.0
        %4135 = vmatprep.mubr.f32.mxu0 0.0
        %4136 = vmatmul.mubr.f32.gmra.mxu0 %v4067
        %v4137 = vpop.f32.mrf.mxu0
        %v4138 = vadd.f32 0.0, %v4137
        %v4139 = vpop.f32.mrf.mxu0
        %4140 = vmatprep.mubr.f32.mxu0 0.0
        %4141 = vmatmul.mubr.f32.gmra.mxu0 %v4068
        %v4142 = vpop.f32.mrf.mxu0
        %v4143 = vadd.f32 0.0, %v4142
        %v4144 = vpop.f32.mrf.mxu0
        %4145 = vdwg.mxu0
        %v4146 = vadd.f32 %v4022, %v4138
        %v4147 = vadd.f32 %v4023, %v4143
        %s4148 = scalar_lea.vmem [#allocation4], 4480
        %v4149 = vld [vmem:[%s4148] sm:$0xff]
        %v4150 = vld [vmem:[%s4148 + $0x8] sm:$0xff]
        %v4151 = vld [vmem:[%s4148 + $0x10] sm:$0xff]
        %v4152 = vld [vmem:[%s4148 + $0x18] sm:$0xff]
        %v4153 = vld [vmem:[%s4148 + $0x20] sm:$0xff]
        %v4154 = vld [vmem:[%s4148 + $0x28] sm:$0xff]
        %v4155 = vld [vmem:[%s4148 + $0x30] sm:$0xff]
        %v4156 = vld [vmem:[%s4148 + $0x38] sm:$0xff]
        %v4157 = vld [vmem:[%s4148 + $0x40] sm:$0xff]
        %v4158 = vld [vmem:[%s4148 + $0x48] sm:$0xff]
        %v4159 = vld [vmem:[%s4148 + $0x50] sm:$0xff]
        %v4160 = vld [vmem:[%s4148 + $0x58] sm:$0xff]
        %v4161 = vld [vmem:[%s4148 + $0x60] sm:$0xff]
        %v4162 = vld [vmem:[%s4148 + $0x68] sm:$0xff]
        %v4163 = vld [vmem:[%s4148 + $0x70] sm:$0xff]
        %v4164 = vld [vmem:[%s4148 + $0x78] sm:$0xff]
        %4165 = vrot.lane.b32.xlu0 %v4051, 112
        %v4166 = vpop.permute.xlu0 %4165
        %4167 = vrot.lane.b32.xlu0 %v4054, 112
        %v4168 = vpop.permute.xlu0 %4167
        %4169 = vrot.lane.b32.xlu0 %v4056, 112
        %v4170 = vpop.permute.xlu0 %4169
        %4171 = vrot.lane.b32.xlu0 %v4058, 112
        %v4172 = vpop.permute.xlu0 %4171
        %v4173 = vsel %vm442, %v4166, %v4168
        %v4174 = vsel %vm442, %v4170, %v4172
        %4177 = vmatprep.subr.mxu0 0.0
        %4178 = vmatpush1.msra.mxu0 %v4164
        %4179 = vmatprep.subr.mxu0 0.0
        %4180 = vmatpush1.msra.mxu0 %v4163
        %4181 = vmatprep.subr.mxu0 0.0
        %4182 = vmatpush1.msra.mxu0 %v4162
        %4183 = vmatprep.subr.mxu0 0.0
        %4184 = vmatpush1.msra.mxu0 %v4161
        %4185 = vmatprep.subr.mxu0 0.0
        %4186 = vmatpush1.msra.mxu0 %v4160
        %4187 = vmatprep.subr.mxu0 0.0
        %4188 = vmatpush1.msra.mxu0 %v4159
        %4189 = vmatprep.subr.mxu0 0.0
        %4190 = vmatpush1.msra.mxu0 %v4158
        %4191 = vmatprep.subr.mxu0 0.0
        %4192 = vmatpush1.msra.mxu0 %v4157
        %4193 = vmatprep.subr.mxu0 0.0
        %4194 = vmatpush1.msra.mxu0 %v4156
        %4195 = vmatprep.subr.mxu0 0.0
        %4196 = vmatpush1.msra.mxu0 %v4155
        %4197 = vmatprep.subr.mxu0 0.0
        %4198 = vmatpush1.msra.mxu0 %v4154
        %4199 = vmatprep.subr.mxu0 0.0
        %4200 = vmatpush1.msra.mxu0 %v4153
        %4201 = vmatprep.subr.mxu0 0.0
        %4202 = vmatpush1.msra.mxu0 %v4152
        %4203 = vmatprep.subr.mxu0 0.0
        %4204 = vmatpush1.msra.mxu0 %v4151
        %4205 = vmatprep.subr.mxu0 0.0
        %4206 = vmatpush1.msra.mxu0 %v4150
        %4207 = vmatprep.subr.mxu0 0.0
        %4208 = vmatpush1.msra.mxu0 %v4149
        %4209 = vmatprep.subr.mxu0 0.0
        %4210 = vmatpush2.msra.mxu0 0.0
        %4211 = vmatprep.subr.mxu0 0.0
        %4212 = vmatpush2.msra.mxu0 0.0
        %4213 = vmatprep.subr.mxu0 0.0
        %4214 = vmatpush2.msra.mxu0 0.0
        %4215 = vmatprep.subr.mxu0 0.0
        %4216 = vmatpush2.msra.mxu0 0.0
        %4217 = vmatprep.subr.mxu0 0.0
        %4218 = vmatpush2.msra.mxu0 0.0
        %4219 = vmatprep.subr.mxu0 0.0
        %4220 = vmatpush2.msra.mxu0 0.0
        %4221 = vmatprep.subr.mxu0 0.0
        %4222 = vmatpush2.msra.mxu0 0.0
        %4223 = vmatprep.subr.mxu0 0.0
        %4224 = vmatpush2.msra.mxu0 0.0
        %4225 = vmatprep.subr.mxu0 0.0
        %4226 = vmatpush2.msra.mxu0 0.0
        %4227 = vmatprep.subr.mxu0 0.0
        %4228 = vmatpush2.msra.mxu0 0.0
        %4229 = vmatprep.subr.mxu0 0.0
        %4230 = vmatpush2.msra.mxu0 0.0
        %4231 = vmatprep.subr.mxu0 0.0
        %4232 = vmatpush2.msra.mxu0 0.0
        %4233 = vmatprep.subr.mxu0 0.0
        %4234 = vmatpush2.msra.mxu0 0.0
        %4235 = vmatprep.subr.mxu0 0.0
        %4236 = vmatpush2.msra.mxu0 0.0
        %4237 = vmatprep.subr.mxu0 0.0
        %4238 = vmatpush2.msra.mxu0 0.0
        %4239 = vmatprep.subr.mxu0 0.0
        %4240 = vmatpush2.msra.mxu0 0.0
        %4241 = vmatprep.mubr.f32.mxu0 0.0
        %4242 = vmatmul.mubr.f32.gmra.mxu0 %v4173
        %v4243 = vpop.f32.mrf.mxu0
        %v4244 = vadd.f32 0.0, %v4243
        %v4245 = vpop.f32.mrf.mxu0
        %4246 = vmatprep.mubr.f32.mxu0 0.0
        %4247 = vmatmul.mubr.f32.gmra.mxu0 %v4174
        %v4248 = vpop.f32.mrf.mxu0
        %v4249 = vadd.f32 0.0, %v4248
        %v4250 = vpop.f32.mrf.mxu0
        %4251 = vdwg.mxu0
        %v4252 = vadd.f32 %v4146, %v4244
        %v4253 = vadd.f32 %v4147, %v4249
        %v4254 = vld [vmem:[#allocation6 + $0x3] sm:$0x1]
        %v4255 = vlaneseq
        %v4256 = vshrl.u32 %v4255, 7
        %v4257 = vsub.s32 0, %v4256
        %v4258 = vrot.slane %v4254, %v4257
        %v4259 = vadd.f32 %v4252, %v4258
        %v4260 = vadd.f32 %v4253, %v4258
        %v4263 = vrot.slane %v4259, 7
        %v4264 = vrot.slane %v4260, 7
        %v4265 = vsel %vm1211, %v4263, %v4264
        %4266 = vrot.lane.b32.xlu0 %v4263, 8
        %v4267 = vpop.permute.xlu0 %4266
        %4268 = vrot.lane.b32.xlu0 %v4265, 8
        %v4269 = vpop.permute.xlu0 %4268
        %4270 = vrot.lane.b32.xlu0 %v4264, 8
        %v4271 = vpop.permute.xlu0 %4270
        %v4275 = vadd.f32 %v3262, %v4267
        %v4276 = vadd.f32 %v3263, %v4267
        %v4277 = vadd.f32 %v3264, %v4269
        %v4278 = vadd.f32 %v3265, %v4269
        %v4279 = vadd.f32 %v3266, %v4271
        %v4280 = vadd.f32 %v3267, %v4271
        %4281 = vst [vmem:[#allocation2] sm:$0xff] 0.0
        %4282 = vst.msk [vmem:[#allocation2 + $0x8] sm:$0xff] %vm200, 0.0
        %4283 = vst [vmem:[#allocation2 + $0x10] sm:$0xff] 0.0
        %4284 = vst.msk [vmem:[#allocation2 + $0x18] sm:$0xff] %vm200, 0.0
        %4285 = vst [vmem:[#allocation2 + $0x20] sm:$0x3] 0.0
        %4286 = vst.msk [vmem:[#allocation2 + $0x28] sm:$0x3] %vm205, 0.0
        %v4293 = vrot.slane %v4275, 1
        %v4294 = vrot.slane %v4277, 1
        %v4295 = vsel %vm547, %v4293, %v4294
        %v4296 = vrot.slane %v4276, 1
        %v4297 = vrot.slane %v4278, 1
        %v4298 = vsel %vm547, %v4296, %v4297
        %v4299 = vrot.slane %v4279, 1
        %v4300 = vsel %vm547, %v4294, %v4299
        %v4301 = vrot.slane %v4280, 1
        %v4302 = vsel %vm547, %v4297, %v4301
        %4303 = vrot.lane.b32.xlu0 %v4295, 120
        %v4304 = vpop.permute.xlu0 %4303
        %4305 = vrot.lane.b32.xlu0 %v4298, 120
        %v4306 = vpop.permute.xlu0 %4305
        %4307 = vrot.lane.b32.xlu0 %v4300, 120
        %v4308 = vpop.permute.xlu0 %4307
        %4309 = vrot.lane.b32.xlu0 %v4302, 120
        %v4310 = vpop.permute.xlu0 %4309
        %v4311 = vsel %vm262, %v4304, %v4306
        %v4312 = vsel %vm262, %v4308, %v4310
        %4315 = vst [vmem:[#allocation2] sm:$0xff] %v4311
        %4316 = vst [vmem:[#allocation2 + $0x10] sm:$0xff] %v4312
        %v4317 = vld [vmem:[#allocation2] sm:$0xff]
        %v4318 = vld [vmem:[#allocation2 + $0x10] sm:$0xff]
        %v4319 = vld [vmem:[#allocation2] sm:$0xfe]
        %v4320 = vld [vmem:[#allocation2 + $0x20] sm:$0x1]
        %v4324 = vrot.slane %v4319, 1
        %v4325 = vrot.slane %v4318, 1
        %v4326 = vsel %vm547, %v4324, %v4325
        %v4327 = vrot.slane %v4320, 1
        %v4328 = vsel %vm547, %v4325, %v4327
        %v4331 = vmax.f32 %v4317, %v4326
        %v4332 = vmax.f32 %v4318, %v4328
        %v4333 = vld [vmem:[#allocation2 + $0x8] sm:$0xff]
        %v4334 = vld [vmem:[#allocation2 + $0x18] sm:$0xff]
        %v4335 = vld [vmem:[#allocation2 + $0x8] sm:$0xfe]
        %v4336 = vld [vmem:[#allocation2 + $0x28] sm:$0x1]
        %v4340 = vrot.slane %v4335, 1
        %v4341 = vrot.slane %v4334, 1
        %v4342 = vsel %vm547, %v4340, %v4341
        %v4343 = vrot.slane %v4336, 1
        %v4344 = vsel %vm547, %v4341, %v4343
        %v4347 = vmax.f32 %v4333, %v4342
        %v4348 = vmax.f32 %v4334, %v4344
        %4353 = vrot.lane.b32.xlu0 %v4331, 120
        %v4354 = vpop.permute.xlu0 %4353
        %4355 = vrot.lane.b32.xlu0 %v4347, 120
        %v4356 = vpop.permute.xlu0 %4355
        %4357 = vrot.lane.b32.xlu0 %v4332, 120
        %v4358 = vpop.permute.xlu0 %4357
        %4359 = vrot.lane.b32.xlu0 %v4348, 120
        %v4360 = vpop.permute.xlu0 %4359
        %v4361 = vsel %vm262, %v4354, %v4356
        %v4362 = vsel %vm262, %v4358, %v4360
        %v4365 = vmax.f32 %v4331, %v4361
        %v4366 = vmax.f32 %v4332, %v4362
        %4367 = vst [vmem:[%s198] sm:$0xff] %v4365
        %4368 = vst [vmem:[%s198 + $0x8] sm:$0xff] %v4366
        %p4369 = scmp.lt.s32.totalorder %s16, 1
        %s4370 = scalar_select %p4369, %s16, 1
        %s4371 = smul.addr %s4370, 2
        %s4372 = smul.addr %s4371, 8
        %s4373 = scalar_lea.vmem %s3, %s4372
        // Predicated region
        $region41: #{my_resnet_block_forward.1} parent=31 // pred_check
          %p4374 = pneg %p102
        $region42: #{my_resnet_block_forward.1} parent=31 // pred_check_branch
          %4376 = sbr.rel (%p4374) target = $region44
        $region43: #{my_resnet_block_forward.1} parent=31 // pred_region
          _
        $region44: #{my_resnet_block_forward.1} parent=31 // pred_fallthru
          _
      $region32: #{my_resnet_block_forward.1} parent=5 // pred_fallthru
        _
      %p4377 = scmp.le.s32.totalorder 2, %s11
      // Predicated region
      $region45: #{my_resnet_block_forward.1} parent=5 // pred_check
        %p4378 = pneg %p4377
      $region46: #{my_resnet_block_forward.1} parent=5 // pred_check_branch
        %4380 = sbr.rel (%p4378) target = $region48
      $region47: #{my_resnet_block_forward.1} parent=5 // pred_region
        %s4381 = ssub.s32 %s11, 2
        // Predicated region
        $region49: #{my_resnet_block_forward.1} parent=47 // pred_check
          %p4382 = pneg %p108
        $region50: #{my_resnet_block_forward.1} parent=47 // pred_check_branch
          %4384 = sbr.rel (%p4382) target = $region52
        $region51: #{my_resnet_block_forward.1} parent=47 // pred_region
          %p4385 = scmp.lt.s32.totalorder %s17, 1
          %s4386 = scalar_select %p4385, %s17, 1
          %s4387 = smul.addr %s4386, 2
          %s4388 = smul.addr %s4387, 8
          %s4389 = scalar_lea.vmem %s3, %s4388
        $region52: #{my_resnet_block_forward.1} parent=47 // pred_fallthru
          _
      $region48: #{my_resnet_block_forward.1} parent=5 // pred_fallthru
        _
    $region6: #{my_resnet_block_forward.1} parent=1 // loop_footer
      %s15 = sadd.s32 1, %s11
    $region7: #{my_resnet_block_forward.1} parent=1 // loop_footer_branch
      %10 = sbr.rel target = $region3
    $region8: #{my_resnet_block_forward.1} parent=1 // loop_exit
      _
    %4390 = vsyncpa [#allocation5], 1
    %s4391 = scalar_lea.sflag [#allocation5], 1
    %4392 = vsyncpa %s4391, 1
    %4393 = vsyncpa [#allocation7], 1

</llo_original>
